<compile_context>
chip_gen: v7x
topology: tpu7x:2x2x1
jax: 0.10.0
libtpu: 0.0.40
codegen_flags: <defaults>
</compile_context>

<pallas_src>
import functools

import jax
import jax.numpy as jnp
from jax import lax
from jax.experimental import pallas as pl
from jax.experimental.pallas import tpu as pltpu

BN_EPS = 1e-5
LEAKY_SLOPE = 0.2


# ---------------------------------------------------------------------------
# Kernels
# ---------------------------------------------------------------------------
def conv1_stats_kernel(pee_ref, peo_ref, poe_ref, poo_ref, w_ref, b_ref,
                       mask_ref, y_ref, sum_ref, ssq_ref, *, hm, wm):
    """Pass A: 3x3 stride-2 conv (+bias) for one image + per-image BN partials.

    Phase refs: (1, Cin, (hm+1)*(wm+1)) flat even/odd row/col phases of the
    reflect-padded input; tap (kh,kw) is a contiguous lane-slice of one phase.
    The output y is 'wide': (hm-1)*(wm+1)+wm columns with one wrap-around junk
    column per row; junk is masked out of the stats and never read later.
    """
    wh = wm + 1
    lw = (hm - 1) * wh + wm
    cout = w_ref.shape[1]
    phases = (pee_ref, peo_ref, poe_ref, poo_ref)      # index = rphase*2 + cphase

    acc = jnp.zeros((cout, lw), jnp.float32)
    for kh in range(3):
        rphase, roff = ((0, 0), (1, 0), (0, 1))[kh]
        for kw in range(3):
            cphase, coff = ((0, 0), (1, 0), (0, 1))[kw]
            s = roff * wh + coff
            tap = phases[rphase * 2 + cphase][0, :, s:s + lw]      # (Cin, lw)
            acc = acc + jnp.dot(w_ref[kh * 3 + kw], tap,
                                preferred_element_type=jnp.float32)
    acc = acc + b_ref[...]                              # conv bias (Cout,1)
    y_ref[0] = acc
    m = mask_ref[...]                                   # (1, lw) valid-col mask
    sum_ref[0] = jnp.sum(acc * m, axis=1, keepdims=True)
    ssq_ref[0] = jnp.sum(acc * acc * m, axis=1, keepdims=True)


def conv2_stats_kernel(y1_ref, sc1_ref, sh1_ref, w_ref, b_ref, mask_ref,
                       y2_ref, sum_ref, ssq_ref, zp_ref, *, hm, wm):
    """Pass B: BN1+LeakyReLU fused on load, in-kernel reflect pad into a flat
    VMEM scratch, 3x3 stride-1 conv (+bias), per-image BN partials."""
    wh = wm + 1                                   # width of y1's wide rows
    wp = wm + 2                                   # reflect-padded width
    lw = (hm - 1) * wp + wm
    cout = w_ref.shape[1]

    z1 = y1_ref[0] * sc1_ref[...] + sh1_ref[...]  # folded BN1   (Cout, L1)
    z1 = jnp.maximum(z1, LEAKY_SLOPE * z1)        # LeakyReLU(0.2)

    def put_row(r, zr):                           # padded row r <- z1 row zr
        row = z1[:, zr * wh:zr * wh + wm]         # (Cout, wm)
        base = r * wp
        zp_ref[:, base + 1:base + 1 + wm] = row
        zp_ref[:, base:base + 1] = row[:, 1:2]                          # left
        zp_ref[:, base + wm + 1:base + wm + 2] = row[:, wm - 2:wm - 1]  # right

    put_row(0, 1)                                 # top reflected row
    for r in range(hm):
        put_row(r + 1, r)
    put_row(hm + 1, hm - 2)                       # bottom reflected row

    acc = jnp.zeros((cout, lw), jnp.float32)
    for kh in range(3):
        for kw in range(3):
            s = kh * wp + kw
            acc = acc + jnp.dot(w_ref[kh * 3 + kw], zp_ref[:, s:s + lw],
                                preferred_element_type=jnp.float32)
    acc = acc + b_ref[...]
    y2_ref[0, :, 0:lw] = acc
    y2_ref[0, :, lw:] = jnp.zeros((cout, hm * wp - lw), jnp.float32)
    m = mask_ref[...]
    sum_ref[0] = jnp.sum(acc * m, axis=1, keepdims=True)
    ssq_ref[0] = jnp.sum(acc * acc * m, axis=1, keepdims=True)


def bn_act_upsample_kernel(y2_ref, sc2_ref, sh2_ref, a_ref, bt_ref, o_ref, *, wm):
    """Pass C: folded BN2 + LeakyReLU fused with the separable bilinear x2
    upsample (align_corners=True): out_c = A @ z_c @ B^T per channel."""
    cout = y2_ref.shape[1]
    z = y2_ref[0] * sc2_ref[...] + sh2_ref[...]        # (Cout, hm, wm+2)
    z = jnp.maximum(z, LEAKY_SLOPE * z)
    for c in range(cout):                              # Cout static, unrolled
        zc = z[c, :, 0:wm]                             # (hm, wm) valid columns
        t = jnp.dot(a_ref[...], zc, preferred_element_type=jnp.float32)
        o_ref[0, c] = jnp.dot(t, bt_ref[...], preferred_element_type=jnp.float32)


# ---------------------------------------------------------------------------
# Wrapper-side helpers (tiny layout / scalar plumbing)
# ---------------------------------------------------------------------------
def _interp_matrix(out_size, in_size):
    """align_corners=True bilinear interpolation weights, shape (out, in)."""
    pos = jnp.arange(out_size, dtype=jnp.float32) * (
        (in_size - 1) / max(out_size - 1, 1))
    lo = jnp.clip(jnp.floor(pos).astype(jnp.int32), 0, max(in_size - 2, 0))
    frac = pos - lo.astype(jnp.float32)
    cols = jnp.arange(in_size)[None, :]
    m = ((cols == lo[:, None]) * (1.0 - frac[:, None])
         + (cols == (lo + 1)[:, None]) * frac[:, None])
    return m.astype(jnp.float32)


def _bn_fold(sum_p, ssq_p, gamma, beta, count):
    """Fold train-mode BatchNorm into one per-channel scale/shift."""
    mean = jnp.sum(sum_p, axis=0) / count                         # (Cout, 1)
    var = jnp.maximum(jnp.sum(ssq_p, axis=0) / count - mean * mean, 0.0)
    # TODO(synk): switch to a centered second pass (Welford) if activations are
    # not O(1); sumsq/N - mean^2 can lose precision at large magnitudes.
    scale = gamma.reshape(-1, 1) * lax.rsqrt(var + BN_EPS)
    shift = beta.reshape(-1, 1) - scale * mean
    return scale, shift


# ---------------------------------------------------------------------------
# Forward
# ---------------------------------------------------------------------------
@jax.jit
def downup_forward(x, w1, b1, g1, be1, w2, b2, g2, be2):
    n, cin, h, w = x.shape
    cout = w1.shape[0]
    hm = (h + 2 - 3) // 2 + 1            # conv1 (stride 2) output height
    wm = (w + 2 - 3) // 2 + 1
    hh, wh = hm + 1, wm + 1              # phase-slab spatial dims
    wp = wm + 2                          # reflect-padded width for conv2
    l1 = (hm - 1) * wh + wm              # wide-row length of y1
    l2 = (hm - 1) * wp + wm              # wide-row length of y2
    ho, wo = 2 * hm, 2 * wm
    count = float(n * hm * wm)
    fparallel = pltpu.CompilerParams(dimension_semantics=("parallel",))

    # even/odd row/col phases of the reflect-padded input (space-to-depth turns
    # the stride-2 taps into contiguous slices; total bytes == padded input).
    xp = jnp.pad(x, ((0, 0), (0, 0), (1, 1), (1, 1)), mode="reflect")
    phases = []
    for r0 in (0, 1):
        for c0 in (0, 1):
            ph = xp[:, :, r0::2, c0::2]
            ph = jnp.pad(ph, ((0, 0), (0, 0),
                              (0, hh - ph.shape[2]), (0, wh - ph.shape[3])))
            phases.append(ph.reshape(n, cin, hh * wh))

    w1t = jnp.transpose(w1, (2, 3, 0, 1)).reshape(9, cout, cin)
    w2t = jnp.transpose(w2, (2, 3, 0, 1)).reshape(9, cout, cout)
    mask1 = ((jnp.arange(l1) % wh) < wm).astype(jnp.float32).reshape(1, l1)
    mask2 = ((jnp.arange(l2) % wp) < wm).astype(jnp.float32).reshape(1, l2)

    # --- pass A: conv1 + bias + per-image BN partial sums --------------------
    phase_spec = pl.BlockSpec((1, cin, hh * wh), lambda i: (i, 0, 0))
    y1, s1, q1 = pl.pallas_call(
        functools.partial(conv1_stats_kernel, hm=hm, wm=wm),
        out_shape=(jax.ShapeDtypeStruct((n, cout, l1), jnp.float32),
                   jax.ShapeDtypeStruct((n, cout, 1), jnp.float32),
                   jax.ShapeDtypeStruct((n, cout, 1), jnp.float32)),
        grid=(n,),
        in_specs=[phase_spec, phase_spec, phase_spec, phase_spec,
                  pl.BlockSpec((9, cout, cin), lambda i: (0, 0, 0)),
                  pl.BlockSpec((cout, 1), lambda i: (0, 0)),
                  pl.BlockSpec((1, l1), lambda i: (0, 0))],
        out_specs=(pl.BlockSpec((1, cout, l1), lambda i: (i, 0, 0)),
                   pl.BlockSpec((1, cout, 1), lambda i: (i, 0, 0)),
                   pl.BlockSpec((1, cout, 1), lambda i: (i, 0, 0))),
        compiler_params=fparallel,
    )(*phases, w1t, b1.reshape(cout, 1), mask1)

    sc1, sh1 = _bn_fold(s1, q1, g1, be1, count)

    # --- pass B: fused BN1/act, in-kernel reflect pad, conv2 + partials ------
    y2, s2, q2 = pl.pallas_call(
        functools.partial(conv2_stats_kernel, hm=hm, wm=wm),
        out_shape=(jax.ShapeDtypeStruct((n, cout, hm * wp), jnp.float32),
                   jax.ShapeDtypeStruct((n, cout, 1), jnp.float32),
                   jax.ShapeDtypeStruct((n, cout, 1), jnp.float32)),
        grid=(n,),
        in_specs=[pl.BlockSpec((1, cout, l1), lambda i: (i, 0, 0)),
                  pl.BlockSpec((cout, 1), lambda i: (0, 0)),
                  pl.BlockSpec((cout, 1), lambda i: (0, 0)),
                  pl.BlockSpec((9, cout, cout), lambda i: (0, 0, 0)),
                  pl.BlockSpec((cout, 1), lambda i: (0, 0)),
                  pl.BlockSpec((1, l2), lambda i: (0, 0))],
        out_specs=(pl.BlockSpec((1, cout, hm * wp), lambda i: (i, 0, 0)),
                   pl.BlockSpec((1, cout, 1), lambda i: (i, 0, 0)),
                   pl.BlockSpec((1, cout, 1), lambda i: (i, 0, 0))),
        scratch_shapes=[pltpu.VMEM((cout, (hm + 2) * wp), jnp.float32)],
        compiler_params=fparallel,
    )(y1, sc1, sh1, w2t, b2.reshape(cout, 1), mask2)

    sc2, sh2 = _bn_fold(s2, q2, g2, be2, count)

    # --- pass C: fused BN2/act + separable bilinear x2 upsample --------------
    y2r = y2.reshape(n, cout, hm, wp)          # free row-major split of minor dim
    a_mat = _interp_matrix(ho, hm)             # (Ho, hm)
    bt_mat = _interp_matrix(wo, wm).T          # (wm, Wo)
    out = pl.pallas_call(
        functools.partial(bn_act_upsample_kernel, wm=wm),
        out_shape=jax.ShapeDtypeStruct((n, cout, ho, wo), jnp.float32),
        grid=(n,),
        in_specs=[pl.BlockSpec((1, cout, hm, wp), lambda i: (i, 0, 0, 0)),
                  pl.BlockSpec((cout, 1, 1), lambda i: (0, 0, 0)),
                  pl.BlockSpec((cout, 1, 1), lambda i: (0, 0, 0)),
                  pl.BlockSpec((ho, hm), lambda i: (0, 0)),
                  pl.BlockSpec((wm, wo), lambda i: (0, 0))],
        out_specs=pl.BlockSpec((1, cout, ho, wo), lambda i: (i, 0, 0, 0)),
        compiler_params=fparallel,
    )(y2r, sc2.reshape(cout, 1, 1), sh2.reshape(cout, 1, 1), a_mat, bt_mat)
    return out


# ---------------------------------------------------------------------------
# Plain-JAX reference (independent path)
# ---------------------------------------------------------------------------
def reference_forward(x, w1, b1, g1, be1, w2, b2, g2, be2):
    def conv(inp, w, b, stride):
        xp = jnp.pad(inp, ((0, 0), (0, 0), (1, 1), (1, 1)), mode="reflect")
        y = lax.conv_general_dilated(
            xp, w, (stride, stride), "VALID",
            dimension_numbers=("NCHW", "OIHW", "NCHW"))
        return y + b.reshape(1, -1, 1, 1)

    def bn_act(y, g, be):
        mean = jnp.mean(y, axis=(0, 2, 3), keepdims=True)
        var = jnp.mean((y - mean) ** 2, axis=(0, 2, 3), keepdims=True)
        z = (g.reshape(1, -1, 1, 1) * (y - mean) / jnp.sqrt(var + BN_EPS)
             + be.reshape(1, -1, 1, 1))
        return jnp.where(z >= 0, z, LEAKY_SLOPE * z)

    y = bn_act(conv(x, w1, b1, 2), g1, be1)
    y = bn_act(conv(y, w2, b2, 1), g2, be2)

    n, c, hi, wi = y.shape
    ho, wo = 2 * hi, 2 * wi

    def lerp_axis(img, out_size, in_size, axis):
        pos = jnp.arange(out_size, dtype=jnp.float32) * (
            (in_size - 1) / max(out_size - 1, 1))
        lo = jnp.clip(jnp.floor(pos).astype(jnp.int32), 0, max(in_size - 2, 0))
        frac = pos - lo.astype(jnp.float32)
        lo_v = jnp.take(img, lo, axis=axis)
        hi_v = jnp.take(img, jnp.minimum(lo + 1, in_size - 1), axis=axis)
        shape = [1] * img.ndim
        shape[axis] = out_size
        return lo_v * (1.0 - frac.reshape(shape)) + hi_v * frac.reshape(shape)

    return lerp_axis(lerp_axis(y, ho, hi, 2), wo, wi, 3)


# ---------------------------------------------------------------------------
if __name__ == "__main__":
    key = jax.random.PRNGKey(0)
    kx, kw1, kb1, kw2, kb2, kg1, kbe1, kg2, kbe2 = jax.random.split(key, 9)

    N, Cin, Cout, H, W = 2, 4, 8, 16, 16
    x = jax.random.normal(kx, (N, Cin, H, W), dtype=jnp.float32)

    bound1 = 1.0 / (Cin * 9) ** 0.5
    w1 = jax.random.uniform(kw1, (Cout, Cin, 3, 3), minval=-bound1,
                            maxval=bound1, dtype=jnp.float32)
    b1 = jax.random.uniform(kb1, (Cout,), minval=-bound1, maxval=bound1,
                            dtype=jnp.float32)
    bound2 = 1.0 / (Cout * 9) ** 0.5
    w2 = jax.random.uniform(kw2, (Cout, Cout, 3, 3), minval=-bound2,
                            maxval=bound2, dtype=jnp.float32)
    b2 = jax.random.uniform(kb2, (Cout,), minval=-bound2, maxval=bound2,
                            dtype=jnp.float32)
    g1 = 1.0 + 0.1 * jax.random.normal(kg1, (Cout,), dtype=jnp.float32)
    be1 = 0.1 * jax.random.normal(kbe1, (Cout,), dtype=jnp.float32)
    g2 = 1.0 + 0.1 * jax.random.normal(kg2, (Cout,), dtype=jnp.float32)
    be2 = 0.1 * jax.random.normal(kbe2, (Cout,), dtype=jnp.float32)

    out = downup_forward(x, w1, b1, g1, be1, w2, b2, g2, be2)
    jax.block_until_ready(out)

    ref = reference_forward(x, w1, b1, g1, be1, w2, b2, g2, be2)
    assert out.shape == (N, Cout, H, W), out.shape
    max_err = float(jnp.max(jnp.abs(out - ref)))
    assert jnp.allclose(out, ref, atol=1e-4, rtol=1e-4), max_err

    print("KERNEL_OK")
</pallas_src>

<mosaic_0001>
module attributes {stable_mosaic.version = 11 : i64} {
  func.func @conv1_stats_kernel(%arg0: i32, %arg1: memref<1x4x81xf32, #tpu.memory_space<vmem>>, %arg2: memref<1x4x81xf32, #tpu.memory_space<vmem>>, %arg3: memref<1x4x81xf32, #tpu.memory_space<vmem>>, %arg4: memref<1x4x81xf32, #tpu.memory_space<vmem>>, %arg5: memref<9x8x4xf32, #tpu.memory_space<vmem>>, %arg6: memref<8x1xf32, #tpu.memory_space<vmem>>, %arg7: memref<1x71xf32, #tpu.memory_space<vmem>>, %arg8: memref<1x8x71xf32, #tpu.memory_space<vmem>>, %arg9: memref<1x8x1xf32, #tpu.memory_space<vmem>>, %arg10: memref<1x8x1xf32, #tpu.memory_space<vmem>>) attributes {dimension_semantics = [#tpu.dimension_semantics<parallel>], iteration_bounds = array<i64: 2>, scalar_prefetch = 0 : i64, scratch_operands = 0 : i64, tpu.core_type = #tpu.core_type<tc>, window_params = [{transform_indices = @transform_0, window_bounds = array<i64: 1, 4, 81>}, {transform_indices = @transform_1, window_bounds = array<i64: 1, 4, 81>}, {transform_indices = @transform_2, window_bounds = array<i64: 1, 4, 81>}, {transform_indices = @transform_3, window_bounds = array<i64: 1, 4, 81>}, {pipeline_mode = #tpu.pipeline_mode<synchronous>, transform_indices = @transform_4, window_bounds = array<i64: 9, 8, 4>}, {pipeline_mode = #tpu.pipeline_mode<synchronous>, transform_indices = @transform_5, window_bounds = array<i64: 8, 1>}, {pipeline_mode = #tpu.pipeline_mode<synchronous>, transform_indices = @transform_6, window_bounds = array<i64: 1, 71>}, {transform_indices = @transform_7, window_bounds = array<i64: 1, 8, 71>}, {transform_indices = @transform_8, window_bounds = array<i64: 1, 8, 1>}, {transform_indices = @transform_9, window_bounds = array<i64: 1, 8, 1>}]} {
    %cst = arith.constant 0.000000e+00 : f32
    %0 = vector.broadcast %cst : f32 to vector<8x71xf32>
    %c0 = arith.constant 0 : index
    %c0_0 = arith.constant 0 : index
    %c0_1 = arith.constant 0 : index
    %1 = vector.load %arg1[%c0, %c0_0, %c0_1] : memref<1x4x81xf32, #tpu.memory_space<vmem>>, vector<1x4x71xf32>
    %2 = vector.shape_cast %1 : vector<1x4x71xf32> to vector<4x71xf32>
    %c0_2 = arith.constant 0 : index
    %c0_3 = arith.constant 0 : index
    %c0_4 = arith.constant 0 : index
    %3 = vector.load %arg5[%c0_2, %c0_3, %c0_4] : memref<9x8x4xf32, #tpu.memory_space<vmem>>, vector<1x8x4xf32>
    %4 = vector.shape_cast %3 : vector<1x8x4xf32> to vector<8x4xf32>
    %cst_5 = arith.constant dense<0.000000e+00> : vector<8x71xf32>
    %5 = tpu.matmul %4, %2, %cst_5 {dimension_numbers = #tpu.dot_dimension_numbers<[1], [0], [0], [1], [0, 0, 1, 1], [], []>} : vector<8x4xf32>, vector<4x71xf32>, vector<8x71xf32> -> vector<8x71xf32>
    %6 = arith.addf %0, %5 : vector<8x71xf32>
    %c0_6 = arith.constant 0 : index
    %c0_7 = arith.constant 0 : index
    %c0_8 = arith.constant 0 : index
    %7 = vector.load %arg2[%c0_6, %c0_7, %c0_8] : memref<1x4x81xf32, #tpu.memory_space<vmem>>, vector<1x4x71xf32>
    %8 = vector.shape_cast %7 : vector<1x4x71xf32> to vector<4x71xf32>
    %c1 = arith.constant 1 : index
    %c0_9 = arith.constant 0 : index
    %c0_10 = arith.constant 0 : index
    %9 = vector.load %arg5[%c1, %c0_9, %c0_10] : memref<9x8x4xf32, #tpu.memory_space<vmem>>, vector<1x8x4xf32>
    %10 = vector.shape_cast %9 : vector<1x8x4xf32> to vector<8x4xf32>
    %cst_11 = arith.constant dense<0.000000e+00> : vector<8x71xf32>
    %11 = tpu.matmul %10, %8, %cst_11 {dimension_numbers = #tpu.dot_dimension_numbers<[1], [0], [0], [1], [0, 0, 1, 1], [], []>} : vector<8x4xf32>, vector<4x71xf32>, vector<8x71xf32> -> vector<8x71xf32>
    %12 = arith.addf %6, %11 : vector<8x71xf32>
    %c0_12 = arith.constant 0 : index
    %c0_13 = arith.constant 0 : index
    %c1_14 = arith.constant 1 : index
    %13 = vector.load %arg1[%c0_12, %c0_13, %c1_14] : memref<1x4x81xf32, #tpu.memory_space<vmem>>, vector<1x4x71xf32>
    %14 = vector.shape_cast %13 : vector<1x4x71xf32> to vector<4x71xf32>
    %c2 = arith.constant 2 : index
    %c0_15 = arith.constant 0 : index
    %c0_16 = arith.constant 0 : index
    %15 = vector.load %arg5[%c2, %c0_15, %c0_16] : memref<9x8x4xf32, #tpu.memory_space<vmem>>, vector<1x8x4xf32>
    %16 = vector.shape_cast %15 : vector<1x8x4xf32> to vector<8x4xf32>
    %cst_17 = arith.constant dense<0.000000e+00> : vector<8x71xf32>
    %17 = tpu.matmul %16, %14, %cst_17 {dimension_numbers = #tpu.dot_dimension_numbers<[1], [0], [0], [1], [0, 0, 1, 1], [], []>} : vector<8x4xf32>, vector<4x71xf32>, vector<8x71xf32> -> vector<8x71xf32>
    %18 = arith.addf %12, %17 : vector<8x71xf32>
    %c0_18 = arith.constant 0 : index
    %c0_19 = arith.constant 0 : index
    %c0_20 = arith.constant 0 : index
    %19 = vector.load %arg3[%c0_18, %c0_19, %c0_20] : memref<1x4x81xf32, #tpu.memory_space<vmem>>, vector<1x4x71xf32>
    %20 = vector.shape_cast %19 : vector<1x4x71xf32> to vector<4x71xf32>
    %c3 = arith.constant 3 : index
    %c0_21 = arith.constant 0 : index
    %c0_22 = arith.constant 0 : index
    %21 = vector.load %arg5[%c3, %c0_21, %c0_22] : memref<9x8x4xf32, #tpu.memory_space<vmem>>, vector<1x8x4xf32>
    %22 = vector.shape_cast %21 : vector<1x8x4xf32> to vector<8x4xf32>
    %cst_23 = arith.constant dense<0.000000e+00> : vector<8x71xf32>
    %23 = tpu.matmul %22, %20, %cst_23 {dimension_numbers = #tpu.dot_dimension_numbers<[1], [0], [0], [1], [0, 0, 1, 1], [], []>} : vector<8x4xf32>, vector<4x71xf32>, vector<8x71xf32> -> vector<8x71xf32>
    %24 = arith.addf %18, %23 : vector<8x71xf32>
    %c0_24 = arith.constant 0 : index
    %c0_25 = arith.constant 0 : index
    %c0_26 = arith.constant 0 : index
    %25 = vector.load %arg4[%c0_24, %c0_25, %c0_26] : memref<1x4x81xf32, #tpu.memory_space<vmem>>, vector<1x4x71xf32>
    %26 = vector.shape_cast %25 : vector<1x4x71xf32> to vector<4x71xf32>
    %c4 = arith.constant 4 : index
    %c0_27 = arith.constant 0 : index
    %c0_28 = arith.constant 0 : index
    %27 = vector.load %arg5[%c4, %c0_27, %c0_28] : memref<9x8x4xf32, #tpu.memory_space<vmem>>, vector<1x8x4xf32>
    %28 = vector.shape_cast %27 : vector<1x8x4xf32> to vector<8x4xf32>
    %cst_29 = arith.constant dense<0.000000e+00> : vector<8x71xf32>
    %29 = tpu.matmul %28, %26, %cst_29 {dimension_numbers = #tpu.dot_dimension_numbers<[1], [0], [0], [1], [0, 0, 1, 1], [], []>} : vector<8x4xf32>, vector<4x71xf32>, vector<8x71xf32> -> vector<8x71xf32>
    %30 = arith.addf %24, %29 : vector<8x71xf32>
    %c0_30 = arith.constant 0 : index
    %c0_31 = arith.constant 0 : index
    %c1_32 = arith.constant 1 : index
    %31 = vector.load %arg3[%c0_30, %c0_31, %c1_32] : memref<1x4x81xf32, #tpu.memory_space<vmem>>, vector<1x4x71xf32>
    %32 = vector.shape_cast %31 : vector<1x4x71xf32> to vector<4x71xf32>
    %c5 = arith.constant 5 : index
    %c0_33 = arith.constant 0 : index
    %c0_34 = arith.constant 0 : index
    %33 = vector.load %arg5[%c5, %c0_33, %c0_34] : memref<9x8x4xf32, #tpu.memory_space<vmem>>, vector<1x8x4xf32>
    %34 = vector.shape_cast %33 : vector<1x8x4xf32> to vector<8x4xf32>
    %cst_35 = arith.constant dense<0.000000e+00> : vector<8x71xf32>
    %35 = tpu.matmul %34, %32, %cst_35 {dimension_numbers = #tpu.dot_dimension_numbers<[1], [0], [0], [1], [0, 0, 1, 1], [], []>} : vector<8x4xf32>, vector<4x71xf32>, vector<8x71xf32> -> vector<8x71xf32>
    %36 = arith.addf %30, %35 : vector<8x71xf32>
    %c0_36 = arith.constant 0 : index
    %c0_37 = arith.constant 0 : index
    %c9 = arith.constant 9 : index
    %37 = vector.load %arg1[%c0_36, %c0_37, %c9] : memref<1x4x81xf32, #tpu.memory_space<vmem>>, vector<1x4x71xf32>
    %38 = vector.shape_cast %37 : vector<1x4x71xf32> to vector<4x71xf32>
    %c6 = arith.constant 6 : index
    %c0_38 = arith.constant 0 : index
    %c0_39 = arith.constant 0 : index
    %39 = vector.load %arg5[%c6, %c0_38, %c0_39] : memref<9x8x4xf32, #tpu.memory_space<vmem>>, vector<1x8x4xf32>
    %40 = vector.shape_cast %39 : vector<1x8x4xf32> to vector<8x4xf32>
    %cst_40 = arith.constant dense<0.000000e+00> : vector<8x71xf32>
    %41 = tpu.matmul %40, %38, %cst_40 {dimension_numbers = #tpu.dot_dimension_numbers<[1], [0], [0], [1], [0, 0, 1, 1], [], []>} : vector<8x4xf32>, vector<4x71xf32>, vector<8x71xf32> -> vector<8x71xf32>
    %42 = arith.addf %36, %41 : vector<8x71xf32>
    %c0_41 = arith.constant 0 : index
    %c0_42 = arith.constant 0 : index
    %c9_43 = arith.constant 9 : index
    %43 = vector.load %arg2[%c0_41, %c0_42, %c9_43] : memref<1x4x81xf32, #tpu.memory_space<vmem>>, vector<1x4x71xf32>
    %44 = vector.shape_cast %43 : vector<1x4x71xf32> to vector<4x71xf32>
    %c7 = arith.constant 7 : index
    %c0_44 = arith.constant 0 : index
    %c0_45 = arith.constant 0 : index
    %45 = vector.load %arg5[%c7, %c0_44, %c0_45] : memref<9x8x4xf32, #tpu.memory_space<vmem>>, vector<1x8x4xf32>
    %46 = vector.shape_cast %45 : vector<1x8x4xf32> to vector<8x4xf32>
    %cst_46 = arith.constant dense<0.000000e+00> : vector<8x71xf32>
    %47 = tpu.matmul %46, %44, %cst_46 {dimension_numbers = #tpu.dot_dimension_numbers<[1], [0], [0], [1], [0, 0, 1, 1], [], []>} : vector<8x4xf32>, vector<4x71xf32>, vector<8x71xf32> -> vector<8x71xf32>
    %48 = arith.addf %42, %47 : vector<8x71xf32>
    %c0_47 = arith.constant 0 : index
    %c0_48 = arith.constant 0 : index
    %c10 = arith.constant 10 : index
    %49 = vector.load %arg1[%c0_47, %c0_48, %c10] : memref<1x4x81xf32, #tpu.memory_space<vmem>>, vector<1x4x71xf32>
    %50 = vector.shape_cast %49 : vector<1x4x71xf32> to vector<4x71xf32>
    %c8 = arith.constant 8 : index
    %c0_49 = arith.constant 0 : index
    %c0_50 = arith.constant 0 : index
    %51 = vector.load %arg5[%c8, %c0_49, %c0_50] : memref<9x8x4xf32, #tpu.memory_space<vmem>>, vector<1x8x4xf32>
    %52 = vector.shape_cast %51 : vector<1x8x4xf32> to vector<8x4xf32>
    %cst_51 = arith.constant dense<0.000000e+00> : vector<8x71xf32>
    %53 = tpu.matmul %52, %50, %cst_51 {dimension_numbers = #tpu.dot_dimension_numbers<[1], [0], [0], [1], [0, 0, 1, 1], [], []>} : vector<8x4xf32>, vector<4x71xf32>, vector<8x71xf32> -> vector<8x71xf32>
    %54 = arith.addf %48, %53 : vector<8x71xf32>
    %c0_52 = arith.constant 0 : index
    %c0_53 = arith.constant 0 : index
    %55 = vector.load %arg6[%c0_52, %c0_53] : memref<8x1xf32, #tpu.memory_space<vmem>>, vector<8x1xf32>
    %56 = vector.broadcast %55 : vector<8x1xf32> to vector<8x71xf32>
    %57 = arith.addf %54, %56 : vector<8x71xf32>
    %c0_54 = arith.constant 0 : index
    %c0_55 = arith.constant 0 : index
    %c0_56 = arith.constant 0 : index
    %58 = vector.load %arg8[%c0_54, %c0_55, %c0_56] : memref<1x8x71xf32, #tpu.memory_space<vmem>>, vector<1x8x71xf32>
    %59 = vector.shape_cast %58 : vector<1x8x71xf32> to vector<8x71xf32>
    %60 = vector.shape_cast %57 : vector<8x71xf32> to vector<1x8x71xf32>
    tpu.vector_store %arg8[%c0_54, %c0_55, %c0_56], %60 {strides = array<i32>} : memref<1x8x71xf32, #tpu.memory_space<vmem>>, vector<1x8x71xf32>,
    %c0_57 = arith.constant 0 : index
    %c0_58 = arith.constant 0 : index
    %61 = vector.load %arg7[%c0_57, %c0_58] : memref<1x71xf32, #tpu.memory_space<vmem>>, vector<1x71xf32>
    %62 = vector.broadcast %61 : vector<1x71xf32> to vector<8x71xf32>
    %63 = arith.mulf %57, %62 : vector<8x71xf32>
    %cst_59 = arith.constant dense<0.000000e+00> : vector<8xf32>
    %64 = vector.multi_reduction <add>, %63, %cst_59 [1] : vector<8x71xf32> to vector<8xf32>
    %65 = vector.shape_cast %64 : vector<8xf32> to vector<8x1xf32>
    %c0_60 = arith.constant 0 : index
    %c0_61 = arith.constant 0 : index
    %c0_62 = arith.constant 0 : index
    %66 = vector.load %arg9[%c0_60, %c0_61, %c0_62] : memref<1x8x1xf32, #tpu.memory_space<vmem>>, vector<1x8x1xf32>
    %67 = vector.shape_cast %66 : vector<1x8x1xf32> to vector<8x1xf32>
    %68 = vector.shape_cast %65 : vector<8x1xf32> to vector<1x8x1xf32>
    tpu.vector_store %arg9[%c0_60, %c0_61, %c0_62], %68 {strides = array<i32>} : memref<1x8x1xf32, #tpu.memory_space<vmem>>, vector<1x8x1xf32>,
    %69 = arith.mulf %57, %57 : vector<8x71xf32>
    %70 = vector.broadcast %61 : vector<1x71xf32> to vector<8x71xf32>
    %71 = arith.mulf %69, %70 : vector<8x71xf32>
    %cst_63 = arith.constant dense<0.000000e+00> : vector<8xf32>
    %72 = vector.multi_reduction <add>, %71, %cst_63 [1] : vector<8x71xf32> to vector<8xf32>
    %73 = vector.shape_cast %72 : vector<8xf32> to vector<8x1xf32>
    %c0_64 = arith.constant 0 : index
    %c0_65 = arith.constant 0 : index
    %c0_66 = arith.constant 0 : index
    %74 = vector.load %arg10[%c0_64, %c0_65, %c0_66] : memref<1x8x1xf32, #tpu.memory_space<vmem>>, vector<1x8x1xf32>
    %75 = vector.shape_cast %74 : vector<1x8x1xf32> to vector<8x1xf32>
    %76 = vector.shape_cast %73 : vector<8x1xf32> to vector<1x8x1xf32>
    tpu.vector_store %arg10[%c0_64, %c0_65, %c0_66], %76 {strides = array<i32>} : memref<1x8x1xf32, #tpu.memory_space<vmem>>, vector<1x8x1xf32>,
    return
  }
  func.func @transform_0(%arg0: i32) -> (i32, i32, i32) {
    %c0_i32 = arith.constant 0 : i32
    %c0_i32_0 = arith.constant 0 : i32
    %c0_i32_1 = arith.constant 0 : i32
    return %arg0, %c0_i32, %c0_i32_0 : i32, i32, i32
  }
  func.func @transform_1(%arg0: i32) -> (i32, i32, i32) {
    %c0_i32 = arith.constant 0 : i32
    %c0_i32_0 = arith.constant 0 : i32
    %c0_i32_1 = arith.constant 0 : i32
    return %arg0, %c0_i32, %c0_i32_0 : i32, i32, i32
  }
  func.func @transform_2(%arg0: i32) -> (i32, i32, i32) {
    %c0_i32 = arith.constant 0 : i32
    %c0_i32_0 = arith.constant 0 : i32
    %c0_i32_1 = arith.constant 0 : i32
    return %arg0, %c0_i32, %c0_i32_0 : i32, i32, i32
  }
  func.func @transform_3(%arg0: i32) -> (i32, i32, i32) {
    %c0_i32 = arith.constant 0 : i32
    %c0_i32_0 = arith.constant 0 : i32
    %c0_i32_1 = arith.constant 0 : i32
    return %arg0, %c0_i32, %c0_i32_0 : i32, i32, i32
  }
  func.func @transform_4(%arg0: i32) -> (i32, i32, i32) {
    %c0_i32 = arith.constant 0 : i32
    %c0_i32_0 = arith.constant 0 : i32
    %c0_i32_1 = arith.constant 0 : i32
    %c0_i32_2 = arith.constant 0 : i32
    return %c0_i32, %c0_i32_0, %c0_i32_1 : i32, i32, i32
  }
  func.func @transform_5(%arg0: i32) -> (i32, i32) {
    %c0_i32 = arith.constant 0 : i32
    %c0_i32_0 = arith.constant 0 : i32
    %c0_i32_1 = arith.constant 0 : i32
    return %c0_i32, %c0_i32_0 : i32, i32
  }
  func.func @transform_6(%arg0: i32) -> (i32, i32) {
    %c0_i32 = arith.constant 0 : i32
    %c0_i32_0 = arith.constant 0 : i32
    %c0_i32_1 = arith.constant 0 : i32
    return %c0_i32, %c0_i32_0 : i32, i32
  }
  func.func @transform_7(%arg0: i32) -> (i32, i32, i32) {
    %c0_i32 = arith.constant 0 : i32
    %c0_i32_0 = arith.constant 0 : i32
    %c0_i32_1 = arith.constant 0 : i32
    return %arg0, %c0_i32, %c0_i32_0 : i32, i32, i32
  }
  func.func @transform_8(%arg0: i32) -> (i32, i32, i32) {
    %c0_i32 = arith.constant 0 : i32
    %c0_i32_0 = arith.constant 0 : i32
    %c0_i32_1 = arith.constant 0 : i32
    return %arg0, %c0_i32, %c0_i32_0 : i32, i32, i32
  }
  func.func @transform_9(%arg0: i32) -> (i32, i32, i32) {
    %c0_i32 = arith.constant 0 : i32
    %c0_i32_0 = arith.constant 0 : i32
    %c0_i32_1 = arith.constant 0 : i32
    return %arg0, %c0_i32, %c0_i32_0 : i32, i32, i32
  }
}

module attributes {stable_mosaic.version = 11 : i64} {
  func.func @conv2_stats_kernel(%arg0: i32, %arg1: memref<1x8x71xf32, #tpu.memory_space<vmem>>, %arg2: memref<8x1xf32, #tpu.memory_space<vmem>>, %arg3: memref<8x1xf32, #tpu.memory_space<vmem>>, %arg4: memref<9x8x8xf32, #tpu.memory_space<vmem>>, %arg5: memref<8x1xf32, #tpu.memory_space<vmem>>, %arg6: memref<1x78xf32, #tpu.memory_space<vmem>>, %arg7: memref<1x8x80xf32, #tpu.memory_space<vmem>>, %arg8: memref<1x8x1xf32, #tpu.memory_space<vmem>>, %arg9: memref<1x8x1xf32, #tpu.memory_space<vmem>>, %arg10: memref<8x100xf32, #tpu.memory_space<vmem>>) attributes {dimension_semantics = [#tpu.dimension_semantics<parallel>], iteration_bounds = array<i64: 2>, scalar_prefetch = 0 : i64, scratch_operands = 1 : i64, tpu.core_type = #tpu.core_type<tc>, window_params = [{transform_indices = @transform_0, window_bounds = array<i64: 1, 8, 71>}, {pipeline_mode = #tpu.pipeline_mode<synchronous>, transform_indices = @transform_1, window_bounds = array<i64: 8, 1>}, {pipeline_mode = #tpu.pipeline_mode<synchronous>, transform_indices = @transform_2, window_bounds = array<i64: 8, 1>}, {pipeline_mode = #tpu.pipeline_mode<synchronous>, transform_indices = @transform_3, window_bounds = array<i64: 9, 8, 8>}, {pipeline_mode = #tpu.pipeline_mode<synchronous>, transform_indices = @transform_4, window_bounds = array<i64: 8, 1>}, {pipeline_mode = #tpu.pipeline_mode<synchronous>, transform_indices = @transform_5, window_bounds = array<i64: 1, 78>}, {transform_indices = @transform_6, window_bounds = array<i64: 1, 8, 80>}, {transform_indices = @transform_7, window_bounds = array<i64: 1, 8, 1>}, {transform_indices = @transform_8, window_bounds = array<i64: 1, 8, 1>}]} {
    %c0 = arith.constant 0 : index
    %c0_0 = arith.constant 0 : index
    %c0_1 = arith.constant 0 : index
    %0 = vector.load %arg1[%c0, %c0_0, %c0_1] : memref<1x8x71xf32, #tpu.memory_space<vmem>>, vector<1x8x71xf32>
    %1 = vector.shape_cast %0 : vector<1x8x71xf32> to vector<8x71xf32>
    %c0_2 = arith.constant 0 : index
    %c0_3 = arith.constant 0 : index
    %2 = vector.load %arg2[%c0_2, %c0_3] : memref<8x1xf32, #tpu.memory_space<vmem>>, vector<8x1xf32>
    %3 = vector.broadcast %2 : vector<8x1xf32> to vector<8x71xf32>
    %4 = arith.mulf %1, %3 : vector<8x71xf32>
    %c0_4 = arith.constant 0 : index
    %c0_5 = arith.constant 0 : index
    %5 = vector.load %arg3[%c0_4, %c0_5] : memref<8x1xf32, #tpu.memory_space<vmem>>, vector<8x1xf32>
    %6 = vector.broadcast %5 : vector<8x1xf32> to vector<8x71xf32>
    %7 = arith.addf %4, %6 : vector<8x71xf32>
    %cst = arith.constant 2.000000e-01 : f32
    %8 = vector.broadcast %cst : f32 to vector<8x71xf32>
    %9 = arith.mulf %8, %7 : vector<8x71xf32>
    %10 = arith.maximumf %7, %9 : vector<8x71xf32>
    %11 = vector.extract_strided_slice %10 {offsets = [0, 9], sizes = [8, 8], strides = [1, 1]} : vector<8x71xf32> to vector<8x8xf32>
    %c0_6 = arith.constant 0 : index
    %c1 = arith.constant 1 : index
    %12 = vector.load %arg10[%c0_6, %c1] : memref<8x100xf32, #tpu.memory_space<vmem>>, vector<8x8xf32>
    tpu.vector_store %arg10[%c0_6, %c1], %11 {strides = array<i32>} : memref<8x100xf32, #tpu.memory_space<vmem>>, vector<8x8xf32>,
    %13 = vector.extract_strided_slice %11 {offsets = [0, 1], sizes = [8, 1], strides = [1, 1]} : vector<8x8xf32> to vector<8x1xf32>
    %c0_7 = arith.constant 0 : index
    %c0_8 = arith.constant 0 : index
    %14 = vector.load %arg10[%c0_7, %c0_8] : memref<8x100xf32, #tpu.memory_space<vmem>>, vector<8x1xf32>
    tpu.vector_store %arg10[%c0_7, %c0_8], %13 {strides = array<i32>} : memref<8x100xf32, #tpu.memory_space<vmem>>, vector<8x1xf32>,
    %15 = vector.extract_strided_slice %11 {offsets = [0, 6], sizes = [8, 1], strides = [1, 1]} : vector<8x8xf32> to vector<8x1xf32>
    %c0_9 = arith.constant 0 : index
    %c9 = arith.constant 9 : index
    %16 = vector.load %arg10[%c0_9, %c9] : memref<8x100xf32, #tpu.memory_space<vmem>>, vector<8x1xf32>
    tpu.vector_store %arg10[%c0_9, %c9], %15 {strides = array<i32>} : memref<8x100xf32, #tpu.memory_space<vmem>>, vector<8x1xf32>,
    %17 = vector.extract_strided_slice %10 {offsets = [0, 0], sizes = [8, 8], strides = [1, 1]} : vector<8x71xf32> to vector<8x8xf32>
    %c0_10 = arith.constant 0 : index
    %c11 = arith.constant 11 : index
    %18 = vector.load %arg10[%c0_10, %c11] : memref<8x100xf32, #tpu.memory_space<vmem>>, vector<8x8xf32>
    tpu.vector_store %arg10[%c0_10, %c11], %17 {strides = array<i32>} : memref<8x100xf32, #tpu.memory_space<vmem>>, vector<8x8xf32>,
    %19 = vector.extract_strided_slice %17 {offsets = [0, 1], sizes = [8, 1], strides = [1, 1]} : vector<8x8xf32> to vector<8x1xf32>
    %c0_11 = arith.constant 0 : index
    %c10 = arith.constant 10 : index
    %20 = vector.load %arg10[%c0_11, %c10] : memref<8x100xf32, #tpu.memory_space<vmem>>, vector<8x1xf32>
    tpu.vector_store %arg10[%c0_11, %c10], %19 {strides = array<i32>} : memref<8x100xf32, #tpu.memory_space<vmem>>, vector<8x1xf32>,
    %21 = vector.extract_strided_slice %17 {offsets = [0, 6], sizes = [8, 1], strides = [1, 1]} : vector<8x8xf32> to vector<8x1xf32>
    %c0_12 = arith.constant 0 : index
    %c19 = arith.constant 19 : index
    %22 = vector.load %arg10[%c0_12, %c19] : memref<8x100xf32, #tpu.memory_space<vmem>>, vector<8x1xf32>
    tpu.vector_store %arg10[%c0_12, %c19], %21 {strides = array<i32>} : memref<8x100xf32, #tpu.memory_space<vmem>>, vector<8x1xf32>,
    %23 = vector.extract_strided_slice %10 {offsets = [0, 9], sizes = [8, 8], strides = [1, 1]} : vector<8x71xf32> to vector<8x8xf32>
    %c0_13 = arith.constant 0 : index
    %c21 = arith.constant 21 : index
    %24 = vector.load %arg10[%c0_13, %c21] : memref<8x100xf32, #tpu.memory_space<vmem>>, vector<8x8xf32>
    tpu.vector_store %arg10[%c0_13, %c21], %23 {strides = array<i32>} : memref<8x100xf32, #tpu.memory_space<vmem>>, vector<8x8xf32>,
    %25 = vector.extract_strided_slice %23 {offsets = [0, 1], sizes = [8, 1], strides = [1, 1]} : vector<8x8xf32> to vector<8x1xf32>
    %c0_14 = arith.constant 0 : index
    %c20 = arith.constant 20 : index
    %26 = vector.load %arg10[%c0_14, %c20] : memref<8x100xf32, #tpu.memory_space<vmem>>, vector<8x1xf32>
    tpu.vector_store %arg10[%c0_14, %c20], %25 {strides = array<i32>} : memref<8x100xf32, #tpu.memory_space<vmem>>, vector<8x1xf32>,
    %27 = vector.extract_strided_slice %23 {offsets = [0, 6], sizes = [8, 1], strides = [1, 1]} : vector<8x8xf32> to vector<8x1xf32>
    %c0_15 = arith.constant 0 : index
    %c29 = arith.constant 29 : index
    %28 = vector.load %arg10[%c0_15, %c29] : memref<8x100xf32, #tpu.memory_space<vmem>>, vector<8x1xf32>
    tpu.vector_store %arg10[%c0_15, %c29], %27 {strides = array<i32>} : memref<8x100xf32, #tpu.memory_space<vmem>>, vector<8x1xf32>,
    %29 = vector.extract_strided_slice %10 {offsets = [0, 18], sizes = [8, 8], strides = [1, 1]} : vector<8x71xf32> to vector<8x8xf32>
    %c0_16 = arith.constant 0 : index
    %c31 = arith.constant 31 : index
    %30 = vector.load %arg10[%c0_16, %c31] : memref<8x100xf32, #tpu.memory_space<vmem>>, vector<8x8xf32>
    tpu.vector_store %arg10[%c0_16, %c31], %29 {strides = array<i32>} : memref<8x100xf32, #tpu.memory_space<vmem>>, vector<8x8xf32>,
    %31 = vector.extract_strided_slice %29 {offsets = [0, 1], sizes = [8, 1], strides = [1, 1]} : vector<8x8xf32> to vector<8x1xf32>
    %c0_17 = arith.constant 0 : index
    %c30 = arith.constant 30 : index
    %32 = vector.load %arg10[%c0_17, %c30] : memref<8x100xf32, #tpu.memory_space<vmem>>, vector<8x1xf32>
    tpu.vector_store %arg10[%c0_17, %c30], %31 {strides = array<i32>} : memref<8x100xf32, #tpu.memory_space<vmem>>, vector<8x1xf32>,
    %33 = vector.extract_strided_slice %29 {offsets = [0, 6], sizes = [8, 1], strides = [1, 1]} : vector<8x8xf32> to vector<8x1xf32>
    %c0_18 = arith.constant 0 : index
    %c39 = arith.constant 39 : index
    %34 = vector.load %arg10[%c0_18, %c39] : memref<8x100xf32, #tpu.memory_space<vmem>>, vector<8x1xf32>
    tpu.vector_store %arg10[%c0_18, %c39], %33 {strides = array<i32>} : memref<8x100xf32, #tpu.memory_space<vmem>>, vector<8x1xf32>,
    %35 = vector.extract_strided_slice %10 {offsets = [0, 27], sizes = [8, 8], strides = [1, 1]} : vector<8x71xf32> to vector<8x8xf32>
    %c0_19 = arith.constant 0 : index
    %c41 = arith.constant 41 : index
    %36 = vector.load %arg10[%c0_19, %c41] : memref<8x100xf32, #tpu.memory_space<vmem>>, vector<8x8xf32>
    tpu.vector_store %arg10[%c0_19, %c41], %35 {strides = array<i32>} : memref<8x100xf32, #tpu.memory_space<vmem>>, vector<8x8xf32>,
    %37 = vector.extract_strided_slice %35 {offsets = [0, 1], sizes = [8, 1], strides = [1, 1]} : vector<8x8xf32> to vector<8x1xf32>
    %c0_20 = arith.constant 0 : index
    %c40 = arith.constant 40 : index
    %38 = vector.load %arg10[%c0_20, %c40] : memref<8x100xf32, #tpu.memory_space<vmem>>, vector<8x1xf32>
    tpu.vector_store %arg10[%c0_20, %c40], %37 {strides = array<i32>} : memref<8x100xf32, #tpu.memory_space<vmem>>, vector<8x1xf32>,
    %39 = vector.extract_strided_slice %35 {offsets = [0, 6], sizes = [8, 1], strides = [1, 1]} : vector<8x8xf32> to vector<8x1xf32>
    %c0_21 = arith.constant 0 : index
    %c49 = arith.constant 49 : index
    %40 = vector.load %arg10[%c0_21, %c49] : memref<8x100xf32, #tpu.memory_space<vmem>>, vector<8x1xf32>
    tpu.vector_store %arg10[%c0_21, %c49], %39 {strides = array<i32>} : memref<8x100xf32, #tpu.memory_space<vmem>>, vector<8x1xf32>,
    %41 = vector.extract_strided_slice %10 {offsets = [0, 36], sizes = [8, 8], strides = [1, 1]} : vector<8x71xf32> to vector<8x8xf32>
    %c0_22 = arith.constant 0 : index
    %c51 = arith.constant 51 : index
    %42 = vector.load %arg10[%c0_22, %c51] : memref<8x100xf32, #tpu.memory_space<vmem>>, vector<8x8xf32>
    tpu.vector_store %arg10[%c0_22, %c51], %41 {strides = array<i32>} : memref<8x100xf32, #tpu.memory_space<vmem>>, vector<8x8xf32>,
    %43 = vector.extract_strided_slice %41 {offsets = [0, 1], sizes = [8, 1], strides = [1, 1]} : vector<8x8xf32> to vector<8x1xf32>
    %c0_23 = arith.constant 0 : index
    %c50 = arith.constant 50 : index
    %44 = vector.load %arg10[%c0_23, %c50] : memref<8x100xf32, #tpu.memory_space<vmem>>, vector<8x1xf32>
    tpu.vector_store %arg10[%c0_23, %c50], %43 {strides = array<i32>} : memref<8x100xf32, #tpu.memory_space<vmem>>, vector<8x1xf32>,
    %45 = vector.extract_strided_slice %41 {offsets = [0, 6], sizes = [8, 1], strides = [1, 1]} : vector<8x8xf32> to vector<8x1xf32>
    %c0_24 = arith.constant 0 : index
    %c59 = arith.constant 59 : index
    %46 = vector.load %arg10[%c0_24, %c59] : memref<8x100xf32, #tpu.memory_space<vmem>>, vector<8x1xf32>
    tpu.vector_store %arg10[%c0_24, %c59], %45 {strides = array<i32>} : memref<8x100xf32, #tpu.memory_space<vmem>>, vector<8x1xf32>,
    %47 = vector.extract_strided_slice %10 {offsets = [0, 45], sizes = [8, 8], strides = [1, 1]} : vector<8x71xf32> to vector<8x8xf32>
    %c0_25 = arith.constant 0 : index
    %c61 = arith.constant 61 : index
    %48 = vector.load %arg10[%c0_25, %c61] : memref<8x100xf32, #tpu.memory_space<vmem>>, vector<8x8xf32>
    tpu.vector_store %arg10[%c0_25, %c61], %47 {strides = array<i32>} : memref<8x100xf32, #tpu.memory_space<vmem>>, vector<8x8xf32>,
    %49 = vector.extract_strided_slice %47 {offsets = [0, 1], sizes = [8, 1], strides = [1, 1]} : vector<8x8xf32> to vector<8x1xf32>
    %c0_26 = arith.constant 0 : index
    %c60 = arith.constant 60 : index
    %50 = vector.load %arg10[%c0_26, %c60] : memref<8x100xf32, #tpu.memory_space<vmem>>, vector<8x1xf32>
    tpu.vector_store %arg10[%c0_26, %c60], %49 {strides = array<i32>} : memref<8x100xf32, #tpu.memory_space<vmem>>, vector<8x1xf32>,
    %51 = vector.extract_strided_slice %47 {offsets = [0, 6], sizes = [8, 1], strides = [1, 1]} : vector<8x8xf32> to vector<8x1xf32>
    %c0_27 = arith.constant 0 : index
    %c69 = arith.constant 69 : index
    %52 = vector.load %arg10[%c0_27, %c69] : memref<8x100xf32, #tpu.memory_space<vmem>>, vector<8x1xf32>
    tpu.vector_store %arg10[%c0_27, %c69], %51 {strides = array<i32>} : memref<8x100xf32, #tpu.memory_space<vmem>>, vector<8x1xf32>,
    %53 = vector.extract_strided_slice %10 {offsets = [0, 54], sizes = [8, 8], strides = [1, 1]} : vector<8x71xf32> to vector<8x8xf32>
    %c0_28 = arith.constant 0 : index
    %c71 = arith.constant 71 : index
    %54 = vector.load %arg10[%c0_28, %c71] : memref<8x100xf32, #tpu.memory_space<vmem>>, vector<8x8xf32>
    tpu.vector_store %arg10[%c0_28, %c71], %53 {strides = array<i32>} : memref<8x100xf32, #tpu.memory_space<vmem>>, vector<8x8xf32>,
    %55 = vector.extract_strided_slice %53 {offsets = [0, 1], sizes = [8, 1], strides = [1, 1]} : vector<8x8xf32> to vector<8x1xf32>
    %c0_29 = arith.constant 0 : index
    %c70 = arith.constant 70 : index
    %56 = vector.load %arg10[%c0_29, %c70] : memref<8x100xf32, #tpu.memory_space<vmem>>, vector<8x1xf32>
    tpu.vector_store %arg10[%c0_29, %c70], %55 {strides = array<i32>} : memref<8x100xf32, #tpu.memory_space<vmem>>, vector<8x1xf32>,
    %57 = vector.extract_strided_slice %53 {offsets = [0, 6], sizes = [8, 1], strides = [1, 1]} : vector<8x8xf32> to vector<8x1xf32>
    %c0_30 = arith.constant 0 : index
    %c79 = arith.constant 79 : index
    %58 = vector.load %arg10[%c0_30, %c79] : memref<8x100xf32, #tpu.memory_space<vmem>>, vector<8x1xf32>
    tpu.vector_store %arg10[%c0_30, %c79], %57 {strides = array<i32>} : memref<8x100xf32, #tpu.memory_space<vmem>>, vector<8x1xf32>,
    %59 = vector.extract_strided_slice %10 {offsets = [0, 63], sizes = [8, 8], strides = [1, 1]} : vector<8x71xf32> to vector<8x8xf32>
    %c0_31 = arith.constant 0 : index
    %c81 = arith.constant 81 : index
    %60 = vector.load %arg10[%c0_31, %c81] : memref<8x100xf32, #tpu.memory_space<vmem>>, vector<8x8xf32>
    tpu.vector_store %arg10[%c0_31, %c81], %59 {strides = array<i32>} : memref<8x100xf32, #tpu.memory_space<vmem>>, vector<8x8xf32>,
    %61 = vector.extract_strided_slice %59 {offsets = [0, 1], sizes = [8, 1], strides = [1, 1]} : vector<8x8xf32> to vector<8x1xf32>
    %c0_32 = arith.constant 0 : index
    %c80 = arith.constant 80 : index
    %62 = vector.load %arg10[%c0_32, %c80] : memref<8x100xf32, #tpu.memory_space<vmem>>, vector<8x1xf32>
    tpu.vector_store %arg10[%c0_32, %c80], %61 {strides = array<i32>} : memref<8x100xf32, #tpu.memory_space<vmem>>, vector<8x1xf32>,
    %63 = vector.extract_strided_slice %59 {offsets = [0, 6], sizes = [8, 1], strides = [1, 1]} : vector<8x8xf32> to vector<8x1xf32>
    %c0_33 = arith.constant 0 : index
    %c89 = arith.constant 89 : index
    %64 = vector.load %arg10[%c0_33, %c89] : memref<8x100xf32, #tpu.memory_space<vmem>>, vector<8x1xf32>
    tpu.vector_store %arg10[%c0_33, %c89], %63 {strides = array<i32>} : memref<8x100xf32, #tpu.memory_space<vmem>>, vector<8x1xf32>,
    %65 = vector.extract_strided_slice %10 {offsets = [0, 54], sizes = [8, 8], strides = [1, 1]} : vector<8x71xf32> to vector<8x8xf32>
    %c0_34 = arith.constant 0 : index
    %c91 = arith.constant 91 : index
    %66 = vector.load %arg10[%c0_34, %c91] : memref<8x100xf32, #tpu.memory_space<vmem>>, vector<8x8xf32>
    tpu.vector_store %arg10[%c0_34, %c91], %65 {strides = array<i32>} : memref<8x100xf32, #tpu.memory_space<vmem>>, vector<8x8xf32>,
    %67 = vector.extract_strided_slice %65 {offsets = [0, 1], sizes = [8, 1], strides = [1, 1]} : vector<8x8xf32> to vector<8x1xf32>
    %c0_35 = arith.constant 0 : index
    %c90 = arith.constant 90 : index
    %68 = vector.load %arg10[%c0_35, %c90] : memref<8x100xf32, #tpu.memory_space<vmem>>, vector<8x1xf32>
    tpu.vector_store %arg10[%c0_35, %c90], %67 {strides = array<i32>} : memref<8x100xf32, #tpu.memory_space<vmem>>, vector<8x1xf32>,
    %69 = vector.extract_strided_slice %65 {offsets = [0, 6], sizes = [8, 1], strides = [1, 1]} : vector<8x8xf32> to vector<8x1xf32>
    %c0_36 = arith.constant 0 : index
    %c99 = arith.constant 99 : index
    %70 = vector.load %arg10[%c0_36, %c99] : memref<8x100xf32, #tpu.memory_space<vmem>>, vector<8x1xf32>
    tpu.vector_store %arg10[%c0_36, %c99], %69 {strides = array<i32>} : memref<8x100xf32, #tpu.memory_space<vmem>>, vector<8x1xf32>,
    %cst_37 = arith.constant 0.000000e+00 : f32
    %71 = vector.broadcast %cst_37 : f32 to vector<8x78xf32>
    %c0_38 = arith.constant 0 : index
    %c0_39 = arith.constant 0 : index
    %c0_40 = arith.constant 0 : index
    %72 = vector.load %arg4[%c0_38, %c0_39, %c0_40] : memref<9x8x8xf32, #tpu.memory_space<vmem>>, vector<1x8x8xf32>
    %73 = vector.shape_cast %72 : vector<1x8x8xf32> to vector<8x8xf32>
    %c0_41 = arith.constant 0 : index
    %c0_42 = arith.constant 0 : index
    %74 = vector.load %arg10[%c0_41, %c0_42] : memref<8x100xf32, #tpu.memory_space<vmem>>, vector<8x78xf32>
    %cst_43 = arith.constant dense<0.000000e+00> : vector<8x78xf32>
    %75 = tpu.matmul %73, %74, %cst_43 {dimension_numbers = #tpu.dot_dimension_numbers<[1], [0], [0], [1], [0, 0, 1, 1], [], []>} : vector<8x8xf32>, vector<8x78xf32>, vector<8x78xf32> -> vector<8x78xf32>
    %76 = arith.addf %71, %75 : vector<8x78xf32>
    %c1_44 = arith.constant 1 : index
    %c0_45 = arith.constant 0 : index
    %c0_46 = arith.constant 0 : index
    %77 = vector.load %arg4[%c1_44, %c0_45, %c0_46] : memref<9x8x8xf32, #tpu.memory_space<vmem>>, vector<1x8x8xf32>
    %78 = vector.shape_cast %77 : vector<1x8x8xf32> to vector<8x8xf32>
    %c0_47 = arith.constant 0 : index
    %c1_48 = arith.constant 1 : index
    %79 = vector.load %arg10[%c0_47, %c1_48] : memref<8x100xf32, #tpu.memory_space<vmem>>, vector<8x78xf32>
    %cst_49 = arith.constant dense<0.000000e+00> : vector<8x78xf32>
    %80 = tpu.matmul %78, %79, %cst_49 {dimension_numbers = #tpu.dot_dimension_numbers<[1], [0], [0], [1], [0, 0, 1, 1], [], []>} : vector<8x8xf32>, vector<8x78xf32>, vector<8x78xf32> -> vector<8x78xf32>
    %81 = arith.addf %76, %80 : vector<8x78xf32>
    %c2 = arith.constant 2 : index
    %c0_50 = arith.constant 0 : index
    %c0_51 = arith.constant 0 : index
    %82 = vector.load %arg4[%c2, %c0_50, %c0_51] : memref<9x8x8xf32, #tpu.memory_space<vmem>>, vector<1x8x8xf32>
    %83 = vector.shape_cast %82 : vector<1x8x8xf32> to vector<8x8xf32>
    %c0_52 = arith.constant 0 : index
    %c2_53 = arith.constant 2 : index
    %84 = vector.load %arg10[%c0_52, %c2_53] : memref<8x100xf32, #tpu.memory_space<vmem>>, vector<8x78xf32>
    %cst_54 = arith.constant dense<0.000000e+00> : vector<8x78xf32>
    %85 = tpu.matmul %83, %84, %cst_54 {dimension_numbers = #tpu.dot_dimension_numbers<[1], [0], [0], [1], [0, 0, 1, 1], [], []>} : vector<8x8xf32>, vector<8x78xf32>, vector<8x78xf32> -> vector<8x78xf32>
    %86 = arith.addf %81, %85 : vector<8x78xf32>
    %c3 = arith.constant 3 : index
    %c0_55 = arith.constant 0 : index
    %c0_56 = arith.constant 0 : index
    %87 = vector.load %arg4[%c3, %c0_55, %c0_56] : memref<9x8x8xf32, #tpu.memory_space<vmem>>, vector<1x8x8xf32>
    %88 = vector.shape_cast %87 : vector<1x8x8xf32> to vector<8x8xf32>
    %c0_57 = arith.constant 0 : index
    %c10_58 = arith.constant 10 : index
    %89 = vector.load %arg10[%c0_57, %c10_58] : memref<8x100xf32, #tpu.memory_space<vmem>>, vector<8x78xf32>
    %cst_59 = arith.constant dense<0.000000e+00> : vector<8x78xf32>
    %90 = tpu.matmul %88, %89, %cst_59 {dimension_numbers = #tpu.dot_dimension_numbers<[1], [0], [0], [1], [0, 0, 1, 1], [], []>} : vector<8x8xf32>, vector<8x78xf32>, vector<8x78xf32> -> vector<8x78xf32>
    %91 = arith.addf %86, %90 : vector<8x78xf32>
    %c4 = arith.constant 4 : index
    %c0_60 = arith.constant 0 : index
    %c0_61 = arith.constant 0 : index
    %92 = vector.load %arg4[%c4, %c0_60, %c0_61] : memref<9x8x8xf32, #tpu.memory_space<vmem>>, vector<1x8x8xf32>
    %93 = vector.shape_cast %92 : vector<1x8x8xf32> to vector<8x8xf32>
    %c0_62 = arith.constant 0 : index
    %c11_63 = arith.constant 11 : index
    %94 = vector.load %arg10[%c0_62, %c11_63] : memref<8x100xf32, #tpu.memory_space<vmem>>, vector<8x78xf32>
    %cst_64 = arith.constant dense<0.000000e+00> : vector<8x78xf32>
    %95 = tpu.matmul %93, %94, %cst_64 {dimension_numbers = #tpu.dot_dimension_numbers<[1], [0], [0], [1], [0, 0, 1, 1], [], []>} : vector<8x8xf32>, vector<8x78xf32>, vector<8x78xf32> -> vector<8x78xf32>
    %96 = arith.addf %91, %95 : vector<8x78xf32>
    %c5 = arith.constant 5 : index
    %c0_65 = arith.constant 0 : index
    %c0_66 = arith.constant 0 : index
    %97 = vector.load %arg4[%c5, %c0_65, %c0_66] : memref<9x8x8xf32, #tpu.memory_space<vmem>>, vector<1x8x8xf32>
    %98 = vector.shape_cast %97 : vector<1x8x8xf32> to vector<8x8xf32>
    %c0_67 = arith.constant 0 : index
    %c12 = arith.constant 12 : index
    %99 = vector.load %arg10[%c0_67, %c12] : memref<8x100xf32, #tpu.memory_space<vmem>>, vector<8x78xf32>
    %cst_68 = arith.constant dense<0.000000e+00> : vector<8x78xf32>
    %100 = tpu.matmul %98, %99, %cst_68 {dimension_numbers = #tpu.dot_dimension_numbers<[1], [0], [0], [1], [0, 0, 1, 1], [], []>} : vector<8x8xf32>, vector<8x78xf32>, vector<8x78xf32> -> vector<8x78xf32>
    %101 = arith.addf %96, %100 : vector<8x78xf32>
    %c6 = arith.constant 6 : index
    %c0_69 = arith.constant 0 : index
    %c0_70 = arith.constant 0 : index
    %102 = vector.load %arg4[%c6, %c0_69, %c0_70] : memref<9x8x8xf32, #tpu.memory_space<vmem>>, vector<1x8x8xf32>
    %103 = vector.shape_cast %102 : vector<1x8x8xf32> to vector<8x8xf32>
    %c0_71 = arith.constant 0 : index
    %c20_72 = arith.constant 20 : index
    %104 = vector.load %arg10[%c0_71, %c20_72] : memref<8x100xf32, #tpu.memory_space<vmem>>, vector<8x78xf32>
    %cst_73 = arith.constant dense<0.000000e+00> : vector<8x78xf32>
    %105 = tpu.matmul %103, %104, %cst_73 {dimension_numbers = #tpu.dot_dimension_numbers<[1], [0], [0], [1], [0, 0, 1, 1], [], []>} : vector<8x8xf32>, vector<8x78xf32>, vector<8x78xf32> -> vector<8x78xf32>
    %106 = arith.addf %101, %105 : vector<8x78xf32>
    %c7 = arith.constant 7 : index
    %c0_74 = arith.constant 0 : index
    %c0_75 = arith.constant 0 : index
    %107 = vector.load %arg4[%c7, %c0_74, %c0_75] : memref<9x8x8xf32, #tpu.memory_space<vmem>>, vector<1x8x8xf32>
    %108 = vector.shape_cast %107 : vector<1x8x8xf32> to vector<8x8xf32>
    %c0_76 = arith.constant 0 : index
    %c21_77 = arith.constant 21 : index
    %109 = vector.load %arg10[%c0_76, %c21_77] : memref<8x100xf32, #tpu.memory_space<vmem>>, vector<8x78xf32>
    %cst_78 = arith.constant dense<0.000000e+00> : vector<8x78xf32>
    %110 = tpu.matmul %108, %109, %cst_78 {dimension_numbers = #tpu.dot_dimension_numbers<[1], [0], [0], [1], [0, 0, 1, 1], [], []>} : vector<8x8xf32>, vector<8x78xf32>, vector<8x78xf32> -> vector<8x78xf32>
    %111 = arith.addf %106, %110 : vector<8x78xf32>
    %c8 = arith.constant 8 : index
    %c0_79 = arith.constant 0 : index
    %c0_80 = arith.constant 0 : index
    %112 = vector.load %arg4[%c8, %c0_79, %c0_80] : memref<9x8x8xf32, #tpu.memory_space<vmem>>, vector<1x8x8xf32>
    %113 = vector.shape_cast %112 : vector<1x8x8xf32> to vector<8x8xf32>
    %c0_81 = arith.constant 0 : index
    %c22 = arith.constant 22 : index
    %114 = vector.load %arg10[%c0_81, %c22] : memref<8x100xf32, #tpu.memory_space<vmem>>, vector<8x78xf32>
    %cst_82 = arith.constant dense<0.000000e+00> : vector<8x78xf32>
    %115 = tpu.matmul %113, %114, %cst_82 {dimension_numbers = #tpu.dot_dimension_numbers<[1], [0], [0], [1], [0, 0, 1, 1], [], []>} : vector<8x8xf32>, vector<8x78xf32>, vector<8x78xf32> -> vector<8x78xf32>
    %116 = arith.addf %111, %115 : vector<8x78xf32>
    %c0_83 = arith.constant 0 : index
    %c0_84 = arith.constant 0 : index
    %117 = vector.load %arg5[%c0_83, %c0_84] : memref<8x1xf32, #tpu.memory_space<vmem>>, vector<8x1xf32>
    %118 = vector.broadcast %117 : vector<8x1xf32> to vector<8x78xf32>
    %119 = arith.addf %116, %118 : vector<8x78xf32>
    %c0_85 = arith.constant 0 : index
    %c0_86 = arith.constant 0 : index
    %c0_87 = arith.constant 0 : index
    %120 = vector.load %arg7[%c0_85, %c0_86, %c0_87] : memref<1x8x80xf32, #tpu.memory_space<vmem>>, vector<1x8x78xf32>
    %121 = vector.shape_cast %120 : vector<1x8x78xf32> to vector<8x78xf32>
    %122 = vector.shape_cast %119 : vector<8x78xf32> to vector<1x8x78xf32>
    tpu.vector_store %arg7[%c0_85, %c0_86, %c0_87], %122 {strides = array<i32>} : memref<1x8x80xf32, #tpu.memory_space<vmem>>, vector<1x8x78xf32>,
    %cst_88 = arith.constant 0.000000e+00 : f32
    %123 = vector.broadcast %cst_88 : f32 to vector<8x2xf32>
    %c0_89 = arith.constant 0 : index
    %c0_90 = arith.constant 0 : index
    %c78 = arith.constant 78 : index
    %124 = vector.load %arg7[%c0_89, %c0_90, %c78] : memref<1x8x80xf32, #tpu.memory_space<vmem>>, vector<1x8x2xf32>
    %125 = vector.shape_cast %124 : vector<1x8x2xf32> to vector<8x2xf32>
    %126 = vector.shape_cast %123 : vector<8x2xf32> to vector<1x8x2xf32>
    tpu.vector_store %arg7[%c0_89, %c0_90, %c78], %126 {strides = array<i32>} : memref<1x8x80xf32, #tpu.memory_space<vmem>>, vector<1x8x2xf32>,
    %c0_91 = arith.constant 0 : index
    %c0_92 = arith.constant 0 : index
    %127 = vector.load %arg6[%c0_91, %c0_92] : memref<1x78xf32, #tpu.memory_space<vmem>>, vector<1x78xf32>
    %128 = vector.broadcast %127 : vector<1x78xf32> to vector<8x78xf32>
    %129 = arith.mulf %119, %128 : vector<8x78xf32>
    %cst_93 = arith.constant dense<0.000000e+00> : vector<8xf32>
    %130 = vector.multi_reduction <add>, %129, %cst_93 [1] : vector<8x78xf32> to vector<8xf32>
    %131 = vector.shape_cast %130 : vector<8xf32> to vector<8x1xf32>
    %c0_94 = arith.constant 0 : index
    %c0_95 = arith.constant 0 : index
    %c0_96 = arith.constant 0 : index
    %132 = vector.load %arg8[%c0_94, %c0_95, %c0_96] : memref<1x8x1xf32, #tpu.memory_space<vmem>>, vector<1x8x1xf32>
    %133 = vector.shape_cast %132 : vector<1x8x1xf32> to vector<8x1xf32>
    %134 = vector.shape_cast %131 : vector<8x1xf32> to vector<1x8x1xf32>
    tpu.vector_store %arg8[%c0_94, %c0_95, %c0_96], %134 {strides = array<i32>} : memref<1x8x1xf32, #tpu.memory_space<vmem>>, vector<1x8x1xf32>,
    %135 = arith.mulf %119, %119 : vector<8x78xf32>
    %136 = vector.broadcast %127 : vector<1x78xf32> to vector<8x78xf32>
    %137 = arith.mulf %135, %136 : vector<8x78xf32>
    %cst_97 = arith.constant dense<0.000000e+00> : vector<8xf32>
    %138 = vector.multi_reduction <add>, %137, %cst_97 [1] : vector<8x78xf32> to vector<8xf32>
    %139 = vector.shape_cast %138 : vector<8xf32> to vector<8x1xf32>
    %c0_98 = arith.constant 0 : index
    %c0_99 = arith.constant 0 : index
    %c0_100 = arith.constant 0 : index
    %140 = vector.load %arg9[%c0_98, %c0_99, %c0_100] : memref<1x8x1xf32, #tpu.memory_space<vmem>>, vector<1x8x1xf32>
    %141 = vector.shape_cast %140 : vector<1x8x1xf32> to vector<8x1xf32>
    %142 = vector.shape_cast %139 : vector<8x1xf32> to vector<1x8x1xf32>
    tpu.vector_store %arg9[%c0_98, %c0_99, %c0_100], %142 {strides = array<i32>} : memref<1x8x1xf32, #tpu.memory_space<vmem>>, vector<1x8x1xf32>,
    return
  }
  func.func @transform_0(%arg0: i32) -> (i32, i32, i32) {
    %c0_i32 = arith.constant 0 : i32
    %c0_i32_0 = arith.constant 0 : i32
    %c0_i32_1 = arith.constant 0 : i32
    return %arg0, %c0_i32, %c0_i32_0 : i32, i32, i32
  }
  func.func @transform_1(%arg0: i32) -> (i32, i32) {
    %c0_i32 = arith.constant 0 : i32
    %c0_i32_0 = arith.constant 0 : i32
    %c0_i32_1 = arith.constant 0 : i32
    return %c0_i32, %c0_i32_0 : i32, i32
  }
  func.func @transform_2(%arg0: i32) -> (i32, i32) {
    %c0_i32 = arith.constant 0 : i32
    %c0_i32_0 = arith.constant 0 : i32
    %c0_i32_1 = arith.constant 0 : i32
    return %c0_i32, %c0_i32_0 : i32, i32
  }
  func.func @transform_3(%arg0: i32) -> (i32, i32, i32) {
    %c0_i32 = arith.constant 0 : i32
    %c0_i32_0 = arith.constant 0 : i32
    %c0_i32_1 = arith.constant 0 : i32
    %c0_i32_2 = arith.constant 0 : i32
    return %c0_i32, %c0_i32_0, %c0_i32_1 : i32, i32, i32
  }
  func.func @transform_4(%arg0: i32) -> (i32, i32) {
    %c0_i32 = arith.constant 0 : i32
    %c0_i32_0 = arith.constant 0 : i32
    %c0_i32_1 = arith.constant 0 : i32
    return %c0_i32, %c0_i32_0 : i32, i32
  }
  func.func @transform_5(%arg0: i32) -> (i32, i32) {
    %c0_i32 = arith.constant 0 : i32
    %c0_i32_0 = arith.constant 0 : i32
    %c0_i32_1 = arith.constant 0 : i32
    return %c0_i32, %c0_i32_0 : i32, i32
  }
  func.func @transform_6(%arg0: i32) -> (i32, i32, i32) {
    %c0_i32 = arith.constant 0 : i32
    %c0_i32_0 = arith.constant 0 : i32
    %c0_i32_1 = arith.constant 0 : i32
    return %arg0, %c0_i32, %c0_i32_0 : i32, i32, i32
  }
  func.func @transform_7(%arg0: i32) -> (i32, i32, i32) {
    %c0_i32 = arith.constant 0 : i32
    %c0_i32_0 = arith.constant 0 : i32
    %c0_i32_1 = arith.constant 0 : i32
    return %arg0, %c0_i32, %c0_i32_0 : i32, i32, i32
  }
  func.func @transform_8(%arg0: i32) -> (i32, i32, i32) {
    %c0_i32 = arith.constant 0 : i32
    %c0_i32_0 = arith.constant 0 : i32
    %c0_i32_1 = arith.constant 0 : i32
    return %arg0, %c0_i32, %c0_i32_0 : i32, i32, i32
  }
}

module attributes {stable_mosaic.version = 11 : i64} {
  func.func @bn_act_upsample_kernel(%arg0: i32, %arg1: memref<1x8x8x10xf32, #tpu.memory_space<vmem>>, %arg2: memref<8x1x1xf32, #tpu.memory_space<vmem>>, %arg3: memref<8x1x1xf32, #tpu.memory_space<vmem>>, %arg4: memref<16x8xf32, #tpu.memory_space<vmem>>, %arg5: memref<8x16xf32, #tpu.memory_space<vmem>>, %arg6: memref<1x8x16x16xf32, #tpu.memory_space<vmem>>) attributes {dimension_semantics = [#tpu.dimension_semantics<parallel>], iteration_bounds = array<i64: 2>, scalar_prefetch = 0 : i64, scratch_operands = 0 : i64, tpu.core_type = #tpu.core_type<tc>, window_params = [{transform_indices = @transform_0, window_bounds = array<i64: 1, 8, 8, 10>}, {pipeline_mode = #tpu.pipeline_mode<synchronous>, transform_indices = @transform_1, window_bounds = array<i64: 8, 1, 1>}, {pipeline_mode = #tpu.pipeline_mode<synchronous>, transform_indices = @transform_2, window_bounds = array<i64: 8, 1, 1>}, {pipeline_mode = #tpu.pipeline_mode<synchronous>, transform_indices = @transform_3, window_bounds = array<i64: 16, 8>}, {pipeline_mode = #tpu.pipeline_mode<synchronous>, transform_indices = @transform_4, window_bounds = array<i64: 8, 16>}, {transform_indices = @transform_5, window_bounds = array<i64: 1, 8, 16, 16>}]} {
    %c0 = arith.constant 0 : index
    %c0_0 = arith.constant 0 : index
    %c0_1 = arith.constant 0 : index
    %c0_2 = arith.constant 0 : index
    %0 = vector.load %arg1[%c0, %c0_0, %c0_1, %c0_2] : memref<1x8x8x10xf32, #tpu.memory_space<vmem>>, vector<1x8x8x10xf32>
    %1 = vector.shape_cast %0 : vector<1x8x8x10xf32> to vector<8x8x10xf32>
    %c0_3 = arith.constant 0 : index
    %c0_4 = arith.constant 0 : index
    %c0_5 = arith.constant 0 : index
    %2 = vector.load %arg2[%c0_3, %c0_4, %c0_5] : memref<8x1x1xf32, #tpu.memory_space<vmem>>, vector<8x1x1xf32>
    %3 = vector.broadcast %2 : vector<8x1x1xf32> to vector<8x8x10xf32>
    %4 = arith.mulf %1, %3 : vector<8x8x10xf32>
    %c0_6 = arith.constant 0 : index
    %c0_7 = arith.constant 0 : index
    %c0_8 = arith.constant 0 : index
    %5 = vector.load %arg3[%c0_6, %c0_7, %c0_8] : memref<8x1x1xf32, #tpu.memory_space<vmem>>, vector<8x1x1xf32>
    %6 = vector.broadcast %5 : vector<8x1x1xf32> to vector<8x8x10xf32>
    %7 = arith.addf %4, %6 : vector<8x8x10xf32>
    %cst = arith.constant 2.000000e-01 : f32
    %8 = vector.broadcast %cst : f32 to vector<8x8x10xf32>
    %9 = arith.mulf %8, %7 : vector<8x8x10xf32>
    %10 = arith.maximumf %7, %9 : vector<8x8x10xf32>
    %11 = vector.extract_strided_slice %10 {offsets = [0, 0, 0], sizes = [1, 8, 8], strides = [1, 1, 1]} : vector<8x8x10xf32> to vector<1x8x8xf32>
    %12 = vector.shape_cast %11 : vector<1x8x8xf32> to vector<8x8xf32>
    %c0_9 = arith.constant 0 : index
    %c0_10 = arith.constant 0 : index
    %13 = vector.load %arg4[%c0_9, %c0_10] : memref<16x8xf32, #tpu.memory_space<vmem>>, vector<16x8xf32>
    %cst_11 = arith.constant dense<0.000000e+00> : vector<16x8xf32>
    %14 = tpu.matmul %13, %12, %cst_11 {dimension_numbers = #tpu.dot_dimension_numbers<[1], [0], [0], [1], [0, 0, 1, 1], [], []>} : vector<16x8xf32>, vector<8x8xf32>, vector<16x8xf32> -> vector<16x8xf32>
    %c0_12 = arith.constant 0 : index
    %c0_13 = arith.constant 0 : index
    %15 = vector.load %arg5[%c0_12, %c0_13] : memref<8x16xf32, #tpu.memory_space<vmem>>, vector<8x16xf32>
    %cst_14 = arith.constant dense<0.000000e+00> : vector<16x16xf32>
    %16 = tpu.matmul %14, %15, %cst_14 {dimension_numbers = #tpu.dot_dimension_numbers<[1], [0], [0], [1], [0, 0, 1, 1], [], []>} : vector<16x8xf32>, vector<8x16xf32>, vector<16x16xf32> -> vector<16x16xf32>
    %c0_15 = arith.constant 0 : index
    %c0_16 = arith.constant 0 : index
    %c0_17 = arith.constant 0 : index
    %c0_18 = arith.constant 0 : index
    %17 = vector.load %arg6[%c0_15, %c0_16, %c0_17, %c0_18] : memref<1x8x16x16xf32, #tpu.memory_space<vmem>>, vector<1x1x16x16xf32>
    %18 = vector.shape_cast %17 : vector<1x1x16x16xf32> to vector<16x16xf32>
    %19 = vector.shape_cast %16 : vector<16x16xf32> to vector<1x1x16x16xf32>
    tpu.vector_store %arg6[%c0_15, %c0_16, %c0_17, %c0_18], %19 {strides = array<i32>} : memref<1x8x16x16xf32, #tpu.memory_space<vmem>>, vector<1x1x16x16xf32>,
    %20 = vector.extract_strided_slice %10 {offsets = [1, 0, 0], sizes = [1, 8, 8], strides = [1, 1, 1]} : vector<8x8x10xf32> to vector<1x8x8xf32>
    %21 = vector.shape_cast %20 : vector<1x8x8xf32> to vector<8x8xf32>
    %c0_19 = arith.constant 0 : index
    %c0_20 = arith.constant 0 : index
    %22 = vector.load %arg4[%c0_19, %c0_20] : memref<16x8xf32, #tpu.memory_space<vmem>>, vector<16x8xf32>
    %cst_21 = arith.constant dense<0.000000e+00> : vector<16x8xf32>
    %23 = tpu.matmul %22, %21, %cst_21 {dimension_numbers = #tpu.dot_dimension_numbers<[1], [0], [0], [1], [0, 0, 1, 1], [], []>} : vector<16x8xf32>, vector<8x8xf32>, vector<16x8xf32> -> vector<16x8xf32>
    %c0_22 = arith.constant 0 : index
    %c0_23 = arith.constant 0 : index
    %24 = vector.load %arg5[%c0_22, %c0_23] : memref<8x16xf32, #tpu.memory_space<vmem>>, vector<8x16xf32>
    %cst_24 = arith.constant dense<0.000000e+00> : vector<16x16xf32>
    %25 = tpu.matmul %23, %24, %cst_24 {dimension_numbers = #tpu.dot_dimension_numbers<[1], [0], [0], [1], [0, 0, 1, 1], [], []>} : vector<16x8xf32>, vector<8x16xf32>, vector<16x16xf32> -> vector<16x16xf32>
    %c0_25 = arith.constant 0 : index
    %c1 = arith.constant 1 : index
    %c0_26 = arith.constant 0 : index
    %c0_27 = arith.constant 0 : index
    %26 = vector.load %arg6[%c0_25, %c1, %c0_26, %c0_27] : memref<1x8x16x16xf32, #tpu.memory_space<vmem>>, vector<1x1x16x16xf32>
    %27 = vector.shape_cast %26 : vector<1x1x16x16xf32> to vector<16x16xf32>
    %28 = vector.shape_cast %25 : vector<16x16xf32> to vector<1x1x16x16xf32>
    tpu.vector_store %arg6[%c0_25, %c1, %c0_26, %c0_27], %28 {strides = array<i32>} : memref<1x8x16x16xf32, #tpu.memory_space<vmem>>, vector<1x1x16x16xf32>,
    %29 = vector.extract_strided_slice %10 {offsets = [2, 0, 0], sizes = [1, 8, 8], strides = [1, 1, 1]} : vector<8x8x10xf32> to vector<1x8x8xf32>
    %30 = vector.shape_cast %29 : vector<1x8x8xf32> to vector<8x8xf32>
    %c0_28 = arith.constant 0 : index
    %c0_29 = arith.constant 0 : index
    %31 = vector.load %arg4[%c0_28, %c0_29] : memref<16x8xf32, #tpu.memory_space<vmem>>, vector<16x8xf32>
    %cst_30 = arith.constant dense<0.000000e+00> : vector<16x8xf32>
    %32 = tpu.matmul %31, %30, %cst_30 {dimension_numbers = #tpu.dot_dimension_numbers<[1], [0], [0], [1], [0, 0, 1, 1], [], []>} : vector<16x8xf32>, vector<8x8xf32>, vector<16x8xf32> -> vector<16x8xf32>
    %c0_31 = arith.constant 0 : index
    %c0_32 = arith.constant 0 : index
    %33 = vector.load %arg5[%c0_31, %c0_32] : memref<8x16xf32, #tpu.memory_space<vmem>>, vector<8x16xf32>
    %cst_33 = arith.constant dense<0.000000e+00> : vector<16x16xf32>
    %34 = tpu.matmul %32, %33, %cst_33 {dimension_numbers = #tpu.dot_dimension_numbers<[1], [0], [0], [1], [0, 0, 1, 1], [], []>} : vector<16x8xf32>, vector<8x16xf32>, vector<16x16xf32> -> vector<16x16xf32>
    %c0_34 = arith.constant 0 : index
    %c2 = arith.constant 2 : index
    %c0_35 = arith.constant 0 : index
    %c0_36 = arith.constant 0 : index
    %35 = vector.load %arg6[%c0_34, %c2, %c0_35, %c0_36] : memref<1x8x16x16xf32, #tpu.memory_space<vmem>>, vector<1x1x16x16xf32>
    %36 = vector.shape_cast %35 : vector<1x1x16x16xf32> to vector<16x16xf32>
    %37 = vector.shape_cast %34 : vector<16x16xf32> to vector<1x1x16x16xf32>
    tpu.vector_store %arg6[%c0_34, %c2, %c0_35, %c0_36], %37 {strides = array<i32>} : memref<1x8x16x16xf32, #tpu.memory_space<vmem>>, vector<1x1x16x16xf32>,
    %38 = vector.extract_strided_slice %10 {offsets = [3, 0, 0], sizes = [1, 8, 8], strides = [1, 1, 1]} : vector<8x8x10xf32> to vector<1x8x8xf32>
    %39 = vector.shape_cast %38 : vector<1x8x8xf32> to vector<8x8xf32>
    %c0_37 = arith.constant 0 : index
    %c0_38 = arith.constant 0 : index
    %40 = vector.load %arg4[%c0_37, %c0_38] : memref<16x8xf32, #tpu.memory_space<vmem>>, vector<16x8xf32>
    %cst_39 = arith.constant dense<0.000000e+00> : vector<16x8xf32>
    %41 = tpu.matmul %40, %39, %cst_39 {dimension_numbers = #tpu.dot_dimension_numbers<[1], [0], [0], [1], [0, 0, 1, 1], [], []>} : vector<16x8xf32>, vector<8x8xf32>, vector<16x8xf32> -> vector<16x8xf32>
    %c0_40 = arith.constant 0 : index
    %c0_41 = arith.constant 0 : index
    %42 = vector.load %arg5[%c0_40, %c0_41] : memref<8x16xf32, #tpu.memory_space<vmem>>, vector<8x16xf32>
    %cst_42 = arith.constant dense<0.000000e+00> : vector<16x16xf32>
    %43 = tpu.matmul %41, %42, %cst_42 {dimension_numbers = #tpu.dot_dimension_numbers<[1], [0], [0], [1], [0, 0, 1, 1], [], []>} : vector<16x8xf32>, vector<8x16xf32>, vector<16x16xf32> -> vector<16x16xf32>
    %c0_43 = arith.constant 0 : index
    %c3 = arith.constant 3 : index
    %c0_44 = arith.constant 0 : index
    %c0_45 = arith.constant 0 : index
    %44 = vector.load %arg6[%c0_43, %c3, %c0_44, %c0_45] : memref<1x8x16x16xf32, #tpu.memory_space<vmem>>, vector<1x1x16x16xf32>
    %45 = vector.shape_cast %44 : vector<1x1x16x16xf32> to vector<16x16xf32>
    %46 = vector.shape_cast %43 : vector<16x16xf32> to vector<1x1x16x16xf32>
    tpu.vector_store %arg6[%c0_43, %c3, %c0_44, %c0_45], %46 {strides = array<i32>} : memref<1x8x16x16xf32, #tpu.memory_space<vmem>>, vector<1x1x16x16xf32>,
    %47 = vector.extract_strided_slice %10 {offsets = [4, 0, 0], sizes = [1, 8, 8], strides = [1, 1, 1]} : vector<8x8x10xf32> to vector<1x8x8xf32>
    %48 = vector.shape_cast %47 : vector<1x8x8xf32> to vector<8x8xf32>
    %c0_46 = arith.constant 0 : index
    %c0_47 = arith.constant 0 : index
    %49 = vector.load %arg4[%c0_46, %c0_47] : memref<16x8xf32, #tpu.memory_space<vmem>>, vector<16x8xf32>
    %cst_48 = arith.constant dense<0.000000e+00> : vector<16x8xf32>
    %50 = tpu.matmul %49, %48, %cst_48 {dimension_numbers = #tpu.dot_dimension_numbers<[1], [0], [0], [1], [0, 0, 1, 1], [], []>} : vector<16x8xf32>, vector<8x8xf32>, vector<16x8xf32> -> vector<16x8xf32>
    %c0_49 = arith.constant 0 : index
    %c0_50 = arith.constant 0 : index
    %51 = vector.load %arg5[%c0_49, %c0_50] : memref<8x16xf32, #tpu.memory_space<vmem>>, vector<8x16xf32>
    %cst_51 = arith.constant dense<0.000000e+00> : vector<16x16xf32>
    %52 = tpu.matmul %50, %51, %cst_51 {dimension_numbers = #tpu.dot_dimension_numbers<[1], [0], [0], [1], [0, 0, 1, 1], [], []>} : vector<16x8xf32>, vector<8x16xf32>, vector<16x16xf32> -> vector<16x16xf32>
    %c0_52 = arith.constant 0 : index
    %c4 = arith.constant 4 : index
    %c0_53 = arith.constant 0 : index
    %c0_54 = arith.constant 0 : index
    %53 = vector.load %arg6[%c0_52, %c4, %c0_53, %c0_54] : memref<1x8x16x16xf32, #tpu.memory_space<vmem>>, vector<1x1x16x16xf32>
    %54 = vector.shape_cast %53 : vector<1x1x16x16xf32> to vector<16x16xf32>
    %55 = vector.shape_cast %52 : vector<16x16xf32> to vector<1x1x16x16xf32>
    tpu.vector_store %arg6[%c0_52, %c4, %c0_53, %c0_54], %55 {strides = array<i32>} : memref<1x8x16x16xf32, #tpu.memory_space<vmem>>, vector<1x1x16x16xf32>,
    %56 = vector.extract_strided_slice %10 {offsets = [5, 0, 0], sizes = [1, 8, 8], strides = [1, 1, 1]} : vector<8x8x10xf32> to vector<1x8x8xf32>
    %57 = vector.shape_cast %56 : vector<1x8x8xf32> to vector<8x8xf32>
    %c0_55 = arith.constant 0 : index
    %c0_56 = arith.constant 0 : index
    %58 = vector.load %arg4[%c0_55, %c0_56] : memref<16x8xf32, #tpu.memory_space<vmem>>, vector<16x8xf32>
    %cst_57 = arith.constant dense<0.000000e+00> : vector<16x8xf32>
    %59 = tpu.matmul %58, %57, %cst_57 {dimension_numbers = #tpu.dot_dimension_numbers<[1], [0], [0], [1], [0, 0, 1, 1], [], []>} : vector<16x8xf32>, vector<8x8xf32>, vector<16x8xf32> -> vector<16x8xf32>
    %c0_58 = arith.constant 0 : index
    %c0_59 = arith.constant 0 : index
    %60 = vector.load %arg5[%c0_58, %c0_59] : memref<8x16xf32, #tpu.memory_space<vmem>>, vector<8x16xf32>
    %cst_60 = arith.constant dense<0.000000e+00> : vector<16x16xf32>
    %61 = tpu.matmul %59, %60, %cst_60 {dimension_numbers = #tpu.dot_dimension_numbers<[1], [0], [0], [1], [0, 0, 1, 1], [], []>} : vector<16x8xf32>, vector<8x16xf32>, vector<16x16xf32> -> vector<16x16xf32>
    %c0_61 = arith.constant 0 : index
    %c5 = arith.constant 5 : index
    %c0_62 = arith.constant 0 : index
    %c0_63 = arith.constant 0 : index
    %62 = vector.load %arg6[%c0_61, %c5, %c0_62, %c0_63] : memref<1x8x16x16xf32, #tpu.memory_space<vmem>>, vector<1x1x16x16xf32>
    %63 = vector.shape_cast %62 : vector<1x1x16x16xf32> to vector<16x16xf32>
    %64 = vector.shape_cast %61 : vector<16x16xf32> to vector<1x1x16x16xf32>
    tpu.vector_store %arg6[%c0_61, %c5, %c0_62, %c0_63], %64 {strides = array<i32>} : memref<1x8x16x16xf32, #tpu.memory_space<vmem>>, vector<1x1x16x16xf32>,
    %65 = vector.extract_strided_slice %10 {offsets = [6, 0, 0], sizes = [1, 8, 8], strides = [1, 1, 1]} : vector<8x8x10xf32> to vector<1x8x8xf32>
    %66 = vector.shape_cast %65 : vector<1x8x8xf32> to vector<8x8xf32>
    %c0_64 = arith.constant 0 : index
    %c0_65 = arith.constant 0 : index
    %67 = vector.load %arg4[%c0_64, %c0_65] : memref<16x8xf32, #tpu.memory_space<vmem>>, vector<16x8xf32>
    %cst_66 = arith.constant dense<0.000000e+00> : vector<16x8xf32>
    %68 = tpu.matmul %67, %66, %cst_66 {dimension_numbers = #tpu.dot_dimension_numbers<[1], [0], [0], [1], [0, 0, 1, 1], [], []>} : vector<16x8xf32>, vector<8x8xf32>, vector<16x8xf32> -> vector<16x8xf32>
    %c0_67 = arith.constant 0 : index
    %c0_68 = arith.constant 0 : index
    %69 = vector.load %arg5[%c0_67, %c0_68] : memref<8x16xf32, #tpu.memory_space<vmem>>, vector<8x16xf32>
    %cst_69 = arith.constant dense<0.000000e+00> : vector<16x16xf32>
    %70 = tpu.matmul %68, %69, %cst_69 {dimension_numbers = #tpu.dot_dimension_numbers<[1], [0], [0], [1], [0, 0, 1, 1], [], []>} : vector<16x8xf32>, vector<8x16xf32>, vector<16x16xf32> -> vector<16x16xf32>
    %c0_70 = arith.constant 0 : index
    %c6 = arith.constant 6 : index
    %c0_71 = arith.constant 0 : index
    %c0_72 = arith.constant 0 : index
    %71 = vector.load %arg6[%c0_70, %c6, %c0_71, %c0_72] : memref<1x8x16x16xf32, #tpu.memory_space<vmem>>, vector<1x1x16x16xf32>
    %72 = vector.shape_cast %71 : vector<1x1x16x16xf32> to vector<16x16xf32>
    %73 = vector.shape_cast %70 : vector<16x16xf32> to vector<1x1x16x16xf32>
    tpu.vector_store %arg6[%c0_70, %c6, %c0_71, %c0_72], %73 {strides = array<i32>} : memref<1x8x16x16xf32, #tpu.memory_space<vmem>>, vector<1x1x16x16xf32>,
    %74 = vector.extract_strided_slice %10 {offsets = [7, 0, 0], sizes = [1, 8, 8], strides = [1, 1, 1]} : vector<8x8x10xf32> to vector<1x8x8xf32>
    %75 = vector.shape_cast %74 : vector<1x8x8xf32> to vector<8x8xf32>
    %c0_73 = arith.constant 0 : index
    %c0_74 = arith.constant 0 : index
    %76 = vector.load %arg4[%c0_73, %c0_74] : memref<16x8xf32, #tpu.memory_space<vmem>>, vector<16x8xf32>
    %cst_75 = arith.constant dense<0.000000e+00> : vector<16x8xf32>
    %77 = tpu.matmul %76, %75, %cst_75 {dimension_numbers = #tpu.dot_dimension_numbers<[1], [0], [0], [1], [0, 0, 1, 1], [], []>} : vector<16x8xf32>, vector<8x8xf32>, vector<16x8xf32> -> vector<16x8xf32>
    %c0_76 = arith.constant 0 : index
    %c0_77 = arith.constant 0 : index
    %78 = vector.load %arg5[%c0_76, %c0_77] : memref<8x16xf32, #tpu.memory_space<vmem>>, vector<8x16xf32>
    %cst_78 = arith.constant dense<0.000000e+00> : vector<16x16xf32>
    %79 = tpu.matmul %77, %78, %cst_78 {dimension_numbers = #tpu.dot_dimension_numbers<[1], [0], [0], [1], [0, 0, 1, 1], [], []>} : vector<16x8xf32>, vector<8x16xf32>, vector<16x16xf32> -> vector<16x16xf32>
    %c0_79 = arith.constant 0 : index
    %c7 = arith.constant 7 : index
    %c0_80 = arith.constant 0 : index
    %c0_81 = arith.constant 0 : index
    %80 = vector.load %arg6[%c0_79, %c7, %c0_80, %c0_81] : memref<1x8x16x16xf32, #tpu.memory_space<vmem>>, vector<1x1x16x16xf32>
    %81 = vector.shape_cast %80 : vector<1x1x16x16xf32> to vector<16x16xf32>
    %82 = vector.shape_cast %79 : vector<16x16xf32> to vector<1x1x16x16xf32>
    tpu.vector_store %arg6[%c0_79, %c7, %c0_80, %c0_81], %82 {strides = array<i32>} : memref<1x8x16x16xf32, #tpu.memory_space<vmem>>, vector<1x1x16x16xf32>,
    return
  }
  func.func @transform_0(%arg0: i32) -> (i32, i32, i32, i32) {
    %c0_i32 = arith.constant 0 : i32
    %c0_i32_0 = arith.constant 0 : i32
    %c0_i32_1 = arith.constant 0 : i32
    %c0_i32_2 = arith.constant 0 : i32
    return %arg0, %c0_i32, %c0_i32_0, %c0_i32_1 : i32, i32, i32, i32
  }
  func.func @transform_1(%arg0: i32) -> (i32, i32, i32) {
    %c0_i32 = arith.constant 0 : i32
    %c0_i32_0 = arith.constant 0 : i32
    %c0_i32_1 = arith.constant 0 : i32
    %c0_i32_2 = arith.constant 0 : i32
    return %c0_i32, %c0_i32_0, %c0_i32_1 : i32, i32, i32
  }
  func.func @transform_2(%arg0: i32) -> (i32, i32, i32) {
    %c0_i32 = arith.constant 0 : i32
    %c0_i32_0 = arith.constant 0 : i32
    %c0_i32_1 = arith.constant 0 : i32
    %c0_i32_2 = arith.constant 0 : i32
    return %c0_i32, %c0_i32_0, %c0_i32_1 : i32, i32, i32
  }
  func.func @transform_3(%arg0: i32) -> (i32, i32) {
    %c0_i32 = arith.constant 0 : i32
    %c0_i32_0 = arith.constant 0 : i32
    %c0_i32_1 = arith.constant 0 : i32
    return %c0_i32, %c0_i32_0 : i32, i32
  }
  func.func @transform_4(%arg0: i32) -> (i32, i32) {
    %c0_i32 = arith.constant 0 : i32
    %c0_i32_0 = arith.constant 0 : i32
    %c0_i32_1 = arith.constant 0 : i32
    return %c0_i32, %c0_i32_0 : i32, i32
  }
  func.func @transform_5(%arg0: i32) -> (i32, i32, i32, i32) {
    %c0_i32 = arith.constant 0 : i32
    %c0_i32_0 = arith.constant 0 : i32
    %c0_i32_1 = arith.constant 0 : i32
    %c0_i32_2 = arith.constant 0 : i32
    return %arg0, %c0_i32, %c0_i32_0, %c0_i32_1 : i32, i32, i32, i32
  }
}

</mosaic_0001>

<llo_original>
// kernel: downup_forward.4
$region0: #{downup_forward.4}
  #allocation0 [shape = 'u32[]', space=smem, size = 0x4, offset = 0x4, fixed_abs, tag = 'smem constant byte address 0x4 - core index']
  #allocation1 [shape = 'u32[144,128]{1,0:T(1,128)}', space=vmem, size = 0x12000, scoped, tag = 'internal scratch']
  #allocation2 [shape = 'f32[8,100]{1,0:T(8,128)}', space=vmem, size = 0x1000, scoped, tag = 'scratch operand']
  %s0 = inlined_call_operand.vmem [shape: f32[2,8,71], index: 0, kind: input, shape index: {}]
  %s1 = inlined_call_operand.vmem [shape: f32[8,1], index: 1, kind: input, shape index: {}]
  %s2 = inlined_call_operand.vmem [shape: f32[8,1], index: 2, kind: input, shape index: {}]
  %s3 = inlined_call_operand.vmem [shape: f32[9,8,8], index: 3, kind: input, shape index: {}]
  %s4 = inlined_call_operand.vmem [shape: f32[8,1], index: 4, kind: input, shape index: {}]
  %s5 = inlined_call_operand.vmem [shape: f32[1,78], index: 5, kind: input, shape index: {}]
  %s6 = inlined_call_operand.vmem [shape: f32[2,8,80], index: 6, kind: output, shape index: {0}]
  %s7 = inlined_call_operand.vmem [shape: f32[2,8,1], index: 7, kind: output, shape index: {1}]
  %s8 = inlined_call_operand.vmem [shape: f32[2,8,1], index: 8, kind: output, shape index: {2}]
  %9 = xla_tuple %s6, %s7, %s8
  %s10 = sld [smem:[#allocation0]]
  $region73: #{downup_forward.4} parent=0
    _
  %s12 = ssub.s32 1, %s10
  %s13 = scalar_select 0, %s12, %s10
  loop: start=0, step=1, limit=4
  $region2: #{downup_forward.4} parent=0 // loop_pre_header
    _
  $region3: #{downup_forward.4} parent=0 // loop_header
    %s15 = sphi 0, %s19
    %p16 = scmp.ge.s32.totalorder %s15, 4
    %s25 = sphi 0, %s27
    %s28 = sphi 0, %s25
    %s29 = sphi 0, %s28
    %s45 = sphi 0, %s29
    %s49 = sphi 0, %s49
    %s51 = sphi 0, %s49
    %s52 = sphi 0, %s51
    %s66 = sphi 0, %s52
    %s70 = sphi 0, %s70
    %s72 = sphi 0, %s70
    %s73 = sphi 0, %s72
    %s87 = sphi 0, %s73
    %s91 = sphi 0, %s91
    %s93 = sphi 0, %s91
    %s94 = sphi 0, %s93
    %s108 = sphi 0, %s94
    %s112 = sphi 0, %s112
    %s114 = sphi 0, %s112
    %s115 = sphi 0, %s114
    %s129 = sphi 0, %s115
    %s133 = sphi 0, %s133
    %s135 = sphi 0, %s133
    %s136 = sphi 0, %s135
    %s150 = sphi 0, %s136
    %s156 = sphi 0, %s158
    %s159 = sphi 0, %s156
    %s160 = sphi 0, %s159
    %s176 = sphi 0, %s160
    %s182 = sphi 0, %s184
    %s185 = sphi 0, %s182
    %s186 = sphi 0, %s185
    %s202 = sphi 0, %s186
    %s208 = sphi 0, %s210
    %s211 = sphi 0, %s208
    %s212 = sphi 0, %s211
    %s228 = sphi 0, %s212
  $region4: #{downup_forward.4} parent=0 // loop_header_branch
    %18 = sbr.rel (%p16) target = $region8
  $region5: #{downup_forward.4} parent=0 // loop_body
    %s20 = ssub.s32 %s15, 1
    %s21 = ssub.s32 %s15, 2
    %s22 = sadd.s32 %s15, 1
    %s23 = ssub.s32 %s15, %s22
    %p24 = scmp.eq.s32.totalorder %s23, 0
    %s26 = sadd.s32 %s25, 1
    %s27 = scalar_select %p24, %s25, %s26
    %p30 = pneg %p24
    %p31 = scmp.eq.s32.totalorder %s15, 1
    %p32 = por %p30, %p31
    %p33 = scmp.ne.s32.totalorder %s25, %s28
    %p34 = scmp.eq.s32.totalorder %s15, 0
    %p35 = por %p33, %p34
    %p36 = scmp.ne.s32.totalorder %s25, %s28
    %p37 = scmp.eq.s32.totalorder %s20, 1
    %p38 = por %p36, %p37
    %p39 = scmp.ne.s32.totalorder %s28, %s29
    %p40 = scmp.eq.s32.totalorder %s20, 0
    %p41 = por %p39, %p40
    %p42 = scmp.ne.s32.totalorder %s28, %s29
    %p43 = scmp.eq.s32.totalorder %s21, 1
    %p44 = por %p42, %p43
    %p46 = scmp.ne.s32.totalorder %s29, %s45
    %p47 = scmp.eq.s32.totalorder %s21, 0
    %p48 = por %p46, %p47
    %s50 = sadd.s32 %s49, 1
    %p53 = scmp.eq.s32.totalorder %s15, 1
    %p54 = scmp.ne.s32.totalorder %s49, %s51
    %p55 = scmp.eq.s32.totalorder %s15, 0
    %p56 = por %p54, %p55
    %p57 = scmp.ne.s32.totalorder %s49, %s51
    %p58 = scmp.eq.s32.totalorder %s20, 1
    %p59 = por %p57, %p58
    %p60 = scmp.ne.s32.totalorder %s51, %s52
    %p61 = scmp.eq.s32.totalorder %s20, 0
    %p62 = por %p60, %p61
    %p63 = scmp.ne.s32.totalorder %s51, %s52
    %p64 = scmp.eq.s32.totalorder %s21, 1
    %p65 = por %p63, %p64
    %p67 = scmp.ne.s32.totalorder %s52, %s66
    %p68 = scmp.eq.s32.totalorder %s21, 0
    %p69 = por %p67, %p68
    %s71 = sadd.s32 %s70, 1
    %p74 = scmp.eq.s32.totalorder %s15, 1
    %p75 = scmp.ne.s32.totalorder %s70, %s72
    %p76 = scmp.eq.s32.totalorder %s15, 0
    %p77 = por %p75, %p76
    %p78 = scmp.ne.s32.totalorder %s70, %s72
    %p79 = scmp.eq.s32.totalorder %s20, 1
    %p80 = por %p78, %p79
    %p81 = scmp.ne.s32.totalorder %s72, %s73
    %p82 = scmp.eq.s32.totalorder %s20, 0
    %p83 = por %p81, %p82
    %p84 = scmp.ne.s32.totalorder %s72, %s73
    %p85 = scmp.eq.s32.totalorder %s21, 1
    %p86 = por %p84, %p85
    %p88 = scmp.ne.s32.totalorder %s73, %s87
    %p89 = scmp.eq.s32.totalorder %s21, 0
    %p90 = por %p88, %p89
    %s92 = sadd.s32 %s91, 1
    %p95 = scmp.eq.s32.totalorder %s15, 1
    %p96 = scmp.ne.s32.totalorder %s91, %s93
    %p97 = scmp.eq.s32.totalorder %s15, 0
    %p98 = por %p96, %p97
    %p99 = scmp.ne.s32.totalorder %s91, %s93
    %p100 = scmp.eq.s32.totalorder %s20, 1
    %p101 = por %p99, %p100
    %p102 = scmp.ne.s32.totalorder %s93, %s94
    %p103 = scmp.eq.s32.totalorder %s20, 0
    %p104 = por %p102, %p103
    %p105 = scmp.ne.s32.totalorder %s93, %s94
    %p106 = scmp.eq.s32.totalorder %s21, 1
    %p107 = por %p105, %p106
    %p109 = scmp.ne.s32.totalorder %s94, %s108
    %p110 = scmp.eq.s32.totalorder %s21, 0
    %p111 = por %p109, %p110
    %s113 = sadd.s32 %s112, 1
    %p116 = scmp.eq.s32.totalorder %s15, 1
    %p117 = scmp.ne.s32.totalorder %s112, %s114
    %p118 = scmp.eq.s32.totalorder %s15, 0
    %p119 = por %p117, %p118
    %p120 = scmp.ne.s32.totalorder %s112, %s114
    %p121 = scmp.eq.s32.totalorder %s20, 1
    %p122 = por %p120, %p121
    %p123 = scmp.ne.s32.totalorder %s114, %s115
    %p124 = scmp.eq.s32.totalorder %s20, 0
    %p125 = por %p123, %p124
    %p126 = scmp.ne.s32.totalorder %s114, %s115
    %p127 = scmp.eq.s32.totalorder %s21, 1
    %p128 = por %p126, %p127
    %p130 = scmp.ne.s32.totalorder %s115, %s129
    %p131 = scmp.eq.s32.totalorder %s21, 0
    %p132 = por %p130, %p131
    %s134 = sadd.s32 %s133, 1
    %p137 = scmp.eq.s32.totalorder %s15, 1
    %p138 = scmp.ne.s32.totalorder %s133, %s135
    %p139 = scmp.eq.s32.totalorder %s15, 0
    %p140 = por %p138, %p139
    %p141 = scmp.ne.s32.totalorder %s133, %s135
    %p142 = scmp.eq.s32.totalorder %s20, 1
    %p143 = por %p141, %p142
    %p144 = scmp.ne.s32.totalorder %s135, %s136
    %p145 = scmp.eq.s32.totalorder %s20, 0
    %p146 = por %p144, %p145
    %p147 = scmp.ne.s32.totalorder %s135, %s136
    %p148 = scmp.eq.s32.totalorder %s21, 1
    %p149 = por %p147, %p148
    %p151 = scmp.ne.s32.totalorder %s136, %s150
    %p152 = scmp.eq.s32.totalorder %s21, 0
    %p153 = por %p151, %p152
    %s154 = ssub.s32 %s15, %s22
    %p155 = scmp.eq.s32.totalorder %s154, 0
    %s157 = sadd.s32 %s156, 1
    %s158 = scalar_select %p155, %s156, %s157
    %p161 = pneg %p155
    %p162 = scmp.eq.s32.totalorder %s15, 1
    %p163 = por %p161, %p162
    %p164 = scmp.ne.s32.totalorder %s156, %s159
    %p165 = scmp.eq.s32.totalorder %s15, 0
    %p166 = por %p164, %p165
    %p167 = scmp.ne.s32.totalorder %s156, %s159
    %p168 = scmp.eq.s32.totalorder %s20, 1
    %p169 = por %p167, %p168
    %p170 = scmp.ne.s32.totalorder %s159, %s160
    %p171 = scmp.eq.s32.totalorder %s20, 0
    %p172 = por %p170, %p171
    %p173 = scmp.ne.s32.totalorder %s159, %s160
    %p174 = scmp.eq.s32.totalorder %s21, 1
    %p175 = por %p173, %p174
    %p177 = scmp.ne.s32.totalorder %s160, %s176
    %p178 = scmp.eq.s32.totalorder %s21, 0
    %p179 = por %p177, %p178
    %s180 = ssub.s32 %s15, %s22
    %p181 = scmp.eq.s32.totalorder %s180, 0
    %s183 = sadd.s32 %s182, 1
    %s184 = scalar_select %p181, %s182, %s183
    %p187 = pneg %p181
    %p188 = scmp.eq.s32.totalorder %s15, 1
    %p189 = por %p187, %p188
    %p190 = scmp.ne.s32.totalorder %s182, %s185
    %p191 = scmp.eq.s32.totalorder %s15, 0
    %p192 = por %p190, %p191
    %p193 = scmp.ne.s32.totalorder %s182, %s185
    %p194 = scmp.eq.s32.totalorder %s20, 1
    %p195 = por %p193, %p194
    %p196 = scmp.ne.s32.totalorder %s185, %s186
    %p197 = scmp.eq.s32.totalorder %s20, 0
    %p198 = por %p196, %p197
    %p199 = scmp.ne.s32.totalorder %s185, %s186
    %p200 = scmp.eq.s32.totalorder %s21, 1
    %p201 = por %p199, %p200
    %p203 = scmp.ne.s32.totalorder %s186, %s202
    %p204 = scmp.eq.s32.totalorder %s21, 0
    %p205 = por %p203, %p204
    %s206 = ssub.s32 %s15, %s22
    %p207 = scmp.eq.s32.totalorder %s206, 0
    %s209 = sadd.s32 %s208, 1
    %s210 = scalar_select %p207, %s208, %s209
    %p213 = pneg %p207
    %p214 = scmp.eq.s32.totalorder %s15, 1
    %p215 = por %p213, %p214
    %p216 = scmp.ne.s32.totalorder %s208, %s211
    %p217 = scmp.eq.s32.totalorder %s15, 0
    %p218 = por %p216, %p217
    %p219 = scmp.ne.s32.totalorder %s208, %s211
    %p220 = scmp.eq.s32.totalorder %s20, 1
    %p221 = por %p219, %p220
    %p222 = scmp.ne.s32.totalorder %s211, %s212
    %p223 = scmp.eq.s32.totalorder %s20, 0
    %p224 = por %p222, %p223
    %p225 = scmp.ne.s32.totalorder %s211, %s212
    %p226 = scmp.eq.s32.totalorder %s21, 1
    %p227 = por %p225, %p226
    %p229 = scmp.ne.s32.totalorder %s212, %s228
    %p230 = scmp.eq.s32.totalorder %s21, 0
    %p231 = por %p229, %p230
    %p232 = scmp.le.s32.totalorder 1, %s15
    %p233 = scmp.lt.s32.totalorder %s15, 3
    %p234 = pnand %p232, %p233
    %p235 = pneg %p234
    // Predicated region
    $region9: #{downup_forward.4} parent=5 // pred_check
      _
    $region10: #{downup_forward.4} parent=5 // pred_check_branch
      %237 = sbr.rel (%p234) target = $region12
    $region11: #{downup_forward.4} parent=5 // pred_region
      %s238 = ssub.s32 %s15, 1
      // Predicated region
      $region13: #{downup_forward.4} parent=11 // pred_check
        %p239 = pneg %p62
      $region14: #{downup_forward.4} parent=11 // pred_check_branch
        %241 = sbr.rel (%p239) target = $region16
      $region15: #{downup_forward.4} parent=11 // pred_region
        _
      $region16: #{downup_forward.4} parent=11 // pred_fallthru
        _
      // Predicated region
      $region17: #{downup_forward.4} parent=11 // pred_check
        %p242 = pneg %p83
      $region18: #{downup_forward.4} parent=11 // pred_check_branch
        %244 = sbr.rel (%p242) target = $region20
      $region19: #{downup_forward.4} parent=11 // pred_region
        _
      $region20: #{downup_forward.4} parent=11 // pred_fallthru
        _
      // Predicated region
      $region21: #{downup_forward.4} parent=11 // pred_check
        %p245 = pneg %p104
      $region22: #{downup_forward.4} parent=11 // pred_check_branch
        %247 = sbr.rel (%p245) target = $region24
      $region23: #{downup_forward.4} parent=11 // pred_region
        _
      $region24: #{downup_forward.4} parent=11 // pred_fallthru
        _
      // Predicated region
      $region25: #{downup_forward.4} parent=11 // pred_check
        %p248 = pneg %p125
      $region26: #{downup_forward.4} parent=11 // pred_check_branch
        %250 = sbr.rel (%p248) target = $region28
      $region27: #{downup_forward.4} parent=11 // pred_region
        _
      $region28: #{downup_forward.4} parent=11 // pred_fallthru
        _
      // Predicated region
      $region29: #{downup_forward.4} parent=11 // pred_check
        %p251 = pneg %p146
      $region30: #{downup_forward.4} parent=11 // pred_check_branch
        %253 = sbr.rel (%p251) target = $region32
      $region31: #{downup_forward.4} parent=11 // pred_region
        _
      $region32: #{downup_forward.4} parent=11 // pred_fallthru
        _
    $region12: #{downup_forward.4} parent=5 // pred_fallthru
      _
    %p254 = scmp.lt.s32.totalorder %s15, 2
    // Predicated region
    $region33: #{downup_forward.4} parent=5 // pred_check
      %p255 = pneg %p254
    $region34: #{downup_forward.4} parent=5 // pred_check_branch
      %257 = sbr.rel (%p255) target = $region36
    $region35: #{downup_forward.4} parent=5 // pred_region
      // Predicated region
      $region37: #{downup_forward.4} parent=35 // pred_check
        %p258 = pneg %p35
      $region38: #{downup_forward.4} parent=35 // pred_check_branch
        %260 = sbr.rel (%p258) target = $region40
      $region39: #{downup_forward.4} parent=35 // pred_region
        %p261 = scmp.lt.s32.totalorder %s15, 1
        %s262 = scalar_select %p261, %s15, 1
        %s263 = smul.addr %s262, 8
        %s264 = scalar_lea.vmem %s0, %s263
      $region40: #{downup_forward.4} parent=35 // pred_fallthru
        _
    $region36: #{downup_forward.4} parent=5 // pred_fallthru
      _
    %p265 = scmp.le.s32.totalorder 1, %s15
    %p266 = scmp.lt.s32.totalorder %s15, 3
    %p267 = pnand %p265, %p266
    %p268 = pneg %p267
    // Predicated region
    $region41: #{downup_forward.4} parent=5 // pred_check
      _
    $region42: #{downup_forward.4} parent=5 // pred_check_branch
      %270 = sbr.rel (%p267) target = $region44
    $region43: #{downup_forward.4} parent=5 // pred_region
      %s271 = ssub.s32 %s15, 1
      %p272 = scmp.lt.s32.totalorder %s20, 1
      %s273 = scalar_select %p272, %s20, 1
      %s274 = smul.addr %s273, 8
      %s275 = scalar_lea.vmem %s0, %s274
      %p276 = pneg %p41
      %p277 = pneg %p38
      %p278 = pneg %p62
      %p279 = pneg %p59
      %p280 = pneg %p83
      %p281 = pneg %p80
      %p282 = pneg %p104
      %p283 = pneg %p101
      %p284 = pneg %p125
      %p285 = pneg %p122
      %p286 = pneg %p146
      %p287 = pneg %p143
      %p288 = pneg %p172
      %p289 = pneg %p169
      %p290 = scmp.lt.s32.totalorder %s20, 1
      %s291 = scalar_select %p290, %s20, 1
      %s292 = smul.addr %s291, 8
      %s293 = scalar_lea.vmem %s6, %s292
      %p294 = pneg %p198
      %p295 = pneg %p195
      %p296 = scmp.lt.s32.totalorder %s20, 1
      %s297 = scalar_select %p296, %s20, 1
      %s298 = smul.addr %s297, 8
      %s299 = scalar_lea.vmem %s7, %s298
      %p300 = pneg %p224
      %p301 = pneg %p221
      %p302 = scmp.lt.s32.totalorder %s20, 1
      %s303 = scalar_select %p302, %s20, 1
      %s304 = smul.addr %s303, 8
      %s305 = scalar_lea.vmem %s8, %s304
      %p306 = scmp.lt.s32.totalorder %s20, 1
      %s307 = scalar_select %p306, %s20, 1
      %s308 = smul.addr %s307, 8
      %s309 = scalar_lea.vmem %s0, %s308
      %p310 = scmp.lt.s32.totalorder %s20, 1
      %s311 = scalar_select %p310, %s20, 1
      %s312 = smul.addr %s311, 8
      %s313 = scalar_lea.vmem %s6, %s312
      %p314 = scmp.lt.s32.totalorder %s20, 1
      %s315 = scalar_select %p314, %s20, 1
      %s316 = smul.addr %s315, 8
      %s317 = scalar_lea.vmem %s7, %s316
      %p318 = scmp.lt.s32.totalorder %s20, 1
      %s319 = scalar_select %p318, %s20, 1
      %s320 = smul.addr %s319, 8
      %s321 = scalar_lea.vmem %s8, %s320
      %v322 = vld [vmem:[%s309] sm:$0xff]
      %v323 = vld [vmem:[%s1] sm:$0xff]
      %325 = vset.pattern.permute.xlu0 0
      %326 = vperm.xlu0 %325, %v323
      %v327 = vpop.permute.xlu0 %326
      %v329 = vmul.f32 %v322, %v327
      %v330 = vld [vmem:[%s2] sm:$0xff]
      %332 = vset.pattern.permute.xlu0 0
      %333 = vperm.xlu0 %332, %v330
      %v334 = vpop.permute.xlu0 %333
      %v336 = vadd.f32 %v329, %v334
      %v337 = vmul.f32 %v336, 0.2
      %v338 = vmax.f32 %v336, %v337
      %340 = vrot.lane.b32.xlu0 %v338, 120
      %v341 = vpop.permute.xlu0 %340
      %vm343 = vcmask 72712
      %344 = vst.msk [vmem:[#allocation2] sm:$0xff] %vm343, %v341
      %345 = vrot.lane.b32.xlu0 %v338, 118
      %v346 = vpop.permute.xlu0 %345
      %vm348 = vcmask 7168
      %349 = vst.msk [vmem:[#allocation2] sm:$0xff] %vm348, %v346
      %350 = vrot.lane.b32.xlu0 %v338, 122
      %v351 = vpop.permute.xlu0 %350
      %vm353 = vcmask 80968
      %354 = vst.msk [vmem:[#allocation2] sm:$0xff] %vm353, %v351
      %355 = vrot.lane.b32.xlu0 %v338, 11
      %v356 = vpop.permute.xlu0 %355
      %vm358 = vcmask 154712
      %359 = vst.msk [vmem:[#allocation2] sm:$0xff] %vm358, %v356
      %360 = vrot.lane.b32.xlu0 %v338, 9
      %v361 = vpop.permute.xlu0 %360
      %vm363 = vcmask 89168
      %364 = vst.msk [vmem:[#allocation2] sm:$0xff] %vm363, %v361
      %365 = vrot.lane.b32.xlu0 %v338, 13
      %v366 = vpop.permute.xlu0 %365
      %vm368 = vcmask 162968
      %369 = vst.msk [vmem:[#allocation2] sm:$0xff] %vm368, %v366
      %370 = vrot.lane.b32.xlu0 %v338, 12
      %v371 = vpop.permute.xlu0 %370
      %vm373 = vcmask 236712
      %374 = vst.msk [vmem:[#allocation2] sm:$0xff] %vm373, %v371
      %375 = vrot.lane.b32.xlu0 %v338, 10
      %v376 = vpop.permute.xlu0 %375
      %vm378 = vcmask 171168
      %379 = vst.msk [vmem:[#allocation2] sm:$0xff] %vm378, %v376
      %380 = vrot.lane.b32.xlu0 %v338, 14
      %v381 = vpop.permute.xlu0 %380
      %vm383 = vcmask 244968
      %384 = vst.msk [vmem:[#allocation2] sm:$0xff] %vm383, %v381
      %vm385 = vcmask 318712
      %386 = vst.msk [vmem:[#allocation2] sm:$0xff] %vm385, %v366
      %vm387 = vcmask 253168
      %388 = vst.msk [vmem:[#allocation2] sm:$0xff] %vm387, %v356
      %389 = vrot.lane.b32.xlu0 %v338, 15
      %v390 = vpop.permute.xlu0 %389
      %vm392 = vcmask 326968
      %393 = vst.msk [vmem:[#allocation2] sm:$0xff] %vm392, %v390
      %vm394 = vcmask 400712
      %395 = vst.msk [vmem:[#allocation2] sm:$0xff] %vm394, %v381
      %vm396 = vcmask 335168
      %397 = vst.msk [vmem:[#allocation2] sm:$0xff] %vm396, %v371
      %398 = vrot.lane.b32.xlu0 %v338, 16
      %v399 = vpop.permute.xlu0 %398
      %vm401 = vcmask 408968
      %402 = vst.msk [vmem:[#allocation2] sm:$0xff] %vm401, %v399
      %vm403 = vcmask 482712
      %404 = vst.msk [vmem:[#allocation2] sm:$0xff] %vm403, %v390
      %vm405 = vcmask 417168
      %406 = vst.msk [vmem:[#allocation2] sm:$0xff] %vm405, %v366
      %407 = vrot.lane.b32.xlu0 %v338, 17
      %v408 = vpop.permute.xlu0 %407
      %vm410 = vcmask 490968
      %411 = vst.msk [vmem:[#allocation2] sm:$0xff] %vm410, %v408
      %vm412 = vcmask 564712
      %413 = vst.msk [vmem:[#allocation2] sm:$0xff] %vm412, %v399
      %vm414 = vcmask 499168
      %415 = vst.msk [vmem:[#allocation2] sm:$0xff] %vm414, %v381
      %416 = vrot.lane.b32.xlu0 %v338, 18
      %v417 = vpop.permute.xlu0 %416
      %vm419 = vcmask 572968
      %420 = vst.msk [vmem:[#allocation2] sm:$0xff] %vm419, %v417
      %vm421 = vcmask 646712
      %422 = vst.msk [vmem:[#allocation2] sm:$0xff] %vm421, %v408
      %vm423 = vcmask 581168
      %424 = vst.msk [vmem:[#allocation2] sm:$0xff] %vm423, %v390
      %425 = vrot.lane.b32.xlu0 %v338, 19
      %v426 = vpop.permute.xlu0 %425
      %vm428 = vcmask 654968
      %429 = vst.msk [vmem:[#allocation2] sm:$0xff] %vm428, %v426
      %vm430 = vcmask 728712
      %431 = vst.msk [vmem:[#allocation2] sm:$0xff] %vm430, %v417
      %vm432 = vcmask 663168
      %433 = vst.msk [vmem:[#allocation2] sm:$0xff] %vm432, %v399
      %434 = vrot.lane.b32.xlu0 %v338, 20
      %v435 = vpop.permute.xlu0 %434
      %vm437 = vcmask 736968
      %438 = vst.msk [vmem:[#allocation2] sm:$0xff] %vm437, %v435
      %439 = vrot.lane.b32.xlu0 %v338, 37
      %v440 = vpop.permute.xlu0 %439
      %vm442 = vcmask 810712
      %443 = vst.msk [vmem:[#allocation2] sm:$0xff] %vm442, %v440
      %444 = vrot.lane.b32.xlu0 %v338, 35
      %v445 = vpop.permute.xlu0 %444
      %vm447 = vcmask 745168
      %448 = vst.msk [vmem:[#allocation2] sm:$0xff] %vm447, %v445
      %449 = vrot.lane.b32.xlu0 %v338, 39
      %v450 = vpop.permute.xlu0 %449
      %vm452 = vcmask 818968
      %453 = vst.msk [vmem:[#allocation2] sm:$0xff] %vm452, %v450
      %v454 = vld [vmem:[%s3] sm:$0xff]
      %v455 = vld [vmem:[#allocation2] sm:$0xff]
      %s456 = scalar_lea.vmem %s3, 8
      %v457 = vld [vmem:[%s456] sm:$0xff]
      %459 = vrot.lane.b32.xlu0 %v455, 127
      %v460 = vpop.permute.xlu0 %459
      %vm462 = vcmask 64512
      %v464 = vsel %vm462, %v457, 0
      %466 = vmatprep.subr.mxu0 0.0
      %467 = vmatpush1.msra.mxu0 %v460
      %468 = vmatprep.subr.mxu0 0.0
      %469 = vmatpush1.msra.mxu0 0.0
      %470 = vmatprep.subr.mxu0 0.0
      %471 = vmatpush1.msra.mxu0 0.0
      %472 = vmatprep.subr.mxu0 0.0
      %473 = vmatpush1.msra.mxu0 0.0
      %474 = vmatprep.subr.mxu0 0.0
      %475 = vmatpush1.msra.mxu0 0.0
      %476 = vmatprep.subr.mxu0 0.0
      %477 = vmatpush1.msra.mxu0 0.0
      %478 = vmatprep.subr.mxu0 0.0
      %479 = vmatpush1.msra.mxu0 0.0
      %480 = vmatprep.subr.mxu0 0.0
      %481 = vmatpush1.msra.mxu0 0.0
      %482 = vmatprep.subr.mxu0 0.0
      %483 = vmatpush1.msra.mxu0 0.0
      %484 = vmatprep.subr.mxu0 0.0
      %485 = vmatpush1.msra.mxu0 0.0
      %486 = vmatprep.subr.mxu0 0.0
      %487 = vmatpush1.msra.mxu0 0.0
      %488 = vmatprep.subr.mxu0 0.0
      %489 = vmatpush1.msra.mxu0 0.0
      %490 = vmatprep.subr.mxu0 0.0
      %491 = vmatpush1.msra.mxu0 0.0
      %492 = vmatprep.subr.mxu0 0.0
      %493 = vmatpush1.msra.mxu0 0.0
      %494 = vmatprep.subr.mxu0 0.0
      %495 = vmatpush1.msra.mxu0 0.0
      %496 = vmatprep.subr.mxu0 0.0
      %497 = vmatpush1.msra.mxu0 0.0
      %498 = vmatprep.subr.mxu0 0.0
      %499 = vmatpush1.msra.mxu0 0.0
      %500 = vmatprep.subr.mxu0 0.0
      %501 = vmatpush1.msra.mxu0 0.0
      %502 = vmatprep.subr.mxu0 0.0
      %503 = vmatpush1.msra.mxu0 0.0
      %504 = vmatprep.subr.mxu0 0.0
      %505 = vmatpush1.msra.mxu0 0.0
      %506 = vmatprep.subr.mxu0 0.0
      %507 = vmatpush1.msra.mxu0 0.0
      %508 = vmatprep.subr.mxu0 0.0
      %509 = vmatpush1.msra.mxu0 0.0
      %510 = vmatprep.subr.mxu0 0.0
      %511 = vmatpush1.msra.mxu0 0.0
      %512 = vmatprep.subr.mxu0 0.0
      %513 = vmatpush1.msra.mxu0 0.0
      %514 = vmatprep.subr.mxu0 0.0
      %515 = vmatpush1.msra.mxu0 0.0
      %516 = vmatprep.subr.mxu0 0.0
      %517 = vmatpush1.msra.mxu0 0.0
      %518 = vmatprep.subr.mxu0 0.0
      %519 = vmatpush1.msra.mxu0 0.0
      %520 = vmatprep.subr.mxu0 0.0
      %521 = vmatpush1.msra.mxu0 0.0
      %522 = vmatprep.subr.mxu0 0.0
      %523 = vmatpush1.msra.mxu0 0.0
      %524 = vmatprep.subr.mxu0 0.0
      %525 = vmatpush1.msra.mxu0 0.0
      %526 = vmatprep.subr.mxu0 0.0
      %527 = vmatpush1.msra.mxu0 0.0
      %528 = vmatprep.subr.mxu0 0.0
      %529 = vmatpush1.msra.mxu0 0.0
      %530 = vmatprep.mubr.f32.mxu0 0.0
      %531 = vmatmul.mubr.f32.gmra.mrb[0].mxu0 %v464
      %v532 = vpop.f32.mrb[0].mxu0
      %v533 = vadd.f32 0.0, %v532
      %v534 = vpop.f32.mrb[0].mxu0
      %535 = vdwg.mxu0
      %v537 = vsel %vm462, %v454, 0
      %539 = vmatprep.subr.mxu0 0.0
      %540 = vmatpush1.msra.mxu0 %v455
      %541 = vmatprep.subr.mxu0 0.0
      %542 = vmatpush1.msra.mxu0 0.0
      %543 = vmatprep.subr.mxu0 0.0
      %544 = vmatpush1.msra.mxu0 0.0
      %545 = vmatprep.subr.mxu0 0.0
      %546 = vmatpush1.msra.mxu0 0.0
      %547 = vmatprep.subr.mxu0 0.0
      %548 = vmatpush1.msra.mxu0 0.0
      %549 = vmatprep.subr.mxu0 0.0
      %550 = vmatpush1.msra.mxu0 0.0
      %551 = vmatprep.subr.mxu0 0.0
      %552 = vmatpush1.msra.mxu0 0.0
      %553 = vmatprep.subr.mxu0 0.0
      %554 = vmatpush1.msra.mxu0 0.0
      %555 = vmatprep.subr.mxu0 0.0
      %556 = vmatpush1.msra.mxu0 0.0
      %557 = vmatprep.subr.mxu0 0.0
      %558 = vmatpush1.msra.mxu0 0.0
      %559 = vmatprep.subr.mxu0 0.0
      %560 = vmatpush1.msra.mxu0 0.0
      %561 = vmatprep.subr.mxu0 0.0
      %562 = vmatpush1.msra.mxu0 0.0
      %563 = vmatprep.subr.mxu0 0.0
      %564 = vmatpush1.msra.mxu0 0.0
      %565 = vmatprep.subr.mxu0 0.0
      %566 = vmatpush1.msra.mxu0 0.0
      %567 = vmatprep.subr.mxu0 0.0
      %568 = vmatpush1.msra.mxu0 0.0
      %569 = vmatprep.subr.mxu0 0.0
      %570 = vmatpush1.msra.mxu0 0.0
      %571 = vmatprep.subr.mxu0 0.0
      %572 = vmatpush1.msra.mxu0 0.0
      %573 = vmatprep.subr.mxu0 0.0
      %574 = vmatpush1.msra.mxu0 0.0
      %575 = vmatprep.subr.mxu0 0.0
      %576 = vmatpush1.msra.mxu0 0.0
      %577 = vmatprep.subr.mxu0 0.0
      %578 = vmatpush1.msra.mxu0 0.0
      %579 = vmatprep.subr.mxu0 0.0
      %580 = vmatpush1.msra.mxu0 0.0
      %581 = vmatprep.subr.mxu0 0.0
      %582 = vmatpush1.msra.mxu0 0.0
      %583 = vmatprep.subr.mxu0 0.0
      %584 = vmatpush1.msra.mxu0 0.0
      %585 = vmatprep.subr.mxu0 0.0
      %586 = vmatpush1.msra.mxu0 0.0
      %587 = vmatprep.subr.mxu0 0.0
      %588 = vmatpush1.msra.mxu0 0.0
      %589 = vmatprep.subr.mxu0 0.0
      %590 = vmatpush1.msra.mxu0 0.0
      %591 = vmatprep.subr.mxu0 0.0
      %592 = vmatpush1.msra.mxu0 0.0
      %593 = vmatprep.subr.mxu0 0.0
      %594 = vmatpush1.msra.mxu0 0.0
      %595 = vmatprep.subr.mxu0 0.0
      %596 = vmatpush1.msra.mxu0 0.0
      %597 = vmatprep.subr.mxu0 0.0
      %598 = vmatpush1.msra.mxu0 0.0
      %599 = vmatprep.subr.mxu0 0.0
      %600 = vmatpush1.msra.mxu0 0.0
      %601 = vmatprep.subr.mxu0 0.0
      %602 = vmatpush1.msra.mxu0 0.0
      %603 = vmatprep.mubr.f32.mxu0 0.0
      %604 = vmatmul.mubr.f32.gmra.mrb[0].mxu0 %v537
      %v605 = vpop.f32.mrb[0].mxu0
      %v606 = vadd.f32 %v533, %v605
      %v607 = vpop.f32.mrb[0].mxu0
      %608 = vdwg.mxu0
      %s609 = scalar_lea.vmem %s3, 16
      %v610 = vld [vmem:[%s609] sm:$0xff]
      %611 = vrot.lane.b32.xlu0 %v455, 126
      %v612 = vpop.permute.xlu0 %611
      %v615 = vsel %vm462, %v610, 0
      %617 = vmatprep.subr.mxu0 0.0
      %618 = vmatpush1.msra.mxu0 %v612
      %619 = vmatprep.subr.mxu0 0.0
      %620 = vmatpush1.msra.mxu0 0.0
      %621 = vmatprep.subr.mxu0 0.0
      %622 = vmatpush1.msra.mxu0 0.0
      %623 = vmatprep.subr.mxu0 0.0
      %624 = vmatpush1.msra.mxu0 0.0
      %625 = vmatprep.subr.mxu0 0.0
      %626 = vmatpush1.msra.mxu0 0.0
      %627 = vmatprep.subr.mxu0 0.0
      %628 = vmatpush1.msra.mxu0 0.0
      %629 = vmatprep.subr.mxu0 0.0
      %630 = vmatpush1.msra.mxu0 0.0
      %631 = vmatprep.subr.mxu0 0.0
      %632 = vmatpush1.msra.mxu0 0.0
      %633 = vmatprep.subr.mxu0 0.0
      %634 = vmatpush1.msra.mxu0 0.0
      %635 = vmatprep.subr.mxu0 0.0
      %636 = vmatpush1.msra.mxu0 0.0
      %637 = vmatprep.subr.mxu0 0.0
      %638 = vmatpush1.msra.mxu0 0.0
      %639 = vmatprep.subr.mxu0 0.0
      %640 = vmatpush1.msra.mxu0 0.0
      %641 = vmatprep.subr.mxu0 0.0
      %642 = vmatpush1.msra.mxu0 0.0
      %643 = vmatprep.subr.mxu0 0.0
      %644 = vmatpush1.msra.mxu0 0.0
      %645 = vmatprep.subr.mxu0 0.0
      %646 = vmatpush1.msra.mxu0 0.0
      %647 = vmatprep.subr.mxu0 0.0
      %648 = vmatpush1.msra.mxu0 0.0
      %649 = vmatprep.subr.mxu0 0.0
      %650 = vmatpush1.msra.mxu0 0.0
      %651 = vmatprep.subr.mxu0 0.0
      %652 = vmatpush1.msra.mxu0 0.0
      %653 = vmatprep.subr.mxu0 0.0
      %654 = vmatpush1.msra.mxu0 0.0
      %655 = vmatprep.subr.mxu0 0.0
      %656 = vmatpush1.msra.mxu0 0.0
      %657 = vmatprep.subr.mxu0 0.0
      %658 = vmatpush1.msra.mxu0 0.0
      %659 = vmatprep.subr.mxu0 0.0
      %660 = vmatpush1.msra.mxu0 0.0
      %661 = vmatprep.subr.mxu0 0.0
      %662 = vmatpush1.msra.mxu0 0.0
      %663 = vmatprep.subr.mxu0 0.0
      %664 = vmatpush1.msra.mxu0 0.0
      %665 = vmatprep.subr.mxu0 0.0
      %666 = vmatpush1.msra.mxu0 0.0
      %667 = vmatprep.subr.mxu0 0.0
      %668 = vmatpush1.msra.mxu0 0.0
      %669 = vmatprep.subr.mxu0 0.0
      %670 = vmatpush1.msra.mxu0 0.0
      %671 = vmatprep.subr.mxu0 0.0
      %672 = vmatpush1.msra.mxu0 0.0
      %673 = vmatprep.subr.mxu0 0.0
      %674 = vmatpush1.msra.mxu0 0.0
      %675 = vmatprep.subr.mxu0 0.0
      %676 = vmatpush1.msra.mxu0 0.0
      %677 = vmatprep.subr.mxu0 0.0
      %678 = vmatpush1.msra.mxu0 0.0
      %679 = vmatprep.subr.mxu0 0.0
      %680 = vmatpush1.msra.mxu0 0.0
      %681 = vmatprep.mubr.f32.mxu0 0.0
      %682 = vmatmul.mubr.f32.gmra.mrb[0].mxu0 %v615
      %v683 = vpop.f32.mrb[0].mxu0
      %v684 = vadd.f32 0.0, %v683
      %v685 = vpop.f32.mrb[0].mxu0
      %686 = vdwg.mxu0
      %v687 = vadd.f32 %v606, %v684
      %s688 = scalar_lea.vmem %s3, 24
      %v689 = vld [vmem:[%s688] sm:$0xff]
      %690 = vrot.lane.b32.xlu0 %v455, 118
      %v691 = vpop.permute.xlu0 %690
      %v694 = vsel %vm462, %v689, 0
      %696 = vmatprep.subr.mxu0 0.0
      %697 = vmatpush1.msra.mxu0 %v691
      %698 = vmatprep.subr.mxu0 0.0
      %699 = vmatpush1.msra.mxu0 0.0
      %700 = vmatprep.subr.mxu0 0.0
      %701 = vmatpush1.msra.mxu0 0.0
      %702 = vmatprep.subr.mxu0 0.0
      %703 = vmatpush1.msra.mxu0 0.0
      %704 = vmatprep.subr.mxu0 0.0
      %705 = vmatpush1.msra.mxu0 0.0
      %706 = vmatprep.subr.mxu0 0.0
      %707 = vmatpush1.msra.mxu0 0.0
      %708 = vmatprep.subr.mxu0 0.0
      %709 = vmatpush1.msra.mxu0 0.0
      %710 = vmatprep.subr.mxu0 0.0
      %711 = vmatpush1.msra.mxu0 0.0
      %712 = vmatprep.subr.mxu0 0.0
      %713 = vmatpush1.msra.mxu0 0.0
      %714 = vmatprep.subr.mxu0 0.0
      %715 = vmatpush1.msra.mxu0 0.0
      %716 = vmatprep.subr.mxu0 0.0
      %717 = vmatpush1.msra.mxu0 0.0
      %718 = vmatprep.subr.mxu0 0.0
      %719 = vmatpush1.msra.mxu0 0.0
      %720 = vmatprep.subr.mxu0 0.0
      %721 = vmatpush1.msra.mxu0 0.0
      %722 = vmatprep.subr.mxu0 0.0
      %723 = vmatpush1.msra.mxu0 0.0
      %724 = vmatprep.subr.mxu0 0.0
      %725 = vmatpush1.msra.mxu0 0.0
      %726 = vmatprep.subr.mxu0 0.0
      %727 = vmatpush1.msra.mxu0 0.0
      %728 = vmatprep.subr.mxu0 0.0
      %729 = vmatpush1.msra.mxu0 0.0
      %730 = vmatprep.subr.mxu0 0.0
      %731 = vmatpush1.msra.mxu0 0.0
      %732 = vmatprep.subr.mxu0 0.0
      %733 = vmatpush1.msra.mxu0 0.0
      %734 = vmatprep.subr.mxu0 0.0
      %735 = vmatpush1.msra.mxu0 0.0
      %736 = vmatprep.subr.mxu0 0.0
      %737 = vmatpush1.msra.mxu0 0.0
      %738 = vmatprep.subr.mxu0 0.0
      %739 = vmatpush1.msra.mxu0 0.0
      %740 = vmatprep.subr.mxu0 0.0
      %741 = vmatpush1.msra.mxu0 0.0
      %742 = vmatprep.subr.mxu0 0.0
      %743 = vmatpush1.msra.mxu0 0.0
      %744 = vmatprep.subr.mxu0 0.0
      %745 = vmatpush1.msra.mxu0 0.0
      %746 = vmatprep.subr.mxu0 0.0
      %747 = vmatpush1.msra.mxu0 0.0
      %748 = vmatprep.subr.mxu0 0.0
      %749 = vmatpush1.msra.mxu0 0.0
      %750 = vmatprep.subr.mxu0 0.0
      %751 = vmatpush1.msra.mxu0 0.0
      %752 = vmatprep.subr.mxu0 0.0
      %753 = vmatpush1.msra.mxu0 0.0
      %754 = vmatprep.subr.mxu0 0.0
      %755 = vmatpush1.msra.mxu0 0.0
      %756 = vmatprep.subr.mxu0 0.0
      %757 = vmatpush1.msra.mxu0 0.0
      %758 = vmatprep.subr.mxu0 0.0
      %759 = vmatpush1.msra.mxu0 0.0
      %760 = vmatprep.mubr.f32.mxu0 0.0
      %761 = vmatmul.mubr.f32.gmra.mrb[0].mxu0 %v694
      %v762 = vpop.f32.mrb[0].mxu0
      %v763 = vadd.f32 0.0, %v762
      %v764 = vpop.f32.mrb[0].mxu0
      %765 = vdwg.mxu0
      %v766 = vadd.f32 %v687, %v763
      %s767 = scalar_lea.vmem %s3, 32
      %v768 = vld [vmem:[%s767] sm:$0xff]
      %769 = vrot.lane.b32.xlu0 %v455, 117
      %v770 = vpop.permute.xlu0 %769
      %v773 = vsel %vm462, %v768, 0
      %775 = vmatprep.subr.mxu0 0.0
      %776 = vmatpush1.msra.mxu0 %v770
      %777 = vmatprep.subr.mxu0 0.0
      %778 = vmatpush1.msra.mxu0 0.0
      %779 = vmatprep.subr.mxu0 0.0
      %780 = vmatpush1.msra.mxu0 0.0
      %781 = vmatprep.subr.mxu0 0.0
      %782 = vmatpush1.msra.mxu0 0.0
      %783 = vmatprep.subr.mxu0 0.0
      %784 = vmatpush1.msra.mxu0 0.0
      %785 = vmatprep.subr.mxu0 0.0
      %786 = vmatpush1.msra.mxu0 0.0
      %787 = vmatprep.subr.mxu0 0.0
      %788 = vmatpush1.msra.mxu0 0.0
      %789 = vmatprep.subr.mxu0 0.0
      %790 = vmatpush1.msra.mxu0 0.0
      %791 = vmatprep.subr.mxu0 0.0
      %792 = vmatpush1.msra.mxu0 0.0
      %793 = vmatprep.subr.mxu0 0.0
      %794 = vmatpush1.msra.mxu0 0.0
      %795 = vmatprep.subr.mxu0 0.0
      %796 = vmatpush1.msra.mxu0 0.0
      %797 = vmatprep.subr.mxu0 0.0
      %798 = vmatpush1.msra.mxu0 0.0
      %799 = vmatprep.subr.mxu0 0.0
      %800 = vmatpush1.msra.mxu0 0.0
      %801 = vmatprep.subr.mxu0 0.0
      %802 = vmatpush1.msra.mxu0 0.0
      %803 = vmatprep.subr.mxu0 0.0
      %804 = vmatpush1.msra.mxu0 0.0
      %805 = vmatprep.subr.mxu0 0.0
      %806 = vmatpush1.msra.mxu0 0.0
      %807 = vmatprep.subr.mxu0 0.0
      %808 = vmatpush1.msra.mxu0 0.0
      %809 = vmatprep.subr.mxu0 0.0
      %810 = vmatpush1.msra.mxu0 0.0
      %811 = vmatprep.subr.mxu0 0.0
      %812 = vmatpush1.msra.mxu0 0.0
      %813 = vmatprep.subr.mxu0 0.0
      %814 = vmatpush1.msra.mxu0 0.0
      %815 = vmatprep.subr.mxu0 0.0
      %816 = vmatpush1.msra.mxu0 0.0
      %817 = vmatprep.subr.mxu0 0.0
      %818 = vmatpush1.msra.mxu0 0.0
      %819 = vmatprep.subr.mxu0 0.0
      %820 = vmatpush1.msra.mxu0 0.0
      %821 = vmatprep.subr.mxu0 0.0
      %822 = vmatpush1.msra.mxu0 0.0
      %823 = vmatprep.subr.mxu0 0.0
      %824 = vmatpush1.msra.mxu0 0.0
      %825 = vmatprep.subr.mxu0 0.0
      %826 = vmatpush1.msra.mxu0 0.0
      %827 = vmatprep.subr.mxu0 0.0
      %828 = vmatpush1.msra.mxu0 0.0
      %829 = vmatprep.subr.mxu0 0.0
      %830 = vmatpush1.msra.mxu0 0.0
      %831 = vmatprep.subr.mxu0 0.0
      %832 = vmatpush1.msra.mxu0 0.0
      %833 = vmatprep.subr.mxu0 0.0
      %834 = vmatpush1.msra.mxu0 0.0
      %835 = vmatprep.subr.mxu0 0.0
      %836 = vmatpush1.msra.mxu0 0.0
      %837 = vmatprep.subr.mxu0 0.0
      %838 = vmatpush1.msra.mxu0 0.0
      %839 = vmatprep.mubr.f32.mxu0 0.0
      %840 = vmatmul.mubr.f32.gmra.mrb[0].mxu0 %v773
      %v841 = vpop.f32.mrb[0].mxu0
      %v842 = vadd.f32 0.0, %v841
      %v843 = vpop.f32.mrb[0].mxu0
      %844 = vdwg.mxu0
      %v845 = vadd.f32 %v766, %v842
      %s846 = scalar_lea.vmem %s3, 40
      %v847 = vld [vmem:[%s846] sm:$0xff]
      %848 = vrot.lane.b32.xlu0 %v455, 116
      %v849 = vpop.permute.xlu0 %848
      %v852 = vsel %vm462, %v847, 0
      %854 = vmatprep.subr.mxu0 0.0
      %855 = vmatpush1.msra.mxu0 %v849
      %856 = vmatprep.subr.mxu0 0.0
      %857 = vmatpush1.msra.mxu0 0.0
      %858 = vmatprep.subr.mxu0 0.0
      %859 = vmatpush1.msra.mxu0 0.0
      %860 = vmatprep.subr.mxu0 0.0
      %861 = vmatpush1.msra.mxu0 0.0
      %862 = vmatprep.subr.mxu0 0.0
      %863 = vmatpush1.msra.mxu0 0.0
      %864 = vmatprep.subr.mxu0 0.0
      %865 = vmatpush1.msra.mxu0 0.0
      %866 = vmatprep.subr.mxu0 0.0
      %867 = vmatpush1.msra.mxu0 0.0
      %868 = vmatprep.subr.mxu0 0.0
      %869 = vmatpush1.msra.mxu0 0.0
      %870 = vmatprep.subr.mxu0 0.0
      %871 = vmatpush1.msra.mxu0 0.0
      %872 = vmatprep.subr.mxu0 0.0
      %873 = vmatpush1.msra.mxu0 0.0
      %874 = vmatprep.subr.mxu0 0.0
      %875 = vmatpush1.msra.mxu0 0.0
      %876 = vmatprep.subr.mxu0 0.0
      %877 = vmatpush1.msra.mxu0 0.0
      %878 = vmatprep.subr.mxu0 0.0
      %879 = vmatpush1.msra.mxu0 0.0
      %880 = vmatprep.subr.mxu0 0.0
      %881 = vmatpush1.msra.mxu0 0.0
      %882 = vmatprep.subr.mxu0 0.0
      %883 = vmatpush1.msra.mxu0 0.0
      %884 = vmatprep.subr.mxu0 0.0
      %885 = vmatpush1.msra.mxu0 0.0
      %886 = vmatprep.subr.mxu0 0.0
      %887 = vmatpush1.msra.mxu0 0.0
      %888 = vmatprep.subr.mxu0 0.0
      %889 = vmatpush1.msra.mxu0 0.0
      %890 = vmatprep.subr.mxu0 0.0
      %891 = vmatpush1.msra.mxu0 0.0
      %892 = vmatprep.subr.mxu0 0.0
      %893 = vmatpush1.msra.mxu0 0.0
      %894 = vmatprep.subr.mxu0 0.0
      %895 = vmatpush1.msra.mxu0 0.0
      %896 = vmatprep.subr.mxu0 0.0
      %897 = vmatpush1.msra.mxu0 0.0
      %898 = vmatprep.subr.mxu0 0.0
      %899 = vmatpush1.msra.mxu0 0.0
      %900 = vmatprep.subr.mxu0 0.0
      %901 = vmatpush1.msra.mxu0 0.0
      %902 = vmatprep.subr.mxu0 0.0
      %903 = vmatpush1.msra.mxu0 0.0
      %904 = vmatprep.subr.mxu0 0.0
      %905 = vmatpush1.msra.mxu0 0.0
      %906 = vmatprep.subr.mxu0 0.0
      %907 = vmatpush1.msra.mxu0 0.0
      %908 = vmatprep.subr.mxu0 0.0
      %909 = vmatpush1.msra.mxu0 0.0
      %910 = vmatprep.subr.mxu0 0.0
      %911 = vmatpush1.msra.mxu0 0.0
      %912 = vmatprep.subr.mxu0 0.0
      %913 = vmatpush1.msra.mxu0 0.0
      %914 = vmatprep.subr.mxu0 0.0
      %915 = vmatpush1.msra.mxu0 0.0
      %916 = vmatprep.subr.mxu0 0.0
      %917 = vmatpush1.msra.mxu0 0.0
      %918 = vmatprep.mubr.f32.mxu0 0.0
      %919 = vmatmul.mubr.f32.gmra.mrb[0].mxu0 %v852
      %v920 = vpop.f32.mrb[0].mxu0
      %v921 = vadd.f32 0.0, %v920
      %v922 = vpop.f32.mrb[0].mxu0
      %923 = vdwg.mxu0
      %v924 = vadd.f32 %v845, %v921
      %s925 = scalar_lea.vmem %s3, 48
      %v926 = vld [vmem:[%s925] sm:$0xff]
      %927 = vrot.lane.b32.xlu0 %v455, 108
      %v928 = vpop.permute.xlu0 %927
      %v931 = vsel %vm462, %v926, 0
      %933 = vmatprep.subr.mxu0 0.0
      %934 = vmatpush1.msra.mxu0 %v928
      %935 = vmatprep.subr.mxu0 0.0
      %936 = vmatpush1.msra.mxu0 0.0
      %937 = vmatprep.subr.mxu0 0.0
      %938 = vmatpush1.msra.mxu0 0.0
      %939 = vmatprep.subr.mxu0 0.0
      %940 = vmatpush1.msra.mxu0 0.0
      %941 = vmatprep.subr.mxu0 0.0
      %942 = vmatpush1.msra.mxu0 0.0
      %943 = vmatprep.subr.mxu0 0.0
      %944 = vmatpush1.msra.mxu0 0.0
      %945 = vmatprep.subr.mxu0 0.0
      %946 = vmatpush1.msra.mxu0 0.0
      %947 = vmatprep.subr.mxu0 0.0
      %948 = vmatpush1.msra.mxu0 0.0
      %949 = vmatprep.subr.mxu0 0.0
      %950 = vmatpush1.msra.mxu0 0.0
      %951 = vmatprep.subr.mxu0 0.0
      %952 = vmatpush1.msra.mxu0 0.0
      %953 = vmatprep.subr.mxu0 0.0
      %954 = vmatpush1.msra.mxu0 0.0
      %955 = vmatprep.subr.mxu0 0.0
      %956 = vmatpush1.msra.mxu0 0.0
      %957 = vmatprep.subr.mxu0 0.0
      %958 = vmatpush1.msra.mxu0 0.0
      %959 = vmatprep.subr.mxu0 0.0
      %960 = vmatpush1.msra.mxu0 0.0
      %961 = vmatprep.subr.mxu0 0.0
      %962 = vmatpush1.msra.mxu0 0.0
      %963 = vmatprep.subr.mxu0 0.0
      %964 = vmatpush1.msra.mxu0 0.0
      %965 = vmatprep.subr.mxu0 0.0
      %966 = vmatpush1.msra.mxu0 0.0
      %967 = vmatprep.subr.mxu0 0.0
      %968 = vmatpush1.msra.mxu0 0.0
      %969 = vmatprep.subr.mxu0 0.0
      %970 = vmatpush1.msra.mxu0 0.0
      %971 = vmatprep.subr.mxu0 0.0
      %972 = vmatpush1.msra.mxu0 0.0
      %973 = vmatprep.subr.mxu0 0.0
      %974 = vmatpush1.msra.mxu0 0.0
      %975 = vmatprep.subr.mxu0 0.0
      %976 = vmatpush1.msra.mxu0 0.0
      %977 = vmatprep.subr.mxu0 0.0
      %978 = vmatpush1.msra.mxu0 0.0
      %979 = vmatprep.subr.mxu0 0.0
      %980 = vmatpush1.msra.mxu0 0.0
      %981 = vmatprep.subr.mxu0 0.0
      %982 = vmatpush1.msra.mxu0 0.0
      %983 = vmatprep.subr.mxu0 0.0
      %984 = vmatpush1.msra.mxu0 0.0
      %985 = vmatprep.subr.mxu0 0.0
      %986 = vmatpush1.msra.mxu0 0.0
      %987 = vmatprep.subr.mxu0 0.0
      %988 = vmatpush1.msra.mxu0 0.0
      %989 = vmatprep.subr.mxu0 0.0
      %990 = vmatpush1.msra.mxu0 0.0
      %991 = vmatprep.subr.mxu0 0.0
      %992 = vmatpush1.msra.mxu0 0.0
      %993 = vmatprep.subr.mxu0 0.0
      %994 = vmatpush1.msra.mxu0 0.0
      %995 = vmatprep.subr.mxu0 0.0
      %996 = vmatpush1.msra.mxu0 0.0
      %997 = vmatprep.mubr.f32.mxu0 0.0
      %998 = vmatmul.mubr.f32.gmra.mrb[0].mxu0 %v931
      %v999 = vpop.f32.mrb[0].mxu0
      %v1000 = vadd.f32 0.0, %v999
      %v1001 = vpop.f32.mrb[0].mxu0
      %1002 = vdwg.mxu0
      %v1003 = vadd.f32 %v924, %v1000
      %s1004 = scalar_lea.vmem %s3, 56
      %v1005 = vld [vmem:[%s1004] sm:$0xff]
      %1006 = vrot.lane.b32.xlu0 %v455, 107
      %v1007 = vpop.permute.xlu0 %1006
      %v1010 = vsel %vm462, %v1005, 0
      %1012 = vmatprep.subr.mxu0 0.0
      %1013 = vmatpush1.msra.mxu0 %v1007
      %1014 = vmatprep.subr.mxu0 0.0
      %1015 = vmatpush1.msra.mxu0 0.0
      %1016 = vmatprep.subr.mxu0 0.0
      %1017 = vmatpush1.msra.mxu0 0.0
      %1018 = vmatprep.subr.mxu0 0.0
      %1019 = vmatpush1.msra.mxu0 0.0
      %1020 = vmatprep.subr.mxu0 0.0
      %1021 = vmatpush1.msra.mxu0 0.0
      %1022 = vmatprep.subr.mxu0 0.0
      %1023 = vmatpush1.msra.mxu0 0.0
      %1024 = vmatprep.subr.mxu0 0.0
      %1025 = vmatpush1.msra.mxu0 0.0
      %1026 = vmatprep.subr.mxu0 0.0
      %1027 = vmatpush1.msra.mxu0 0.0
      %1028 = vmatprep.subr.mxu0 0.0
      %1029 = vmatpush1.msra.mxu0 0.0
      %1030 = vmatprep.subr.mxu0 0.0
      %1031 = vmatpush1.msra.mxu0 0.0
      %1032 = vmatprep.subr.mxu0 0.0
      %1033 = vmatpush1.msra.mxu0 0.0
      %1034 = vmatprep.subr.mxu0 0.0
      %1035 = vmatpush1.msra.mxu0 0.0
      %1036 = vmatprep.subr.mxu0 0.0
      %1037 = vmatpush1.msra.mxu0 0.0
      %1038 = vmatprep.subr.mxu0 0.0
      %1039 = vmatpush1.msra.mxu0 0.0
      %1040 = vmatprep.subr.mxu0 0.0
      %1041 = vmatpush1.msra.mxu0 0.0
      %1042 = vmatprep.subr.mxu0 0.0
      %1043 = vmatpush1.msra.mxu0 0.0
      %1044 = vmatprep.subr.mxu0 0.0
      %1045 = vmatpush1.msra.mxu0 0.0
      %1046 = vmatprep.subr.mxu0 0.0
      %1047 = vmatpush1.msra.mxu0 0.0
      %1048 = vmatprep.subr.mxu0 0.0
      %1049 = vmatpush1.msra.mxu0 0.0
      %1050 = vmatprep.subr.mxu0 0.0
      %1051 = vmatpush1.msra.mxu0 0.0
      %1052 = vmatprep.subr.mxu0 0.0
      %1053 = vmatpush1.msra.mxu0 0.0
      %1054 = vmatprep.subr.mxu0 0.0
      %1055 = vmatpush1.msra.mxu0 0.0
      %1056 = vmatprep.subr.mxu0 0.0
      %1057 = vmatpush1.msra.mxu0 0.0
      %1058 = vmatprep.subr.mxu0 0.0
      %1059 = vmatpush1.msra.mxu0 0.0
      %1060 = vmatprep.subr.mxu0 0.0
      %1061 = vmatpush1.msra.mxu0 0.0
      %1062 = vmatprep.subr.mxu0 0.0
      %1063 = vmatpush1.msra.mxu0 0.0
      %1064 = vmatprep.subr.mxu0 0.0
      %1065 = vmatpush1.msra.mxu0 0.0
      %1066 = vmatprep.subr.mxu0 0.0
      %1067 = vmatpush1.msra.mxu0 0.0
      %1068 = vmatprep.subr.mxu0 0.0
      %1069 = vmatpush1.msra.mxu0 0.0
      %1070 = vmatprep.subr.mxu0 0.0
      %1071 = vmatpush1.msra.mxu0 0.0
      %1072 = vmatprep.subr.mxu0 0.0
      %1073 = vmatpush1.msra.mxu0 0.0
      %1074 = vmatprep.subr.mxu0 0.0
      %1075 = vmatpush1.msra.mxu0 0.0
      %1076 = vmatprep.mubr.f32.mxu0 0.0
      %1077 = vmatmul.mubr.f32.gmra.mrb[0].mxu0 %v1010
      %v1078 = vpop.f32.mrb[0].mxu0
      %v1079 = vadd.f32 0.0, %v1078
      %v1080 = vpop.f32.mrb[0].mxu0
      %1081 = vdwg.mxu0
      %v1082 = vadd.f32 %v1003, %v1079
      %s1083 = scalar_lea.vmem %s3, 64
      %v1084 = vld [vmem:[%s1083] sm:$0xff]
      %1085 = vrot.lane.b32.xlu0 %v455, 106
      %v1086 = vpop.permute.xlu0 %1085
      %v1089 = vsel %vm462, %v1084, 0
      %1091 = vmatprep.subr.mxu0 0.0
      %1092 = vmatpush1.msra.mxu0 %v1086
      %1093 = vmatprep.subr.mxu0 0.0
      %1094 = vmatpush1.msra.mxu0 0.0
      %1095 = vmatprep.subr.mxu0 0.0
      %1096 = vmatpush1.msra.mxu0 0.0
      %1097 = vmatprep.subr.mxu0 0.0
      %1098 = vmatpush1.msra.mxu0 0.0
      %1099 = vmatprep.subr.mxu0 0.0
      %1100 = vmatpush1.msra.mxu0 0.0
      %1101 = vmatprep.subr.mxu0 0.0
      %1102 = vmatpush1.msra.mxu0 0.0
      %1103 = vmatprep.subr.mxu0 0.0
      %1104 = vmatpush1.msra.mxu0 0.0
      %1105 = vmatprep.subr.mxu0 0.0
      %1106 = vmatpush1.msra.mxu0 0.0
      %1107 = vmatprep.subr.mxu0 0.0
      %1108 = vmatpush1.msra.mxu0 0.0
      %1109 = vmatprep.subr.mxu0 0.0
      %1110 = vmatpush1.msra.mxu0 0.0
      %1111 = vmatprep.subr.mxu0 0.0
      %1112 = vmatpush1.msra.mxu0 0.0
      %1113 = vmatprep.subr.mxu0 0.0
      %1114 = vmatpush1.msra.mxu0 0.0
      %1115 = vmatprep.subr.mxu0 0.0
      %1116 = vmatpush1.msra.mxu0 0.0
      %1117 = vmatprep.subr.mxu0 0.0
      %1118 = vmatpush1.msra.mxu0 0.0
      %1119 = vmatprep.subr.mxu0 0.0
      %1120 = vmatpush1.msra.mxu0 0.0
      %1121 = vmatprep.subr.mxu0 0.0
      %1122 = vmatpush1.msra.mxu0 0.0
      %1123 = vmatprep.subr.mxu0 0.0
      %1124 = vmatpush1.msra.mxu0 0.0
      %1125 = vmatprep.subr.mxu0 0.0
      %1126 = vmatpush1.msra.mxu0 0.0
      %1127 = vmatprep.subr.mxu0 0.0
      %1128 = vmatpush1.msra.mxu0 0.0
      %1129 = vmatprep.subr.mxu0 0.0
      %1130 = vmatpush1.msra.mxu0 0.0
      %1131 = vmatprep.subr.mxu0 0.0
      %1132 = vmatpush1.msra.mxu0 0.0
      %1133 = vmatprep.subr.mxu0 0.0
      %1134 = vmatpush1.msra.mxu0 0.0
      %1135 = vmatprep.subr.mxu0 0.0
      %1136 = vmatpush1.msra.mxu0 0.0
      %1137 = vmatprep.subr.mxu0 0.0
      %1138 = vmatpush1.msra.mxu0 0.0
      %1139 = vmatprep.subr.mxu0 0.0
      %1140 = vmatpush1.msra.mxu0 0.0
      %1141 = vmatprep.subr.mxu0 0.0
      %1142 = vmatpush1.msra.mxu0 0.0
      %1143 = vmatprep.subr.mxu0 0.0
      %1144 = vmatpush1.msra.mxu0 0.0
      %1145 = vmatprep.subr.mxu0 0.0
      %1146 = vmatpush1.msra.mxu0 0.0
      %1147 = vmatprep.subr.mxu0 0.0
      %1148 = vmatpush1.msra.mxu0 0.0
      %1149 = vmatprep.subr.mxu0 0.0
      %1150 = vmatpush1.msra.mxu0 0.0
      %1151 = vmatprep.subr.mxu0 0.0
      %1152 = vmatpush1.msra.mxu0 0.0
      %1153 = vmatprep.subr.mxu0 0.0
      %1154 = vmatpush1.msra.mxu0 0.0
      %1155 = vmatprep.mubr.f32.mxu0 0.0
      %1156 = vmatmul.mubr.f32.gmra.mrb[0].mxu0 %v1089
      %v1157 = vpop.f32.mrb[0].mxu0
      %v1158 = vadd.f32 0.0, %v1157
      %v1159 = vpop.f32.mrb[0].mxu0
      %1160 = vdwg.mxu0
      %v1161 = vadd.f32 %v1082, %v1158
      %v1162 = vld [vmem:[%s4] sm:$0xff]
      %1164 = vset.pattern.permute.xlu0 0
      %1165 = vperm.xlu0 %1164, %v1162
      %v1166 = vpop.permute.xlu0 %1165
      %v1168 = vadd.f32 %v1161, %v1166
      %vm1169 = vcmask 637952
      %1170 = vst.msk [vmem:[%s313] sm:$0xff] %vm1169, %v1168
      %vm1171 = vcmask 654960
      %1172 = vst.msk [vmem:[%s313] sm:$0xff] %vm1171, 0.0
      %v1173 = vld [vmem:[%s5] sm:$0x1]
      %v1175 = vlaneseq
      %v1176 = vshrl.u32 %v1175, 7
      %v1177 = vsub.s32 0, %v1176
      %v1178 = vrot.slane %v1173, %v1177
      %v1180 = vmul.f32 %v1168, %v1178
      %v1181 = vsel %vm1169, %v1180, 0.0
      %1182 = vadd.xlane.f32.xlu0 %v1181
      %v1183 = vpop.xlane.xlu0 %1182
      %1184 = vst.msk [vmem:[%s317] sm:$0xff] %vm348, %v1183
      %v1185 = vmul.f32 %v1168, %v1168
      %v1186 = vmul.f32 %v1185, %v1178
      %v1187 = vsel %vm1169, %v1186, 0.0
      %1188 = vadd.xlane.f32.xlu0 %v1187
      %v1189 = vpop.xlane.xlu0 %1188
      %1190 = vst.msk [vmem:[%s321] sm:$0xff] %vm348, %v1189
      %p1191 = scmp.lt.s32.totalorder %s20, 1
      %s1192 = scalar_select %p1191, %s20, 1
      %s1193 = smul.addr %s1192, 8
      %s1194 = scalar_lea.vmem %s6, %s1193
      %p1195 = scmp.lt.s32.totalorder %s20, 1
      %s1196 = scalar_select %p1195, %s20, 1
      %s1197 = smul.addr %s1196, 8
      %s1198 = scalar_lea.vmem %s7, %s1197
      %p1199 = scmp.lt.s32.totalorder %s20, 1
      %s1200 = scalar_select %p1199, %s20, 1
      %s1201 = smul.addr %s1200, 8
      %s1202 = scalar_lea.vmem %s8, %s1201
      // Predicated region
      $region45: #{downup_forward.4} parent=43 // pred_check
        %p1203 = pneg %p169
      $region46: #{downup_forward.4} parent=43 // pred_check_branch
        %1205 = sbr.rel (%p1203) target = $region48
      $region47: #{downup_forward.4} parent=43 // pred_region
        _
      $region48: #{downup_forward.4} parent=43 // pred_fallthru
        _
      // Predicated region
      $region49: #{downup_forward.4} parent=43 // pred_check
        %p1206 = pneg %p195
      $region50: #{downup_forward.4} parent=43 // pred_check_branch
        %1208 = sbr.rel (%p1206) target = $region52
      $region51: #{downup_forward.4} parent=43 // pred_region
        _
      $region52: #{downup_forward.4} parent=43 // pred_fallthru
        _
      // Predicated region
      $region53: #{downup_forward.4} parent=43 // pred_check
        %p1209 = pneg %p221
      $region54: #{downup_forward.4} parent=43 // pred_check_branch
        %1211 = sbr.rel (%p1209) target = $region56
      $region55: #{downup_forward.4} parent=43 // pred_region
        _
      $region56: #{downup_forward.4} parent=43 // pred_fallthru
        _
    $region44: #{downup_forward.4} parent=5 // pred_fallthru
      _
    %p1212 = scmp.le.s32.totalorder 2, %s15
    // Predicated region
    $region57: #{downup_forward.4} parent=5 // pred_check
      %p1213 = pneg %p1212
    $region58: #{downup_forward.4} parent=5 // pred_check_branch
      %1215 = sbr.rel (%p1213) target = $region60
    $region59: #{downup_forward.4} parent=5 // pred_region
      %s1216 = ssub.s32 %s15, 2
      // Predicated region
      $region61: #{downup_forward.4} parent=59 // pred_check
        %p1217 = pneg %p175
      $region62: #{downup_forward.4} parent=59 // pred_check_branch
        %1219 = sbr.rel (%p1217) target = $region64
      $region63: #{downup_forward.4} parent=59 // pred_region
        %p1220 = scmp.lt.s32.totalorder %s21, 1
        %s1221 = scalar_select %p1220, %s21, 1
        %s1222 = smul.addr %s1221, 8
        %s1223 = scalar_lea.vmem %s6, %s1222
      $region64: #{downup_forward.4} parent=59 // pred_fallthru
        _
      // Predicated region
      $region65: #{downup_forward.4} parent=59 // pred_check
        %p1224 = pneg %p201
      $region66: #{downup_forward.4} parent=59 // pred_check_branch
        %1226 = sbr.rel (%p1224) target = $region68
      $region67: #{downup_forward.4} parent=59 // pred_region
        %p1227 = scmp.lt.s32.totalorder %s21, 1
        %s1228 = scalar_select %p1227, %s21, 1
        %s1229 = smul.addr %s1228, 8
        %s1230 = scalar_lea.vmem %s7, %s1229
      $region68: #{downup_forward.4} parent=59 // pred_fallthru
        _
      // Predicated region
      $region69: #{downup_forward.4} parent=59 // pred_check
        %p1231 = pneg %p227
      $region70: #{downup_forward.4} parent=59 // pred_check_branch
        %1233 = sbr.rel (%p1231) target = $region72
      $region71: #{downup_forward.4} parent=59 // pred_region
        %p1234 = scmp.lt.s32.totalorder %s21, 1
        %s1235 = scalar_select %p1234, %s21, 1
        %s1236 = smul.addr %s1235, 8
        %s1237 = scalar_lea.vmem %s8, %s1236
      $region72: #{downup_forward.4} parent=59 // pred_fallthru
        _
    $region60: #{downup_forward.4} parent=5 // pred_fallthru
      _
  $region6: #{downup_forward.4} parent=0 // loop_footer
    %s19 = sadd.s32 1, %s15
  $region7: #{downup_forward.4} parent=0 // loop_footer_branch
    %14 = sbr.rel target = $region3
  $region8: #{downup_forward.4} parent=0 // loop_exit
    _

// kernel: downup_forward.3
$region0: #{downup_forward.3}
  #allocation0 [shape = 'u32[]', space=smem, size = 0x4, offset = 0x4, fixed_abs, tag = 'smem constant byte address 0x4 - core index']
  #allocation1 [shape = 'u32[144,128]{1,0:T(1,128)}', space=vmem, size = 0x12000, scoped, tag = 'internal scratch']
  %s0 = inlined_call_operand.vmem [shape: f32[2,4,81], index: 0, kind: input, shape index: {}]
  %s1 = inlined_call_operand.vmem [shape: f32[2,4,81], index: 1, kind: input, shape index: {}]
  %s2 = inlined_call_operand.vmem [shape: f32[2,4,81], index: 2, kind: input, shape index: {}]
  %s3 = inlined_call_operand.vmem [shape: f32[2,4,81], index: 3, kind: input, shape index: {}]
  %s4 = inlined_call_operand.vmem [shape: f32[9,8,4], index: 4, kind: input, shape index: {}]
  %s5 = inlined_call_operand.vmem [shape: f32[8,1], index: 5, kind: input, shape index: {}]
  %s6 = inlined_call_operand.vmem [shape: f32[1,71], index: 6, kind: input, shape index: {}]
  %s7 = inlined_call_operand.vmem [shape: f32[2,8,71], index: 7, kind: output, shape index: {0}]
  %s8 = inlined_call_operand.vmem [shape: f32[2,8,1], index: 8, kind: output, shape index: {1}]
  %s9 = inlined_call_operand.vmem [shape: f32[2,8,1], index: 9, kind: output, shape index: {2}]
  %10 = xla_tuple %s7, %s8, %s9
  %s11 = sld [smem:[#allocation0]]
  $region77: #{downup_forward.3} parent=0
    _
  %s13 = ssub.s32 1, %s11
  %s14 = scalar_select 0, %s13, %s11
  loop: start=0, step=1, limit=4
  $region2: #{downup_forward.3} parent=0 // loop_pre_header
    _
  $region3: #{downup_forward.3} parent=0 // loop_header
    %s16 = sphi 0, %s20
    %p17 = scmp.ge.s32.totalorder %s16, 4
    %s26 = sphi 0, %s28
    %s29 = sphi 0, %s26
    %s30 = sphi 0, %s29
    %s46 = sphi 0, %s30
    %s52 = sphi 0, %s54
    %s55 = sphi 0, %s52
    %s56 = sphi 0, %s55
    %s72 = sphi 0, %s56
    %s78 = sphi 0, %s80
    %s81 = sphi 0, %s78
    %s82 = sphi 0, %s81
    %s98 = sphi 0, %s82
    %s104 = sphi 0, %s106
    %s107 = sphi 0, %s104
    %s108 = sphi 0, %s107
    %s124 = sphi 0, %s108
    %s128 = sphi 0, %s128
    %s130 = sphi 0, %s128
    %s131 = sphi 0, %s130
    %s145 = sphi 0, %s131
    %s149 = sphi 0, %s149
    %s151 = sphi 0, %s149
    %s152 = sphi 0, %s151
    %s166 = sphi 0, %s152
    %s170 = sphi 0, %s170
    %s172 = sphi 0, %s170
    %s173 = sphi 0, %s172
    %s187 = sphi 0, %s173
    %s193 = sphi 0, %s195
    %s196 = sphi 0, %s193
    %s197 = sphi 0, %s196
    %s213 = sphi 0, %s197
    %s219 = sphi 0, %s221
    %s222 = sphi 0, %s219
    %s223 = sphi 0, %s222
    %s239 = sphi 0, %s223
    %s245 = sphi 0, %s247
    %s248 = sphi 0, %s245
    %s249 = sphi 0, %s248
    %s265 = sphi 0, %s249
  $region4: #{downup_forward.3} parent=0 // loop_header_branch
    %19 = sbr.rel (%p17) target = $region8
  $region5: #{downup_forward.3} parent=0 // loop_body
    %s21 = ssub.s32 %s16, 1
    %s22 = ssub.s32 %s16, 2
    %s23 = sadd.s32 %s16, 1
    %s24 = ssub.s32 %s16, %s23
    %p25 = scmp.eq.s32.totalorder %s24, 0
    %s27 = sadd.s32 %s26, 1
    %s28 = scalar_select %p25, %s26, %s27
    %p31 = pneg %p25
    %p32 = scmp.eq.s32.totalorder %s16, 1
    %p33 = por %p31, %p32
    %p34 = scmp.ne.s32.totalorder %s26, %s29
    %p35 = scmp.eq.s32.totalorder %s16, 0
    %p36 = por %p34, %p35
    %p37 = scmp.ne.s32.totalorder %s26, %s29
    %p38 = scmp.eq.s32.totalorder %s21, 1
    %p39 = por %p37, %p38
    %p40 = scmp.ne.s32.totalorder %s29, %s30
    %p41 = scmp.eq.s32.totalorder %s21, 0
    %p42 = por %p40, %p41
    %p43 = scmp.ne.s32.totalorder %s29, %s30
    %p44 = scmp.eq.s32.totalorder %s22, 1
    %p45 = por %p43, %p44
    %p47 = scmp.ne.s32.totalorder %s30, %s46
    %p48 = scmp.eq.s32.totalorder %s22, 0
    %p49 = por %p47, %p48
    %s50 = ssub.s32 %s16, %s23
    %p51 = scmp.eq.s32.totalorder %s50, 0
    %s53 = sadd.s32 %s52, 1
    %s54 = scalar_select %p51, %s52, %s53
    %p57 = pneg %p51
    %p58 = scmp.eq.s32.totalorder %s16, 1
    %p59 = por %p57, %p58
    %p60 = scmp.ne.s32.totalorder %s52, %s55
    %p61 = scmp.eq.s32.totalorder %s16, 0
    %p62 = por %p60, %p61
    %p63 = scmp.ne.s32.totalorder %s52, %s55
    %p64 = scmp.eq.s32.totalorder %s21, 1
    %p65 = por %p63, %p64
    %p66 = scmp.ne.s32.totalorder %s55, %s56
    %p67 = scmp.eq.s32.totalorder %s21, 0
    %p68 = por %p66, %p67
    %p69 = scmp.ne.s32.totalorder %s55, %s56
    %p70 = scmp.eq.s32.totalorder %s22, 1
    %p71 = por %p69, %p70
    %p73 = scmp.ne.s32.totalorder %s56, %s72
    %p74 = scmp.eq.s32.totalorder %s22, 0
    %p75 = por %p73, %p74
    %s76 = ssub.s32 %s16, %s23
    %p77 = scmp.eq.s32.totalorder %s76, 0
    %s79 = sadd.s32 %s78, 1
    %s80 = scalar_select %p77, %s78, %s79
    %p83 = pneg %p77
    %p84 = scmp.eq.s32.totalorder %s16, 1
    %p85 = por %p83, %p84
    %p86 = scmp.ne.s32.totalorder %s78, %s81
    %p87 = scmp.eq.s32.totalorder %s16, 0
    %p88 = por %p86, %p87
    %p89 = scmp.ne.s32.totalorder %s78, %s81
    %p90 = scmp.eq.s32.totalorder %s21, 1
    %p91 = por %p89, %p90
    %p92 = scmp.ne.s32.totalorder %s81, %s82
    %p93 = scmp.eq.s32.totalorder %s21, 0
    %p94 = por %p92, %p93
    %p95 = scmp.ne.s32.totalorder %s81, %s82
    %p96 = scmp.eq.s32.totalorder %s22, 1
    %p97 = por %p95, %p96
    %p99 = scmp.ne.s32.totalorder %s82, %s98
    %p100 = scmp.eq.s32.totalorder %s22, 0
    %p101 = por %p99, %p100
    %s102 = ssub.s32 %s16, %s23
    %p103 = scmp.eq.s32.totalorder %s102, 0
    %s105 = sadd.s32 %s104, 1
    %s106 = scalar_select %p103, %s104, %s105
    %p109 = pneg %p103
    %p110 = scmp.eq.s32.totalorder %s16, 1
    %p111 = por %p109, %p110
    %p112 = scmp.ne.s32.totalorder %s104, %s107
    %p113 = scmp.eq.s32.totalorder %s16, 0
    %p114 = por %p112, %p113
    %p115 = scmp.ne.s32.totalorder %s104, %s107
    %p116 = scmp.eq.s32.totalorder %s21, 1
    %p117 = por %p115, %p116
    %p118 = scmp.ne.s32.totalorder %s107, %s108
    %p119 = scmp.eq.s32.totalorder %s21, 0
    %p120 = por %p118, %p119
    %p121 = scmp.ne.s32.totalorder %s107, %s108
    %p122 = scmp.eq.s32.totalorder %s22, 1
    %p123 = por %p121, %p122
    %p125 = scmp.ne.s32.totalorder %s108, %s124
    %p126 = scmp.eq.s32.totalorder %s22, 0
    %p127 = por %p125, %p126
    %s129 = sadd.s32 %s128, 1
    %p132 = scmp.eq.s32.totalorder %s16, 1
    %p133 = scmp.ne.s32.totalorder %s128, %s130
    %p134 = scmp.eq.s32.totalorder %s16, 0
    %p135 = por %p133, %p134
    %p136 = scmp.ne.s32.totalorder %s128, %s130
    %p137 = scmp.eq.s32.totalorder %s21, 1
    %p138 = por %p136, %p137
    %p139 = scmp.ne.s32.totalorder %s130, %s131
    %p140 = scmp.eq.s32.totalorder %s21, 0
    %p141 = por %p139, %p140
    %p142 = scmp.ne.s32.totalorder %s130, %s131
    %p143 = scmp.eq.s32.totalorder %s22, 1
    %p144 = por %p142, %p143
    %p146 = scmp.ne.s32.totalorder %s131, %s145
    %p147 = scmp.eq.s32.totalorder %s22, 0
    %p148 = por %p146, %p147
    %s150 = sadd.s32 %s149, 1
    %p153 = scmp.eq.s32.totalorder %s16, 1
    %p154 = scmp.ne.s32.totalorder %s149, %s151
    %p155 = scmp.eq.s32.totalorder %s16, 0
    %p156 = por %p154, %p155
    %p157 = scmp.ne.s32.totalorder %s149, %s151
    %p158 = scmp.eq.s32.totalorder %s21, 1
    %p159 = por %p157, %p158
    %p160 = scmp.ne.s32.totalorder %s151, %s152
    %p161 = scmp.eq.s32.totalorder %s21, 0
    %p162 = por %p160, %p161
    %p163 = scmp.ne.s32.totalorder %s151, %s152
    %p164 = scmp.eq.s32.totalorder %s22, 1
    %p165 = por %p163, %p164
    %p167 = scmp.ne.s32.totalorder %s152, %s166
    %p168 = scmp.eq.s32.totalorder %s22, 0
    %p169 = por %p167, %p168
    %s171 = sadd.s32 %s170, 1
    %p174 = scmp.eq.s32.totalorder %s16, 1
    %p175 = scmp.ne.s32.totalorder %s170, %s172
    %p176 = scmp.eq.s32.totalorder %s16, 0
    %p177 = por %p175, %p176
    %p178 = scmp.ne.s32.totalorder %s170, %s172
    %p179 = scmp.eq.s32.totalorder %s21, 1
    %p180 = por %p178, %p179
    %p181 = scmp.ne.s32.totalorder %s172, %s173
    %p182 = scmp.eq.s32.totalorder %s21, 0
    %p183 = por %p181, %p182
    %p184 = scmp.ne.s32.totalorder %s172, %s173
    %p185 = scmp.eq.s32.totalorder %s22, 1
    %p186 = por %p184, %p185
    %p188 = scmp.ne.s32.totalorder %s173, %s187
    %p189 = scmp.eq.s32.totalorder %s22, 0
    %p190 = por %p188, %p189
    %s191 = ssub.s32 %s16, %s23
    %p192 = scmp.eq.s32.totalorder %s191, 0
    %s194 = sadd.s32 %s193, 1
    %s195 = scalar_select %p192, %s193, %s194
    %p198 = pneg %p192
    %p199 = scmp.eq.s32.totalorder %s16, 1
    %p200 = por %p198, %p199
    %p201 = scmp.ne.s32.totalorder %s193, %s196
    %p202 = scmp.eq.s32.totalorder %s16, 0
    %p203 = por %p201, %p202
    %p204 = scmp.ne.s32.totalorder %s193, %s196
    %p205 = scmp.eq.s32.totalorder %s21, 1
    %p206 = por %p204, %p205
    %p207 = scmp.ne.s32.totalorder %s196, %s197
    %p208 = scmp.eq.s32.totalorder %s21, 0
    %p209 = por %p207, %p208
    %p210 = scmp.ne.s32.totalorder %s196, %s197
    %p211 = scmp.eq.s32.totalorder %s22, 1
    %p212 = por %p210, %p211
    %p214 = scmp.ne.s32.totalorder %s197, %s213
    %p215 = scmp.eq.s32.totalorder %s22, 0
    %p216 = por %p214, %p215
    %s217 = ssub.s32 %s16, %s23
    %p218 = scmp.eq.s32.totalorder %s217, 0
    %s220 = sadd.s32 %s219, 1
    %s221 = scalar_select %p218, %s219, %s220
    %p224 = pneg %p218
    %p225 = scmp.eq.s32.totalorder %s16, 1
    %p226 = por %p224, %p225
    %p227 = scmp.ne.s32.totalorder %s219, %s222
    %p228 = scmp.eq.s32.totalorder %s16, 0
    %p229 = por %p227, %p228
    %p230 = scmp.ne.s32.totalorder %s219, %s222
    %p231 = scmp.eq.s32.totalorder %s21, 1
    %p232 = por %p230, %p231
    %p233 = scmp.ne.s32.totalorder %s222, %s223
    %p234 = scmp.eq.s32.totalorder %s21, 0
    %p235 = por %p233, %p234
    %p236 = scmp.ne.s32.totalorder %s222, %s223
    %p237 = scmp.eq.s32.totalorder %s22, 1
    %p238 = por %p236, %p237
    %p240 = scmp.ne.s32.totalorder %s223, %s239
    %p241 = scmp.eq.s32.totalorder %s22, 0
    %p242 = por %p240, %p241
    %s243 = ssub.s32 %s16, %s23
    %p244 = scmp.eq.s32.totalorder %s243, 0
    %s246 = sadd.s32 %s245, 1
    %s247 = scalar_select %p244, %s245, %s246
    %p250 = pneg %p244
    %p251 = scmp.eq.s32.totalorder %s16, 1
    %p252 = por %p250, %p251
    %p253 = scmp.ne.s32.totalorder %s245, %s248
    %p254 = scmp.eq.s32.totalorder %s16, 0
    %p255 = por %p253, %p254
    %p256 = scmp.ne.s32.totalorder %s245, %s248
    %p257 = scmp.eq.s32.totalorder %s21, 1
    %p258 = por %p256, %p257
    %p259 = scmp.ne.s32.totalorder %s248, %s249
    %p260 = scmp.eq.s32.totalorder %s21, 0
    %p261 = por %p259, %p260
    %p262 = scmp.ne.s32.totalorder %s248, %s249
    %p263 = scmp.eq.s32.totalorder %s22, 1
    %p264 = por %p262, %p263
    %p266 = scmp.ne.s32.totalorder %s249, %s265
    %p267 = scmp.eq.s32.totalorder %s22, 0
    %p268 = por %p266, %p267
    %p269 = scmp.le.s32.totalorder 1, %s16
    %p270 = scmp.lt.s32.totalorder %s16, 3
    %p271 = pnand %p269, %p270
    %p272 = pneg %p271
    // Predicated region
    $region9: #{downup_forward.3} parent=5 // pred_check
      _
    $region10: #{downup_forward.3} parent=5 // pred_check_branch
      %274 = sbr.rel (%p271) target = $region12
    $region11: #{downup_forward.3} parent=5 // pred_region
      %s275 = ssub.s32 %s16, 1
      // Predicated region
      $region13: #{downup_forward.3} parent=11 // pred_check
        %p276 = pneg %p141
      $region14: #{downup_forward.3} parent=11 // pred_check_branch
        %278 = sbr.rel (%p276) target = $region16
      $region15: #{downup_forward.3} parent=11 // pred_region
        _
      $region16: #{downup_forward.3} parent=11 // pred_fallthru
        _
      // Predicated region
      $region17: #{downup_forward.3} parent=11 // pred_check
        %p279 = pneg %p162
      $region18: #{downup_forward.3} parent=11 // pred_check_branch
        %281 = sbr.rel (%p279) target = $region20
      $region19: #{downup_forward.3} parent=11 // pred_region
        _
      $region20: #{downup_forward.3} parent=11 // pred_fallthru
        _
      // Predicated region
      $region21: #{downup_forward.3} parent=11 // pred_check
        %p282 = pneg %p183
      $region22: #{downup_forward.3} parent=11 // pred_check_branch
        %284 = sbr.rel (%p282) target = $region24
      $region23: #{downup_forward.3} parent=11 // pred_region
        _
      $region24: #{downup_forward.3} parent=11 // pred_fallthru
        _
    $region12: #{downup_forward.3} parent=5 // pred_fallthru
      _
    %p285 = scmp.lt.s32.totalorder %s16, 2
    // Predicated region
    $region25: #{downup_forward.3} parent=5 // pred_check
      %p286 = pneg %p285
    $region26: #{downup_forward.3} parent=5 // pred_check_branch
      %288 = sbr.rel (%p286) target = $region28
    $region27: #{downup_forward.3} parent=5 // pred_region
      // Predicated region
      $region29: #{downup_forward.3} parent=27 // pred_check
        %p289 = pneg %p36
      $region30: #{downup_forward.3} parent=27 // pred_check_branch
        %291 = sbr.rel (%p289) target = $region32
      $region31: #{downup_forward.3} parent=27 // pred_region
        %p292 = scmp.lt.s32.totalorder %s16, 1
        %s293 = scalar_select %p292, %s16, 1
        %s294 = smul.addr %s293, 4
        %s295 = scalar_lea.vmem %s0, %s294
      $region32: #{downup_forward.3} parent=27 // pred_fallthru
        _
      // Predicated region
      $region33: #{downup_forward.3} parent=27 // pred_check
        %p296 = pneg %p62
      $region34: #{downup_forward.3} parent=27 // pred_check_branch
        %298 = sbr.rel (%p296) target = $region36
      $region35: #{downup_forward.3} parent=27 // pred_region
        %p299 = scmp.lt.s32.totalorder %s16, 1
        %s300 = scalar_select %p299, %s16, 1
        %s301 = smul.addr %s300, 4
        %s302 = scalar_lea.vmem %s1, %s301
      $region36: #{downup_forward.3} parent=27 // pred_fallthru
        _
      // Predicated region
      $region37: #{downup_forward.3} parent=27 // pred_check
        %p303 = pneg %p88
      $region38: #{downup_forward.3} parent=27 // pred_check_branch
        %305 = sbr.rel (%p303) target = $region40
      $region39: #{downup_forward.3} parent=27 // pred_region
        %p306 = scmp.lt.s32.totalorder %s16, 1
        %s307 = scalar_select %p306, %s16, 1
        %s308 = smul.addr %s307, 4
        %s309 = scalar_lea.vmem %s2, %s308
      $region40: #{downup_forward.3} parent=27 // pred_fallthru
        _
      // Predicated region
      $region41: #{downup_forward.3} parent=27 // pred_check
        %p310 = pneg %p114
      $region42: #{downup_forward.3} parent=27 // pred_check_branch
        %312 = sbr.rel (%p310) target = $region44
      $region43: #{downup_forward.3} parent=27 // pred_region
        %p313 = scmp.lt.s32.totalorder %s16, 1
        %s314 = scalar_select %p313, %s16, 1
        %s315 = smul.addr %s314, 4
        %s316 = scalar_lea.vmem %s3, %s315
      $region44: #{downup_forward.3} parent=27 // pred_fallthru
        _
    $region28: #{downup_forward.3} parent=5 // pred_fallthru
      _
    %p317 = scmp.le.s32.totalorder 1, %s16
    %p318 = scmp.lt.s32.totalorder %s16, 3
    %p319 = pnand %p317, %p318
    %p320 = pneg %p319
    // Predicated region
    $region45: #{downup_forward.3} parent=5 // pred_check
      _
    $region46: #{downup_forward.3} parent=5 // pred_check_branch
      %322 = sbr.rel (%p319) target = $region48
    $region47: #{downup_forward.3} parent=5 // pred_region
      %s323 = ssub.s32 %s16, 1
      %p324 = scmp.lt.s32.totalorder %s21, 1
      %s325 = scalar_select %p324, %s21, 1
      %s326 = smul.addr %s325, 4
      %s327 = scalar_lea.vmem %s0, %s326
      %p328 = pneg %p42
      %p329 = pneg %p39
      %p330 = scmp.lt.s32.totalorder %s21, 1
      %s331 = scalar_select %p330, %s21, 1
      %s332 = smul.addr %s331, 4
      %s333 = scalar_lea.vmem %s1, %s332
      %p334 = pneg %p68
      %p335 = pneg %p65
      %p336 = scmp.lt.s32.totalorder %s21, 1
      %s337 = scalar_select %p336, %s21, 1
      %s338 = smul.addr %s337, 4
      %s339 = scalar_lea.vmem %s2, %s338
      %p340 = pneg %p94
      %p341 = pneg %p91
      %p342 = scmp.lt.s32.totalorder %s21, 1
      %s343 = scalar_select %p342, %s21, 1
      %s344 = smul.addr %s343, 4
      %s345 = scalar_lea.vmem %s3, %s344
      %p346 = pneg %p120
      %p347 = pneg %p117
      %p348 = pneg %p141
      %p349 = pneg %p138
      %p350 = pneg %p162
      %p351 = pneg %p159
      %p352 = pneg %p183
      %p353 = pneg %p180
      %p354 = pneg %p209
      %p355 = pneg %p206
      %p356 = scmp.lt.s32.totalorder %s21, 1
      %s357 = scalar_select %p356, %s21, 1
      %s358 = smul.addr %s357, 8
      %s359 = scalar_lea.vmem %s7, %s358
      %p360 = pneg %p235
      %p361 = pneg %p232
      %p362 = scmp.lt.s32.totalorder %s21, 1
      %s363 = scalar_select %p362, %s21, 1
      %s364 = smul.addr %s363, 8
      %s365 = scalar_lea.vmem %s8, %s364
      %p366 = pneg %p261
      %p367 = pneg %p258
      %p368 = scmp.lt.s32.totalorder %s21, 1
      %s369 = scalar_select %p368, %s21, 1
      %s370 = smul.addr %s369, 8
      %s371 = scalar_lea.vmem %s9, %s370
      %p372 = scmp.lt.s32.totalorder %s21, 1
      %s373 = scalar_select %p372, %s21, 1
      %s374 = smul.addr %s373, 4
      %s375 = scalar_lea.vmem %s0, %s374
      %p376 = scmp.lt.s32.totalorder %s21, 1
      %s377 = scalar_select %p376, %s21, 1
      %s378 = smul.addr %s377, 4
      %s379 = scalar_lea.vmem %s1, %s378
      %p380 = scmp.lt.s32.totalorder %s21, 1
      %s381 = scalar_select %p380, %s21, 1
      %s382 = smul.addr %s381, 4
      %s383 = scalar_lea.vmem %s2, %s382
      %p384 = scmp.lt.s32.totalorder %s21, 1
      %s385 = scalar_select %p384, %s21, 1
      %s386 = smul.addr %s385, 4
      %s387 = scalar_lea.vmem %s3, %s386
      %p388 = scmp.lt.s32.totalorder %s21, 1
      %s389 = scalar_select %p388, %s21, 1
      %s390 = smul.addr %s389, 8
      %s391 = scalar_lea.vmem %s7, %s390
      %p392 = scmp.lt.s32.totalorder %s21, 1
      %s393 = scalar_select %p392, %s21, 1
      %s394 = smul.addr %s393, 8
      %s395 = scalar_lea.vmem %s8, %s394
      %p396 = scmp.lt.s32.totalorder %s21, 1
      %s397 = scalar_select %p396, %s21, 1
      %s398 = smul.addr %s397, 8
      %s399 = scalar_lea.vmem %s9, %s398
      %v400 = vld [vmem:[%s375] sm:$0xf]
      %v401 = vld [vmem:[%s4] sm:$0xff]
      %v402 = vld [vmem:[%s379] sm:$0xf]
      %s403 = scalar_lea.vmem %s4, 8
      %v404 = vld [vmem:[%s403] sm:$0xff]
      %vm405 = vcmask 31744
      %v407 = vsel %vm405, %v404, 0
      %vm409 = vcmask 1043456
      %v411 = vsel %vm409, %v402, 0
      %413 = vmatprep.subr.mxu0 0.0
      %414 = vmatpush1.msra.mxu0 %v411
      %415 = vmatprep.subr.mxu0 0.0
      %416 = vmatpush1.msra.mxu0 0.0
      %417 = vmatprep.subr.mxu0 0.0
      %418 = vmatpush1.msra.mxu0 0.0
      %419 = vmatprep.subr.mxu0 0.0
      %420 = vmatpush1.msra.mxu0 0.0
      %421 = vmatprep.subr.mxu0 0.0
      %422 = vmatpush1.msra.mxu0 0.0
      %423 = vmatprep.subr.mxu0 0.0
      %424 = vmatpush1.msra.mxu0 0.0
      %425 = vmatprep.subr.mxu0 0.0
      %426 = vmatpush1.msra.mxu0 0.0
      %427 = vmatprep.subr.mxu0 0.0
      %428 = vmatpush1.msra.mxu0 0.0
      %429 = vmatprep.subr.mxu0 0.0
      %430 = vmatpush1.msra.mxu0 0.0
      %431 = vmatprep.subr.mxu0 0.0
      %432 = vmatpush1.msra.mxu0 0.0
      %433 = vmatprep.subr.mxu0 0.0
      %434 = vmatpush1.msra.mxu0 0.0
      %435 = vmatprep.subr.mxu0 0.0
      %436 = vmatpush1.msra.mxu0 0.0
      %437 = vmatprep.subr.mxu0 0.0
      %438 = vmatpush1.msra.mxu0 0.0
      %439 = vmatprep.subr.mxu0 0.0
      %440 = vmatpush1.msra.mxu0 0.0
      %441 = vmatprep.subr.mxu0 0.0
      %442 = vmatpush1.msra.mxu0 0.0
      %443 = vmatprep.subr.mxu0 0.0
      %444 = vmatpush1.msra.mxu0 0.0
      %445 = vmatprep.subr.mxu0 0.0
      %446 = vmatpush1.msra.mxu0 0.0
      %447 = vmatprep.subr.mxu0 0.0
      %448 = vmatpush1.msra.mxu0 0.0
      %449 = vmatprep.subr.mxu0 0.0
      %450 = vmatpush1.msra.mxu0 0.0
      %451 = vmatprep.subr.mxu0 0.0
      %452 = vmatpush1.msra.mxu0 0.0
      %453 = vmatprep.subr.mxu0 0.0
      %454 = vmatpush1.msra.mxu0 0.0
      %455 = vmatprep.subr.mxu0 0.0
      %456 = vmatpush1.msra.mxu0 0.0
      %457 = vmatprep.subr.mxu0 0.0
      %458 = vmatpush1.msra.mxu0 0.0
      %459 = vmatprep.subr.mxu0 0.0
      %460 = vmatpush1.msra.mxu0 0.0
      %461 = vmatprep.subr.mxu0 0.0
      %462 = vmatpush1.msra.mxu0 0.0
      %463 = vmatprep.subr.mxu0 0.0
      %464 = vmatpush1.msra.mxu0 0.0
      %465 = vmatprep.subr.mxu0 0.0
      %466 = vmatpush1.msra.mxu0 0.0
      %467 = vmatprep.subr.mxu0 0.0
      %468 = vmatpush1.msra.mxu0 0.0
      %469 = vmatprep.subr.mxu0 0.0
      %470 = vmatpush1.msra.mxu0 0.0
      %471 = vmatprep.subr.mxu0 0.0
      %472 = vmatpush1.msra.mxu0 0.0
      %473 = vmatprep.subr.mxu0 0.0
      %474 = vmatpush1.msra.mxu0 0.0
      %475 = vmatprep.subr.mxu0 0.0
      %476 = vmatpush1.msra.mxu0 0.0
      %477 = vmatprep.mubr.f32.mxu0 0.0
      %478 = vmatmul.mubr.f32.gmra.mrb[0].mxu0 %v407
      %v479 = vpop.f32.mrb[0].mxu0
      %v480 = vadd.f32 0.0, %v479
      %v481 = vpop.f32.mrb[0].mxu0
      %482 = vdwg.mxu0
      %v484 = vsel %vm405, %v401, 0
      %v487 = vsel %vm409, %v400, 0
      %489 = vmatprep.subr.mxu0 0.0
      %490 = vmatpush1.msra.mxu0 %v487
      %491 = vmatprep.subr.mxu0 0.0
      %492 = vmatpush1.msra.mxu0 0.0
      %493 = vmatprep.subr.mxu0 0.0
      %494 = vmatpush1.msra.mxu0 0.0
      %495 = vmatprep.subr.mxu0 0.0
      %496 = vmatpush1.msra.mxu0 0.0
      %497 = vmatprep.subr.mxu0 0.0
      %498 = vmatpush1.msra.mxu0 0.0
      %499 = vmatprep.subr.mxu0 0.0
      %500 = vmatpush1.msra.mxu0 0.0
      %501 = vmatprep.subr.mxu0 0.0
      %502 = vmatpush1.msra.mxu0 0.0
      %503 = vmatprep.subr.mxu0 0.0
      %504 = vmatpush1.msra.mxu0 0.0
      %505 = vmatprep.subr.mxu0 0.0
      %506 = vmatpush1.msra.mxu0 0.0
      %507 = vmatprep.subr.mxu0 0.0
      %508 = vmatpush1.msra.mxu0 0.0
      %509 = vmatprep.subr.mxu0 0.0
      %510 = vmatpush1.msra.mxu0 0.0
      %511 = vmatprep.subr.mxu0 0.0
      %512 = vmatpush1.msra.mxu0 0.0
      %513 = vmatprep.subr.mxu0 0.0
      %514 = vmatpush1.msra.mxu0 0.0
      %515 = vmatprep.subr.mxu0 0.0
      %516 = vmatpush1.msra.mxu0 0.0
      %517 = vmatprep.subr.mxu0 0.0
      %518 = vmatpush1.msra.mxu0 0.0
      %519 = vmatprep.subr.mxu0 0.0
      %520 = vmatpush1.msra.mxu0 0.0
      %521 = vmatprep.subr.mxu0 0.0
      %522 = vmatpush1.msra.mxu0 0.0
      %523 = vmatprep.subr.mxu0 0.0
      %524 = vmatpush1.msra.mxu0 0.0
      %525 = vmatprep.subr.mxu0 0.0
      %526 = vmatpush1.msra.mxu0 0.0
      %527 = vmatprep.subr.mxu0 0.0
      %528 = vmatpush1.msra.mxu0 0.0
      %529 = vmatprep.subr.mxu0 0.0
      %530 = vmatpush1.msra.mxu0 0.0
      %531 = vmatprep.subr.mxu0 0.0
      %532 = vmatpush1.msra.mxu0 0.0
      %533 = vmatprep.subr.mxu0 0.0
      %534 = vmatpush1.msra.mxu0 0.0
      %535 = vmatprep.subr.mxu0 0.0
      %536 = vmatpush1.msra.mxu0 0.0
      %537 = vmatprep.subr.mxu0 0.0
      %538 = vmatpush1.msra.mxu0 0.0
      %539 = vmatprep.subr.mxu0 0.0
      %540 = vmatpush1.msra.mxu0 0.0
      %541 = vmatprep.subr.mxu0 0.0
      %542 = vmatpush1.msra.mxu0 0.0
      %543 = vmatprep.subr.mxu0 0.0
      %544 = vmatpush1.msra.mxu0 0.0
      %545 = vmatprep.subr.mxu0 0.0
      %546 = vmatpush1.msra.mxu0 0.0
      %547 = vmatprep.subr.mxu0 0.0
      %548 = vmatpush1.msra.mxu0 0.0
      %549 = vmatprep.subr.mxu0 0.0
      %550 = vmatpush1.msra.mxu0 0.0
      %551 = vmatprep.subr.mxu0 0.0
      %552 = vmatpush1.msra.mxu0 0.0
      %553 = vmatprep.mubr.f32.mxu0 0.0
      %554 = vmatmul.mubr.f32.gmra.mrb[0].mxu0 %v484
      %v555 = vpop.f32.mrb[0].mxu0
      %v556 = vadd.f32 %v480, %v555
      %v557 = vpop.f32.mrb[0].mxu0
      %558 = vdwg.mxu0
      %s559 = scalar_lea.vmem %s4, 16
      %v560 = vld [vmem:[%s559] sm:$0xff]
      %561 = vrot.lane.b32.xlu0 %v400, 127
      %v562 = vpop.permute.xlu0 %561
      %v564 = vsel %vm405, %v560, 0
      %v566 = vsel %vm409, %v562, 0
      %568 = vmatprep.subr.mxu0 0.0
      %569 = vmatpush1.msra.mxu0 %v566
      %570 = vmatprep.subr.mxu0 0.0
      %571 = vmatpush1.msra.mxu0 0.0
      %572 = vmatprep.subr.mxu0 0.0
      %573 = vmatpush1.msra.mxu0 0.0
      %574 = vmatprep.subr.mxu0 0.0
      %575 = vmatpush1.msra.mxu0 0.0
      %576 = vmatprep.subr.mxu0 0.0
      %577 = vmatpush1.msra.mxu0 0.0
      %578 = vmatprep.subr.mxu0 0.0
      %579 = vmatpush1.msra.mxu0 0.0
      %580 = vmatprep.subr.mxu0 0.0
      %581 = vmatpush1.msra.mxu0 0.0
      %582 = vmatprep.subr.mxu0 0.0
      %583 = vmatpush1.msra.mxu0 0.0
      %584 = vmatprep.subr.mxu0 0.0
      %585 = vmatpush1.msra.mxu0 0.0
      %586 = vmatprep.subr.mxu0 0.0
      %587 = vmatpush1.msra.mxu0 0.0
      %588 = vmatprep.subr.mxu0 0.0
      %589 = vmatpush1.msra.mxu0 0.0
      %590 = vmatprep.subr.mxu0 0.0
      %591 = vmatpush1.msra.mxu0 0.0
      %592 = vmatprep.subr.mxu0 0.0
      %593 = vmatpush1.msra.mxu0 0.0
      %594 = vmatprep.subr.mxu0 0.0
      %595 = vmatpush1.msra.mxu0 0.0
      %596 = vmatprep.subr.mxu0 0.0
      %597 = vmatpush1.msra.mxu0 0.0
      %598 = vmatprep.subr.mxu0 0.0
      %599 = vmatpush1.msra.mxu0 0.0
      %600 = vmatprep.subr.mxu0 0.0
      %601 = vmatpush1.msra.mxu0 0.0
      %602 = vmatprep.subr.mxu0 0.0
      %603 = vmatpush1.msra.mxu0 0.0
      %604 = vmatprep.subr.mxu0 0.0
      %605 = vmatpush1.msra.mxu0 0.0
      %606 = vmatprep.subr.mxu0 0.0
      %607 = vmatpush1.msra.mxu0 0.0
      %608 = vmatprep.subr.mxu0 0.0
      %609 = vmatpush1.msra.mxu0 0.0
      %610 = vmatprep.subr.mxu0 0.0
      %611 = vmatpush1.msra.mxu0 0.0
      %612 = vmatprep.subr.mxu0 0.0
      %613 = vmatpush1.msra.mxu0 0.0
      %614 = vmatprep.subr.mxu0 0.0
      %615 = vmatpush1.msra.mxu0 0.0
      %616 = vmatprep.subr.mxu0 0.0
      %617 = vmatpush1.msra.mxu0 0.0
      %618 = vmatprep.subr.mxu0 0.0
      %619 = vmatpush1.msra.mxu0 0.0
      %620 = vmatprep.subr.mxu0 0.0
      %621 = vmatpush1.msra.mxu0 0.0
      %622 = vmatprep.subr.mxu0 0.0
      %623 = vmatpush1.msra.mxu0 0.0
      %624 = vmatprep.subr.mxu0 0.0
      %625 = vmatpush1.msra.mxu0 0.0
      %626 = vmatprep.subr.mxu0 0.0
      %627 = vmatpush1.msra.mxu0 0.0
      %628 = vmatprep.subr.mxu0 0.0
      %629 = vmatpush1.msra.mxu0 0.0
      %630 = vmatprep.subr.mxu0 0.0
      %631 = vmatpush1.msra.mxu0 0.0
      %632 = vmatprep.mubr.f32.mxu0 0.0
      %633 = vmatmul.mubr.f32.gmra.mrb[0].mxu0 %v564
      %v634 = vpop.f32.mrb[0].mxu0
      %v635 = vadd.f32 0.0, %v634
      %v636 = vpop.f32.mrb[0].mxu0
      %637 = vdwg.mxu0
      %v638 = vadd.f32 %v556, %v635
      %v639 = vld [vmem:[%s383] sm:$0xf]
      %s640 = scalar_lea.vmem %s4, 24
      %v641 = vld [vmem:[%s640] sm:$0xff]
      %v643 = vsel %vm405, %v641, 0
      %v646 = vsel %vm409, %v639, 0
      %648 = vmatprep.subr.mxu0 0.0
      %649 = vmatpush1.msra.mxu0 %v646
      %650 = vmatprep.subr.mxu0 0.0
      %651 = vmatpush1.msra.mxu0 0.0
      %652 = vmatprep.subr.mxu0 0.0
      %653 = vmatpush1.msra.mxu0 0.0
      %654 = vmatprep.subr.mxu0 0.0
      %655 = vmatpush1.msra.mxu0 0.0
      %656 = vmatprep.subr.mxu0 0.0
      %657 = vmatpush1.msra.mxu0 0.0
      %658 = vmatprep.subr.mxu0 0.0
      %659 = vmatpush1.msra.mxu0 0.0
      %660 = vmatprep.subr.mxu0 0.0
      %661 = vmatpush1.msra.mxu0 0.0
      %662 = vmatprep.subr.mxu0 0.0
      %663 = vmatpush1.msra.mxu0 0.0
      %664 = vmatprep.subr.mxu0 0.0
      %665 = vmatpush1.msra.mxu0 0.0
      %666 = vmatprep.subr.mxu0 0.0
      %667 = vmatpush1.msra.mxu0 0.0
      %668 = vmatprep.subr.mxu0 0.0
      %669 = vmatpush1.msra.mxu0 0.0
      %670 = vmatprep.subr.mxu0 0.0
      %671 = vmatpush1.msra.mxu0 0.0
      %672 = vmatprep.subr.mxu0 0.0
      %673 = vmatpush1.msra.mxu0 0.0
      %674 = vmatprep.subr.mxu0 0.0
      %675 = vmatpush1.msra.mxu0 0.0
      %676 = vmatprep.subr.mxu0 0.0
      %677 = vmatpush1.msra.mxu0 0.0
      %678 = vmatprep.subr.mxu0 0.0
      %679 = vmatpush1.msra.mxu0 0.0
      %680 = vmatprep.subr.mxu0 0.0
      %681 = vmatpush1.msra.mxu0 0.0
      %682 = vmatprep.subr.mxu0 0.0
      %683 = vmatpush1.msra.mxu0 0.0
      %684 = vmatprep.subr.mxu0 0.0
      %685 = vmatpush1.msra.mxu0 0.0
      %686 = vmatprep.subr.mxu0 0.0
      %687 = vmatpush1.msra.mxu0 0.0
      %688 = vmatprep.subr.mxu0 0.0
      %689 = vmatpush1.msra.mxu0 0.0
      %690 = vmatprep.subr.mxu0 0.0
      %691 = vmatpush1.msra.mxu0 0.0
      %692 = vmatprep.subr.mxu0 0.0
      %693 = vmatpush1.msra.mxu0 0.0
      %694 = vmatprep.subr.mxu0 0.0
      %695 = vmatpush1.msra.mxu0 0.0
      %696 = vmatprep.subr.mxu0 0.0
      %697 = vmatpush1.msra.mxu0 0.0
      %698 = vmatprep.subr.mxu0 0.0
      %699 = vmatpush1.msra.mxu0 0.0
      %700 = vmatprep.subr.mxu0 0.0
      %701 = vmatpush1.msra.mxu0 0.0
      %702 = vmatprep.subr.mxu0 0.0
      %703 = vmatpush1.msra.mxu0 0.0
      %704 = vmatprep.subr.mxu0 0.0
      %705 = vmatpush1.msra.mxu0 0.0
      %706 = vmatprep.subr.mxu0 0.0
      %707 = vmatpush1.msra.mxu0 0.0
      %708 = vmatprep.subr.mxu0 0.0
      %709 = vmatpush1.msra.mxu0 0.0
      %710 = vmatprep.subr.mxu0 0.0
      %711 = vmatpush1.msra.mxu0 0.0
      %712 = vmatprep.mubr.f32.mxu0 0.0
      %713 = vmatmul.mubr.f32.gmra.mrb[0].mxu0 %v643
      %v714 = vpop.f32.mrb[0].mxu0
      %v715 = vadd.f32 0.0, %v714
      %v716 = vpop.f32.mrb[0].mxu0
      %717 = vdwg.mxu0
      %v718 = vadd.f32 %v638, %v715
      %v719 = vld [vmem:[%s387] sm:$0xf]
      %s720 = scalar_lea.vmem %s4, 32
      %v721 = vld [vmem:[%s720] sm:$0xff]
      %v723 = vsel %vm405, %v721, 0
      %v726 = vsel %vm409, %v719, 0
      %728 = vmatprep.subr.mxu0 0.0
      %729 = vmatpush1.msra.mxu0 %v726
      %730 = vmatprep.subr.mxu0 0.0
      %731 = vmatpush1.msra.mxu0 0.0
      %732 = vmatprep.subr.mxu0 0.0
      %733 = vmatpush1.msra.mxu0 0.0
      %734 = vmatprep.subr.mxu0 0.0
      %735 = vmatpush1.msra.mxu0 0.0
      %736 = vmatprep.subr.mxu0 0.0
      %737 = vmatpush1.msra.mxu0 0.0
      %738 = vmatprep.subr.mxu0 0.0
      %739 = vmatpush1.msra.mxu0 0.0
      %740 = vmatprep.subr.mxu0 0.0
      %741 = vmatpush1.msra.mxu0 0.0
      %742 = vmatprep.subr.mxu0 0.0
      %743 = vmatpush1.msra.mxu0 0.0
      %744 = vmatprep.subr.mxu0 0.0
      %745 = vmatpush1.msra.mxu0 0.0
      %746 = vmatprep.subr.mxu0 0.0
      %747 = vmatpush1.msra.mxu0 0.0
      %748 = vmatprep.subr.mxu0 0.0
      %749 = vmatpush1.msra.mxu0 0.0
      %750 = vmatprep.subr.mxu0 0.0
      %751 = vmatpush1.msra.mxu0 0.0
      %752 = vmatprep.subr.mxu0 0.0
      %753 = vmatpush1.msra.mxu0 0.0
      %754 = vmatprep.subr.mxu0 0.0
      %755 = vmatpush1.msra.mxu0 0.0
      %756 = vmatprep.subr.mxu0 0.0
      %757 = vmatpush1.msra.mxu0 0.0
      %758 = vmatprep.subr.mxu0 0.0
      %759 = vmatpush1.msra.mxu0 0.0
      %760 = vmatprep.subr.mxu0 0.0
      %761 = vmatpush1.msra.mxu0 0.0
      %762 = vmatprep.subr.mxu0 0.0
      %763 = vmatpush1.msra.mxu0 0.0
      %764 = vmatprep.subr.mxu0 0.0
      %765 = vmatpush1.msra.mxu0 0.0
      %766 = vmatprep.subr.mxu0 0.0
      %767 = vmatpush1.msra.mxu0 0.0
      %768 = vmatprep.subr.mxu0 0.0
      %769 = vmatpush1.msra.mxu0 0.0
      %770 = vmatprep.subr.mxu0 0.0
      %771 = vmatpush1.msra.mxu0 0.0
      %772 = vmatprep.subr.mxu0 0.0
      %773 = vmatpush1.msra.mxu0 0.0
      %774 = vmatprep.subr.mxu0 0.0
      %775 = vmatpush1.msra.mxu0 0.0
      %776 = vmatprep.subr.mxu0 0.0
      %777 = vmatpush1.msra.mxu0 0.0
      %778 = vmatprep.subr.mxu0 0.0
      %779 = vmatpush1.msra.mxu0 0.0
      %780 = vmatprep.subr.mxu0 0.0
      %781 = vmatpush1.msra.mxu0 0.0
      %782 = vmatprep.subr.mxu0 0.0
      %783 = vmatpush1.msra.mxu0 0.0
      %784 = vmatprep.subr.mxu0 0.0
      %785 = vmatpush1.msra.mxu0 0.0
      %786 = vmatprep.subr.mxu0 0.0
      %787 = vmatpush1.msra.mxu0 0.0
      %788 = vmatprep.subr.mxu0 0.0
      %789 = vmatpush1.msra.mxu0 0.0
      %790 = vmatprep.subr.mxu0 0.0
      %791 = vmatpush1.msra.mxu0 0.0
      %792 = vmatprep.mubr.f32.mxu0 0.0
      %793 = vmatmul.mubr.f32.gmra.mrb[0].mxu0 %v723
      %v794 = vpop.f32.mrb[0].mxu0
      %v795 = vadd.f32 0.0, %v794
      %v796 = vpop.f32.mrb[0].mxu0
      %797 = vdwg.mxu0
      %v798 = vadd.f32 %v718, %v795
      %s799 = scalar_lea.vmem %s4, 40
      %v800 = vld [vmem:[%s799] sm:$0xff]
      %801 = vrot.lane.b32.xlu0 %v639, 127
      %v802 = vpop.permute.xlu0 %801
      %v804 = vsel %vm405, %v800, 0
      %v806 = vsel %vm409, %v802, 0
      %808 = vmatprep.subr.mxu0 0.0
      %809 = vmatpush1.msra.mxu0 %v806
      %810 = vmatprep.subr.mxu0 0.0
      %811 = vmatpush1.msra.mxu0 0.0
      %812 = vmatprep.subr.mxu0 0.0
      %813 = vmatpush1.msra.mxu0 0.0
      %814 = vmatprep.subr.mxu0 0.0
      %815 = vmatpush1.msra.mxu0 0.0
      %816 = vmatprep.subr.mxu0 0.0
      %817 = vmatpush1.msra.mxu0 0.0
      %818 = vmatprep.subr.mxu0 0.0
      %819 = vmatpush1.msra.mxu0 0.0
      %820 = vmatprep.subr.mxu0 0.0
      %821 = vmatpush1.msra.mxu0 0.0
      %822 = vmatprep.subr.mxu0 0.0
      %823 = vmatpush1.msra.mxu0 0.0
      %824 = vmatprep.subr.mxu0 0.0
      %825 = vmatpush1.msra.mxu0 0.0
      %826 = vmatprep.subr.mxu0 0.0
      %827 = vmatpush1.msra.mxu0 0.0
      %828 = vmatprep.subr.mxu0 0.0
      %829 = vmatpush1.msra.mxu0 0.0
      %830 = vmatprep.subr.mxu0 0.0
      %831 = vmatpush1.msra.mxu0 0.0
      %832 = vmatprep.subr.mxu0 0.0
      %833 = vmatpush1.msra.mxu0 0.0
      %834 = vmatprep.subr.mxu0 0.0
      %835 = vmatpush1.msra.mxu0 0.0
      %836 = vmatprep.subr.mxu0 0.0
      %837 = vmatpush1.msra.mxu0 0.0
      %838 = vmatprep.subr.mxu0 0.0
      %839 = vmatpush1.msra.mxu0 0.0
      %840 = vmatprep.subr.mxu0 0.0
      %841 = vmatpush1.msra.mxu0 0.0
      %842 = vmatprep.subr.mxu0 0.0
      %843 = vmatpush1.msra.mxu0 0.0
      %844 = vmatprep.subr.mxu0 0.0
      %845 = vmatpush1.msra.mxu0 0.0
      %846 = vmatprep.subr.mxu0 0.0
      %847 = vmatpush1.msra.mxu0 0.0
      %848 = vmatprep.subr.mxu0 0.0
      %849 = vmatpush1.msra.mxu0 0.0
      %850 = vmatprep.subr.mxu0 0.0
      %851 = vmatpush1.msra.mxu0 0.0
      %852 = vmatprep.subr.mxu0 0.0
      %853 = vmatpush1.msra.mxu0 0.0
      %854 = vmatprep.subr.mxu0 0.0
      %855 = vmatpush1.msra.mxu0 0.0
      %856 = vmatprep.subr.mxu0 0.0
      %857 = vmatpush1.msra.mxu0 0.0
      %858 = vmatprep.subr.mxu0 0.0
      %859 = vmatpush1.msra.mxu0 0.0
      %860 = vmatprep.subr.mxu0 0.0
      %861 = vmatpush1.msra.mxu0 0.0
      %862 = vmatprep.subr.mxu0 0.0
      %863 = vmatpush1.msra.mxu0 0.0
      %864 = vmatprep.subr.mxu0 0.0
      %865 = vmatpush1.msra.mxu0 0.0
      %866 = vmatprep.subr.mxu0 0.0
      %867 = vmatpush1.msra.mxu0 0.0
      %868 = vmatprep.subr.mxu0 0.0
      %869 = vmatpush1.msra.mxu0 0.0
      %870 = vmatprep.subr.mxu0 0.0
      %871 = vmatpush1.msra.mxu0 0.0
      %872 = vmatprep.mubr.f32.mxu0 0.0
      %873 = vmatmul.mubr.f32.gmra.mrb[0].mxu0 %v804
      %v874 = vpop.f32.mrb[0].mxu0
      %v875 = vadd.f32 0.0, %v874
      %v876 = vpop.f32.mrb[0].mxu0
      %877 = vdwg.mxu0
      %v878 = vadd.f32 %v798, %v875
      %s879 = scalar_lea.vmem %s4, 48
      %v880 = vld [vmem:[%s879] sm:$0xff]
      %881 = vrot.lane.b32.xlu0 %v400, 119
      %v882 = vpop.permute.xlu0 %881
      %v884 = vsel %vm405, %v880, 0
      %v886 = vsel %vm409, %v882, 0
      %888 = vmatprep.subr.mxu0 0.0
      %889 = vmatpush1.msra.mxu0 %v886
      %890 = vmatprep.subr.mxu0 0.0
      %891 = vmatpush1.msra.mxu0 0.0
      %892 = vmatprep.subr.mxu0 0.0
      %893 = vmatpush1.msra.mxu0 0.0
      %894 = vmatprep.subr.mxu0 0.0
      %895 = vmatpush1.msra.mxu0 0.0
      %896 = vmatprep.subr.mxu0 0.0
      %897 = vmatpush1.msra.mxu0 0.0
      %898 = vmatprep.subr.mxu0 0.0
      %899 = vmatpush1.msra.mxu0 0.0
      %900 = vmatprep.subr.mxu0 0.0
      %901 = vmatpush1.msra.mxu0 0.0
      %902 = vmatprep.subr.mxu0 0.0
      %903 = vmatpush1.msra.mxu0 0.0
      %904 = vmatprep.subr.mxu0 0.0
      %905 = vmatpush1.msra.mxu0 0.0
      %906 = vmatprep.subr.mxu0 0.0
      %907 = vmatpush1.msra.mxu0 0.0
      %908 = vmatprep.subr.mxu0 0.0
      %909 = vmatpush1.msra.mxu0 0.0
      %910 = vmatprep.subr.mxu0 0.0
      %911 = vmatpush1.msra.mxu0 0.0
      %912 = vmatprep.subr.mxu0 0.0
      %913 = vmatpush1.msra.mxu0 0.0
      %914 = vmatprep.subr.mxu0 0.0
      %915 = vmatpush1.msra.mxu0 0.0
      %916 = vmatprep.subr.mxu0 0.0
      %917 = vmatpush1.msra.mxu0 0.0
      %918 = vmatprep.subr.mxu0 0.0
      %919 = vmatpush1.msra.mxu0 0.0
      %920 = vmatprep.subr.mxu0 0.0
      %921 = vmatpush1.msra.mxu0 0.0
      %922 = vmatprep.subr.mxu0 0.0
      %923 = vmatpush1.msra.mxu0 0.0
      %924 = vmatprep.subr.mxu0 0.0
      %925 = vmatpush1.msra.mxu0 0.0
      %926 = vmatprep.subr.mxu0 0.0
      %927 = vmatpush1.msra.mxu0 0.0
      %928 = vmatprep.subr.mxu0 0.0
      %929 = vmatpush1.msra.mxu0 0.0
      %930 = vmatprep.subr.mxu0 0.0
      %931 = vmatpush1.msra.mxu0 0.0
      %932 = vmatprep.subr.mxu0 0.0
      %933 = vmatpush1.msra.mxu0 0.0
      %934 = vmatprep.subr.mxu0 0.0
      %935 = vmatpush1.msra.mxu0 0.0
      %936 = vmatprep.subr.mxu0 0.0
      %937 = vmatpush1.msra.mxu0 0.0
      %938 = vmatprep.subr.mxu0 0.0
      %939 = vmatpush1.msra.mxu0 0.0
      %940 = vmatprep.subr.mxu0 0.0
      %941 = vmatpush1.msra.mxu0 0.0
      %942 = vmatprep.subr.mxu0 0.0
      %943 = vmatpush1.msra.mxu0 0.0
      %944 = vmatprep.subr.mxu0 0.0
      %945 = vmatpush1.msra.mxu0 0.0
      %946 = vmatprep.subr.mxu0 0.0
      %947 = vmatpush1.msra.mxu0 0.0
      %948 = vmatprep.subr.mxu0 0.0
      %949 = vmatpush1.msra.mxu0 0.0
      %950 = vmatprep.subr.mxu0 0.0
      %951 = vmatpush1.msra.mxu0 0.0
      %952 = vmatprep.mubr.f32.mxu0 0.0
      %953 = vmatmul.mubr.f32.gmra.mrb[0].mxu0 %v884
      %v954 = vpop.f32.mrb[0].mxu0
      %v955 = vadd.f32 0.0, %v954
      %v956 = vpop.f32.mrb[0].mxu0
      %957 = vdwg.mxu0
      %v958 = vadd.f32 %v878, %v955
      %s959 = scalar_lea.vmem %s4, 56
      %v960 = vld [vmem:[%s959] sm:$0xff]
      %961 = vrot.lane.b32.xlu0 %v402, 119
      %v962 = vpop.permute.xlu0 %961
      %v964 = vsel %vm405, %v960, 0
      %v966 = vsel %vm409, %v962, 0
      %968 = vmatprep.subr.mxu0 0.0
      %969 = vmatpush1.msra.mxu0 %v966
      %970 = vmatprep.subr.mxu0 0.0
      %971 = vmatpush1.msra.mxu0 0.0
      %972 = vmatprep.subr.mxu0 0.0
      %973 = vmatpush1.msra.mxu0 0.0
      %974 = vmatprep.subr.mxu0 0.0
      %975 = vmatpush1.msra.mxu0 0.0
      %976 = vmatprep.subr.mxu0 0.0
      %977 = vmatpush1.msra.mxu0 0.0
      %978 = vmatprep.subr.mxu0 0.0
      %979 = vmatpush1.msra.mxu0 0.0
      %980 = vmatprep.subr.mxu0 0.0
      %981 = vmatpush1.msra.mxu0 0.0
      %982 = vmatprep.subr.mxu0 0.0
      %983 = vmatpush1.msra.mxu0 0.0
      %984 = vmatprep.subr.mxu0 0.0
      %985 = vmatpush1.msra.mxu0 0.0
      %986 = vmatprep.subr.mxu0 0.0
      %987 = vmatpush1.msra.mxu0 0.0
      %988 = vmatprep.subr.mxu0 0.0
      %989 = vmatpush1.msra.mxu0 0.0
      %990 = vmatprep.subr.mxu0 0.0
      %991 = vmatpush1.msra.mxu0 0.0
      %992 = vmatprep.subr.mxu0 0.0
      %993 = vmatpush1.msra.mxu0 0.0
      %994 = vmatprep.subr.mxu0 0.0
      %995 = vmatpush1.msra.mxu0 0.0
      %996 = vmatprep.subr.mxu0 0.0
      %997 = vmatpush1.msra.mxu0 0.0
      %998 = vmatprep.subr.mxu0 0.0
      %999 = vmatpush1.msra.mxu0 0.0
      %1000 = vmatprep.subr.mxu0 0.0
      %1001 = vmatpush1.msra.mxu0 0.0
      %1002 = vmatprep.subr.mxu0 0.0
      %1003 = vmatpush1.msra.mxu0 0.0
      %1004 = vmatprep.subr.mxu0 0.0
      %1005 = vmatpush1.msra.mxu0 0.0
      %1006 = vmatprep.subr.mxu0 0.0
      %1007 = vmatpush1.msra.mxu0 0.0
      %1008 = vmatprep.subr.mxu0 0.0
      %1009 = vmatpush1.msra.mxu0 0.0
      %1010 = vmatprep.subr.mxu0 0.0
      %1011 = vmatpush1.msra.mxu0 0.0
      %1012 = vmatprep.subr.mxu0 0.0
      %1013 = vmatpush1.msra.mxu0 0.0
      %1014 = vmatprep.subr.mxu0 0.0
      %1015 = vmatpush1.msra.mxu0 0.0
      %1016 = vmatprep.subr.mxu0 0.0
      %1017 = vmatpush1.msra.mxu0 0.0
      %1018 = vmatprep.subr.mxu0 0.0
      %1019 = vmatpush1.msra.mxu0 0.0
      %1020 = vmatprep.subr.mxu0 0.0
      %1021 = vmatpush1.msra.mxu0 0.0
      %1022 = vmatprep.subr.mxu0 0.0
      %1023 = vmatpush1.msra.mxu0 0.0
      %1024 = vmatprep.subr.mxu0 0.0
      %1025 = vmatpush1.msra.mxu0 0.0
      %1026 = vmatprep.subr.mxu0 0.0
      %1027 = vmatpush1.msra.mxu0 0.0
      %1028 = vmatprep.subr.mxu0 0.0
      %1029 = vmatpush1.msra.mxu0 0.0
      %1030 = vmatprep.subr.mxu0 0.0
      %1031 = vmatpush1.msra.mxu0 0.0
      %1032 = vmatprep.mubr.f32.mxu0 0.0
      %1033 = vmatmul.mubr.f32.gmra.mrb[0].mxu0 %v964
      %v1034 = vpop.f32.mrb[0].mxu0
      %v1035 = vadd.f32 0.0, %v1034
      %v1036 = vpop.f32.mrb[0].mxu0
      %1037 = vdwg.mxu0
      %v1038 = vadd.f32 %v958, %v1035
      %s1039 = scalar_lea.vmem %s4, 64
      %v1040 = vld [vmem:[%s1039] sm:$0xff]
      %1041 = vrot.lane.b32.xlu0 %v400, 118
      %v1042 = vpop.permute.xlu0 %1041
      %v1044 = vsel %vm405, %v1040, 0
      %v1046 = vsel %vm409, %v1042, 0
      %1048 = vmatprep.subr.mxu0 0.0
      %1049 = vmatpush1.msra.mxu0 %v1046
      %1050 = vmatprep.subr.mxu0 0.0
      %1051 = vmatpush1.msra.mxu0 0.0
      %1052 = vmatprep.subr.mxu0 0.0
      %1053 = vmatpush1.msra.mxu0 0.0
      %1054 = vmatprep.subr.mxu0 0.0
      %1055 = vmatpush1.msra.mxu0 0.0
      %1056 = vmatprep.subr.mxu0 0.0
      %1057 = vmatpush1.msra.mxu0 0.0
      %1058 = vmatprep.subr.mxu0 0.0
      %1059 = vmatpush1.msra.mxu0 0.0
      %1060 = vmatprep.subr.mxu0 0.0
      %1061 = vmatpush1.msra.mxu0 0.0
      %1062 = vmatprep.subr.mxu0 0.0
      %1063 = vmatpush1.msra.mxu0 0.0
      %1064 = vmatprep.subr.mxu0 0.0
      %1065 = vmatpush1.msra.mxu0 0.0
      %1066 = vmatprep.subr.mxu0 0.0
      %1067 = vmatpush1.msra.mxu0 0.0
      %1068 = vmatprep.subr.mxu0 0.0
      %1069 = vmatpush1.msra.mxu0 0.0
      %1070 = vmatprep.subr.mxu0 0.0
      %1071 = vmatpush1.msra.mxu0 0.0
      %1072 = vmatprep.subr.mxu0 0.0
      %1073 = vmatpush1.msra.mxu0 0.0
      %1074 = vmatprep.subr.mxu0 0.0
      %1075 = vmatpush1.msra.mxu0 0.0
      %1076 = vmatprep.subr.mxu0 0.0
      %1077 = vmatpush1.msra.mxu0 0.0
      %1078 = vmatprep.subr.mxu0 0.0
      %1079 = vmatpush1.msra.mxu0 0.0
      %1080 = vmatprep.subr.mxu0 0.0
      %1081 = vmatpush1.msra.mxu0 0.0
      %1082 = vmatprep.subr.mxu0 0.0
      %1083 = vmatpush1.msra.mxu0 0.0
      %1084 = vmatprep.subr.mxu0 0.0
      %1085 = vmatpush1.msra.mxu0 0.0
      %1086 = vmatprep.subr.mxu0 0.0
      %1087 = vmatpush1.msra.mxu0 0.0
      %1088 = vmatprep.subr.mxu0 0.0
      %1089 = vmatpush1.msra.mxu0 0.0
      %1090 = vmatprep.subr.mxu0 0.0
      %1091 = vmatpush1.msra.mxu0 0.0
      %1092 = vmatprep.subr.mxu0 0.0
      %1093 = vmatpush1.msra.mxu0 0.0
      %1094 = vmatprep.subr.mxu0 0.0
      %1095 = vmatpush1.msra.mxu0 0.0
      %1096 = vmatprep.subr.mxu0 0.0
      %1097 = vmatpush1.msra.mxu0 0.0
      %1098 = vmatprep.subr.mxu0 0.0
      %1099 = vmatpush1.msra.mxu0 0.0
      %1100 = vmatprep.subr.mxu0 0.0
      %1101 = vmatpush1.msra.mxu0 0.0
      %1102 = vmatprep.subr.mxu0 0.0
      %1103 = vmatpush1.msra.mxu0 0.0
      %1104 = vmatprep.subr.mxu0 0.0
      %1105 = vmatpush1.msra.mxu0 0.0
      %1106 = vmatprep.subr.mxu0 0.0
      %1107 = vmatpush1.msra.mxu0 0.0
      %1108 = vmatprep.subr.mxu0 0.0
      %1109 = vmatpush1.msra.mxu0 0.0
      %1110 = vmatprep.subr.mxu0 0.0
      %1111 = vmatpush1.msra.mxu0 0.0
      %1112 = vmatprep.mubr.f32.mxu0 0.0
      %1113 = vmatmul.mubr.f32.gmra.mrb[0].mxu0 %v1044
      %v1114 = vpop.f32.mrb[0].mxu0
      %v1115 = vadd.f32 0.0, %v1114
      %v1116 = vpop.f32.mrb[0].mxu0
      %1117 = vdwg.mxu0
      %v1118 = vadd.f32 %v1038, %v1115
      %v1119 = vld [vmem:[%s5] sm:$0xff]
      %1121 = vset.pattern.permute.xlu0 0
      %1122 = vperm.xlu0 %1121, %v1119
      %v1123 = vpop.permute.xlu0 %1122
      %v1125 = vadd.f32 %v1118, %v1123
      %vm1126 = vcmask 580608
      %1127 = vst.msk [vmem:[%s391] sm:$0xff] %vm1126, %v1125
      %v1128 = vld [vmem:[%s6] sm:$0x1]
      %v1130 = vlaneseq
      %v1131 = vshrl.u32 %v1130, 7
      %v1132 = vsub.s32 0, %v1131
      %v1133 = vrot.slane %v1128, %v1132
      %v1135 = vmul.f32 %v1125, %v1133
      %v1136 = vsel %vm1126, %v1135, 0.0
      %1137 = vadd.xlane.f32.xlu0 %v1136
      %v1138 = vpop.xlane.xlu0 %1137
      %vm1139 = vcmask 7168
      %1140 = vst.msk [vmem:[%s395] sm:$0xff] %vm1139, %v1138
      %v1141 = vmul.f32 %v1125, %v1125
      %v1142 = vmul.f32 %v1141, %v1133
      %v1143 = vsel %vm1126, %v1142, 0.0
      %1144 = vadd.xlane.f32.xlu0 %v1143
      %v1145 = vpop.xlane.xlu0 %1144
      %1146 = vst.msk [vmem:[%s399] sm:$0xff] %vm1139, %v1145
      %p1147 = scmp.lt.s32.totalorder %s21, 1
      %s1148 = scalar_select %p1147, %s21, 1
      %s1149 = smul.addr %s1148, 8
      %s1150 = scalar_lea.vmem %s7, %s1149
      %p1151 = scmp.lt.s32.totalorder %s21, 1
      %s1152 = scalar_select %p1151, %s21, 1
      %s1153 = smul.addr %s1152, 8
      %s1154 = scalar_lea.vmem %s8, %s1153
      %p1155 = scmp.lt.s32.totalorder %s21, 1
      %s1156 = scalar_select %p1155, %s21, 1
      %s1157 = smul.addr %s1156, 8
      %s1158 = scalar_lea.vmem %s9, %s1157
      // Predicated region
      $region49: #{downup_forward.3} parent=47 // pred_check
        %p1159 = pneg %p206
      $region50: #{downup_forward.3} parent=47 // pred_check_branch
        %1161 = sbr.rel (%p1159) target = $region52
      $region51: #{downup_forward.3} parent=47 // pred_region
        _
      $region52: #{downup_forward.3} parent=47 // pred_fallthru
        _
      // Predicated region
      $region53: #{downup_forward.3} parent=47 // pred_check
        %p1162 = pneg %p232
      $region54: #{downup_forward.3} parent=47 // pred_check_branch
        %1164 = sbr.rel (%p1162) target = $region56
      $region55: #{downup_forward.3} parent=47 // pred_region
        _
      $region56: #{downup_forward.3} parent=47 // pred_fallthru
        _
      // Predicated region
      $region57: #{downup_forward.3} parent=47 // pred_check
        %p1165 = pneg %p258
      $region58: #{downup_forward.3} parent=47 // pred_check_branch
        %1167 = sbr.rel (%p1165) target = $region60
      $region59: #{downup_forward.3} parent=47 // pred_region
        _
      $region60: #{downup_forward.3} parent=47 // pred_fallthru
        _
    $region48: #{downup_forward.3} parent=5 // pred_fallthru
      _
    %p1168 = scmp.le.s32.totalorder 2, %s16
    // Predicated region
    $region61: #{downup_forward.3} parent=5 // pred_check
      %p1169 = pneg %p1168
    $region62: #{downup_forward.3} parent=5 // pred_check_branch
      %1171 = sbr.rel (%p1169) target = $region64
    $region63: #{downup_forward.3} parent=5 // pred_region
      %s1172 = ssub.s32 %s16, 2
      // Predicated region
      $region65: #{downup_forward.3} parent=63 // pred_check
        %p1173 = pneg %p212
      $region66: #{downup_forward.3} parent=63 // pred_check_branch
        %1175 = sbr.rel (%p1173) target = $region68
      $region67: #{downup_forward.3} parent=63 // pred_region
        %p1176 = scmp.lt.s32.totalorder %s22, 1
        %s1177 = scalar_select %p1176, %s22, 1
        %s1178 = smul.addr %s1177, 8
        %s1179 = scalar_lea.vmem %s7, %s1178
      $region68: #{downup_forward.3} parent=63 // pred_fallthru
        _
      // Predicated region
      $region69: #{downup_forward.3} parent=63 // pred_check
        %p1180 = pneg %p238
      $region70: #{downup_forward.3} parent=63 // pred_check_branch
        %1182 = sbr.rel (%p1180) target = $region72
      $region71: #{downup_forward.3} parent=63 // pred_region
        %p1183 = scmp.lt.s32.totalorder %s22, 1
        %s1184 = scalar_select %p1183, %s22, 1
        %s1185 = smul.addr %s1184, 8
        %s1186 = scalar_lea.vmem %s8, %s1185
      $region72: #{downup_forward.3} parent=63 // pred_fallthru
        _
      // Predicated region
      $region73: #{downup_forward.3} parent=63 // pred_check
        %p1187 = pneg %p264
      $region74: #{downup_forward.3} parent=63 // pred_check_branch
        %1189 = sbr.rel (%p1187) target = $region76
      $region75: #{downup_forward.3} parent=63 // pred_region
        %p1190 = scmp.lt.s32.totalorder %s22, 1
        %s1191 = scalar_select %p1190, %s22, 1
        %s1192 = smul.addr %s1191, 8
        %s1193 = scalar_lea.vmem %s9, %s1192
      $region76: #{downup_forward.3} parent=63 // pred_fallthru
        _
    $region64: #{downup_forward.3} parent=5 // pred_fallthru
      _
  $region6: #{downup_forward.3} parent=0 // loop_footer
    %s20 = sadd.s32 1, %s16
  $region7: #{downup_forward.3} parent=0 // loop_footer_branch
    %15 = sbr.rel target = $region3
  $region8: #{downup_forward.3} parent=0 // loop_exit
    _

// kernel: downup_forward.5
$region0: #{downup_forward.5}
  #allocation0 [shape = 'u32[]', space=smem, size = 0x4, offset = 0x4, fixed_abs, tag = 'smem constant byte address 0x4 - core index']
  #allocation1 [shape = 'u32[144,128]{1,0:T(1,128)}', space=vmem, size = 0x12000, scoped, tag = 'internal scratch']
  %s0 = inlined_call_operand.vmem [shape: f32[2,8,8,10], index: 0, kind: input, shape index: {}]
  %s1 = inlined_call_operand.vmem [shape: f32[8,1,1], index: 1, kind: input, shape index: {}]
  %s2 = inlined_call_operand.vmem [shape: f32[8,1,1], index: 2, kind: input, shape index: {}]
  %s3 = inlined_call_operand.vmem [shape: f32[16,8], index: 3, kind: input, shape index: {}]
  %s4 = inlined_call_operand.vmem [shape: f32[8,16], index: 4, kind: input, shape index: {}]
  %s5 = inlined_call_operand.hbm [shape: f32[2,8,16,16], index: 5, kind: output, shape index: {}]
  %s6 = sld [smem:[#allocation0]]
  $region53: #{downup_forward.5} parent=0
    _
  %s8 = ssub.s32 1, %s6
  %s9 = scalar_select 0, %s8, %s6
  $region1: #{downup_forward.5} parent=0
    #allocation2 [shape = 'u8[131072]{0}', space=vmem, size = 0x20000, scoped, tag = 'output window, operand 0']
    #allocation3 [shape = 's32[2]{0}', space=sflag, size = 0x8, scoped, tag = 'scoped memory for downup_forward.5']
    %10 = vsyncpa [#allocation3], 0
    %s11 = scalar_lea.sflag [#allocation3], 1
    %12 = vsyncpa %s11, 0
    loop: start=0, step=1, limit=4
    $region2: #{downup_forward.5} parent=1 // loop_pre_header
      _
    $region3: #{downup_forward.5} parent=1 // loop_header
      %s14 = sphi 0, %s18
      %p15 = scmp.ge.s32.totalorder %s14, 4
      %s24 = sphi 0, %s26
      %s27 = sphi 0, %s24
      %s28 = sphi 0, %s27
      %s44 = sphi 0, %s28
      %s48 = sphi 0, %s48
      %s50 = sphi 0, %s48
      %s51 = sphi 0, %s50
      %s65 = sphi 0, %s51
      %s69 = sphi 0, %s69
      %s71 = sphi 0, %s69
      %s72 = sphi 0, %s71
      %s86 = sphi 0, %s72
      %s90 = sphi 0, %s90
      %s92 = sphi 0, %s90
      %s93 = sphi 0, %s92
      %s107 = sphi 0, %s93
      %s111 = sphi 0, %s111
      %s113 = sphi 0, %s111
      %s114 = sphi 0, %s113
      %s128 = sphi 0, %s114
      %s134 = sphi 0, %s136
      %s137 = sphi 0, %s134
      %s138 = sphi 0, %s137
      %s154 = sphi 0, %s138
    $region4: #{downup_forward.5} parent=1 // loop_header_branch
      %17 = sbr.rel (%p15) target = $region8
    $region5: #{downup_forward.5} parent=1 // loop_body
      %s19 = ssub.s32 %s14, 1
      %s20 = ssub.s32 %s14, 2
      %s21 = sadd.s32 %s14, 1
      %s22 = ssub.s32 %s14, %s21
      %p23 = scmp.eq.s32.totalorder %s22, 0
      %s25 = sadd.s32 %s24, 1
      %s26 = scalar_select %p23, %s24, %s25
      %p29 = pneg %p23
      %p30 = scmp.eq.s32.totalorder %s14, 1
      %p31 = por %p29, %p30
      %p32 = scmp.ne.s32.totalorder %s24, %s27
      %p33 = scmp.eq.s32.totalorder %s14, 0
      %p34 = por %p32, %p33
      %p35 = scmp.ne.s32.totalorder %s24, %s27
      %p36 = scmp.eq.s32.totalorder %s19, 1
      %p37 = por %p35, %p36
      %p38 = scmp.ne.s32.totalorder %s27, %s28
      %p39 = scmp.eq.s32.totalorder %s19, 0
      %p40 = por %p38, %p39
      %p41 = scmp.ne.s32.totalorder %s27, %s28
      %p42 = scmp.eq.s32.totalorder %s20, 1
      %p43 = por %p41, %p42
      %p45 = scmp.ne.s32.totalorder %s28, %s44
      %p46 = scmp.eq.s32.totalorder %s20, 0
      %p47 = por %p45, %p46
      %s49 = sadd.s32 %s48, 1
      %p52 = scmp.eq.s32.totalorder %s14, 1
      %p53 = scmp.ne.s32.totalorder %s48, %s50
      %p54 = scmp.eq.s32.totalorder %s14, 0
      %p55 = por %p53, %p54
      %p56 = scmp.ne.s32.totalorder %s48, %s50
      %p57 = scmp.eq.s32.totalorder %s19, 1
      %p58 = por %p56, %p57
      %p59 = scmp.ne.s32.totalorder %s50, %s51
      %p60 = scmp.eq.s32.totalorder %s19, 0
      %p61 = por %p59, %p60
      %p62 = scmp.ne.s32.totalorder %s50, %s51
      %p63 = scmp.eq.s32.totalorder %s20, 1
      %p64 = por %p62, %p63
      %p66 = scmp.ne.s32.totalorder %s51, %s65
      %p67 = scmp.eq.s32.totalorder %s20, 0
      %p68 = por %p66, %p67
      %s70 = sadd.s32 %s69, 1
      %p73 = scmp.eq.s32.totalorder %s14, 1
      %p74 = scmp.ne.s32.totalorder %s69, %s71
      %p75 = scmp.eq.s32.totalorder %s14, 0
      %p76 = por %p74, %p75
      %p77 = scmp.ne.s32.totalorder %s69, %s71
      %p78 = scmp.eq.s32.totalorder %s19, 1
      %p79 = por %p77, %p78
      %p80 = scmp.ne.s32.totalorder %s71, %s72
      %p81 = scmp.eq.s32.totalorder %s19, 0
      %p82 = por %p80, %p81
      %p83 = scmp.ne.s32.totalorder %s71, %s72
      %p84 = scmp.eq.s32.totalorder %s20, 1
      %p85 = por %p83, %p84
      %p87 = scmp.ne.s32.totalorder %s72, %s86
      %p88 = scmp.eq.s32.totalorder %s20, 0
      %p89 = por %p87, %p88
      %s91 = sadd.s32 %s90, 1
      %p94 = scmp.eq.s32.totalorder %s14, 1
      %p95 = scmp.ne.s32.totalorder %s90, %s92
      %p96 = scmp.eq.s32.totalorder %s14, 0
      %p97 = por %p95, %p96
      %p98 = scmp.ne.s32.totalorder %s90, %s92
      %p99 = scmp.eq.s32.totalorder %s19, 1
      %p100 = por %p98, %p99
      %p101 = scmp.ne.s32.totalorder %s92, %s93
      %p102 = scmp.eq.s32.totalorder %s19, 0
      %p103 = por %p101, %p102
      %p104 = scmp.ne.s32.totalorder %s92, %s93
      %p105 = scmp.eq.s32.totalorder %s20, 1
      %p106 = por %p104, %p105
      %p108 = scmp.ne.s32.totalorder %s93, %s107
      %p109 = scmp.eq.s32.totalorder %s20, 0
      %p110 = por %p108, %p109
      %s112 = sadd.s32 %s111, 1
      %p115 = scmp.eq.s32.totalorder %s14, 1
      %p116 = scmp.ne.s32.totalorder %s111, %s113
      %p117 = scmp.eq.s32.totalorder %s14, 0
      %p118 = por %p116, %p117
      %p119 = scmp.ne.s32.totalorder %s111, %s113
      %p120 = scmp.eq.s32.totalorder %s19, 1
      %p121 = por %p119, %p120
      %p122 = scmp.ne.s32.totalorder %s113, %s114
      %p123 = scmp.eq.s32.totalorder %s19, 0
      %p124 = por %p122, %p123
      %p125 = scmp.ne.s32.totalorder %s113, %s114
      %p126 = scmp.eq.s32.totalorder %s20, 1
      %p127 = por %p125, %p126
      %p129 = scmp.ne.s32.totalorder %s114, %s128
      %p130 = scmp.eq.s32.totalorder %s20, 0
      %p131 = por %p129, %p130
      %s132 = ssub.s32 %s14, %s21
      %p133 = scmp.eq.s32.totalorder %s132, 0
      %s135 = sadd.s32 %s134, 1
      %s136 = scalar_select %p133, %s134, %s135
      %p139 = pneg %p133
      %p140 = scmp.eq.s32.totalorder %s14, 1
      %p141 = por %p139, %p140
      %p142 = scmp.ne.s32.totalorder %s134, %s137
      %p143 = scmp.eq.s32.totalorder %s14, 0
      %p144 = por %p142, %p143
      %p145 = scmp.ne.s32.totalorder %s134, %s137
      %p146 = scmp.eq.s32.totalorder %s19, 1
      %p147 = por %p145, %p146
      %p148 = scmp.ne.s32.totalorder %s137, %s138
      %p149 = scmp.eq.s32.totalorder %s19, 0
      %p150 = por %p148, %p149
      %p151 = scmp.ne.s32.totalorder %s137, %s138
      %p152 = scmp.eq.s32.totalorder %s20, 1
      %p153 = por %p151, %p152
      %p155 = scmp.ne.s32.totalorder %s138, %s154
      %p156 = scmp.eq.s32.totalorder %s20, 0
      %p157 = por %p155, %p156
      %p158 = scmp.le.s32.totalorder 1, %s14
      %p159 = scmp.lt.s32.totalorder %s14, 3
      %p160 = pnand %p158, %p159
      %p161 = pneg %p160
      // Predicated region
      $region9: #{downup_forward.5} parent=5 // pred_check
        _
      $region10: #{downup_forward.5} parent=5 // pred_check_branch
        %163 = sbr.rel (%p160) target = $region12
      $region11: #{downup_forward.5} parent=5 // pred_region
        %s164 = ssub.s32 %s14, 1
        // Predicated region
        $region13: #{downup_forward.5} parent=11 // pred_check
          %p165 = pneg %p61
        $region14: #{downup_forward.5} parent=11 // pred_check_branch
          %167 = sbr.rel (%p165) target = $region16
        $region15: #{downup_forward.5} parent=11 // pred_region
          _
        $region16: #{downup_forward.5} parent=11 // pred_fallthru
          _
        // Predicated region
        $region17: #{downup_forward.5} parent=11 // pred_check
          %p168 = pneg %p82
        $region18: #{downup_forward.5} parent=11 // pred_check_branch
          %170 = sbr.rel (%p168) target = $region20
        $region19: #{downup_forward.5} parent=11 // pred_region
          _
        $region20: #{downup_forward.5} parent=11 // pred_fallthru
          _
        // Predicated region
        $region21: #{downup_forward.5} parent=11 // pred_check
          %p171 = pneg %p103
        $region22: #{downup_forward.5} parent=11 // pred_check_branch
          %173 = sbr.rel (%p171) target = $region24
        $region23: #{downup_forward.5} parent=11 // pred_region
          _
        $region24: #{downup_forward.5} parent=11 // pred_fallthru
          _
        // Predicated region
        $region25: #{downup_forward.5} parent=11 // pred_check
          %p174 = pneg %p124
        $region26: #{downup_forward.5} parent=11 // pred_check_branch
          %176 = sbr.rel (%p174) target = $region28
        $region27: #{downup_forward.5} parent=11 // pred_region
          _
        $region28: #{downup_forward.5} parent=11 // pred_fallthru
          _
      $region12: #{downup_forward.5} parent=5 // pred_fallthru
        _
      %p177 = scmp.lt.s32.totalorder %s14, 2
      // Predicated region
      $region29: #{downup_forward.5} parent=5 // pred_check
        %p178 = pneg %p177
      $region30: #{downup_forward.5} parent=5 // pred_check_branch
        %180 = sbr.rel (%p178) target = $region32
      $region31: #{downup_forward.5} parent=5 // pred_region
        // Predicated region
        $region33: #{downup_forward.5} parent=31 // pred_check
          %p181 = pneg %p34
        $region34: #{downup_forward.5} parent=31 // pred_check_branch
          %183 = sbr.rel (%p181) target = $region36
        $region35: #{downup_forward.5} parent=31 // pred_region
          %p184 = scmp.lt.s32.totalorder %s14, 1
          %s185 = scalar_select %p184, %s14, 1
          %s186 = smul.addr %s185, 8
          %s187 = smul.addr %s186, 8
          %s188 = scalar_lea.vmem %s0, %s187
        $region36: #{downup_forward.5} parent=31 // pred_fallthru
          _
      $region32: #{downup_forward.5} parent=5 // pred_fallthru
        _
      %p189 = scmp.le.s32.totalorder 1, %s14
      %p190 = scmp.lt.s32.totalorder %s14, 3
      %p191 = pnand %p189, %p190
      %p192 = pneg %p191
      // Predicated region
      $region37: #{downup_forward.5} parent=5 // pred_check
        _
      $region38: #{downup_forward.5} parent=5 // pred_check_branch
        %194 = sbr.rel (%p191) target = $region40
      $region39: #{downup_forward.5} parent=5 // pred_region
        %s195 = ssub.s32 %s14, 1
        %p196 = scmp.lt.s32.totalorder %s19, 1
        %s197 = scalar_select %p196, %s19, 1
        %s198 = smul.addr %s197, 8
        %s199 = smul.addr %s198, 8
        %s200 = scalar_lea.vmem %s0, %s199
        %p201 = pneg %p40
        %p202 = pneg %p37
        %p203 = pneg %p61
        %p204 = pneg %p58
        %p205 = pneg %p82
        %p206 = pneg %p79
        %p207 = pneg %p103
        %p208 = pneg %p100
        %p209 = pneg %p124
        %p210 = pneg %p121
        %p211 = pneg %p150
        %p212 = pneg %p147
        %s213 = sand.u32 %s137, 1
        %s214 = scalar_lea.sflag [#allocation3], %s213
        %s215 = sand.u32 %s137, 1
        %s216 = smul.addr %s215, 128
        %s217 = scalar_lea.vmem [#allocation2], %s216
        %p218 = scmp.lt.s32.totalorder %s19, 1
        %s219 = scalar_select %p218, %s19, 1
        %s220 = smul.addr %s219, 8
        %s221 = smul.addr %s220, 8
        %s222 = scalar_lea.vmem %s0, %s221
        %v223 = vld [vmem:[%s222] sm:$0xff]
        %v224 = vld [vmem:[%s222 + $0x8] sm:$0xff]
        %v225 = vld [vmem:[%s222 + $0x10] sm:$0xff]
        %v226 = vld [vmem:[%s222 + $0x18] sm:$0xff]
        %v227 = vld [vmem:[%s222 + $0x20] sm:$0xff]
        %v228 = vld [vmem:[%s222 + $0x28] sm:$0xff]
        %v229 = vld [vmem:[%s222 + $0x30] sm:$0xff]
        %v230 = vld [vmem:[%s222 + $0x38] sm:$0xff]
        %v231 = vld [vmem:[%s1] sm:$0x1]
        %v232 = vld [vmem:[%s1 + $0x1] sm:$0x1]
        %v233 = vld [vmem:[%s1 + $0x2] sm:$0x1]
        %v234 = vld [vmem:[%s1 + $0x3] sm:$0x1]
        %v235 = vld [vmem:[%s1 + $0x4] sm:$0x1]
        %v236 = vld [vmem:[%s1 + $0x5] sm:$0x1]
        %v237 = vld [vmem:[%s1 + $0x6] sm:$0x1]
        %v238 = vld [vmem:[%s1 + $0x7] sm:$0x1]
        %v247 = vlaneseq
        %v248 = vshrl.u32 %v247, 7
        %v249 = vsub.s32 0, %v248
        %v250 = vrot.slane %v231, %v249
        %v251 = vlaneseq
        %v252 = vshrl.u32 %v251, 7
        %v253 = vsub.s32 0, %v252
        %v254 = vrot.slane %v232, %v253
        %v255 = vlaneseq
        %v256 = vshrl.u32 %v255, 7
        %v257 = vsub.s32 0, %v256
        %v258 = vrot.slane %v233, %v257
        %v259 = vlaneseq
        %v260 = vshrl.u32 %v259, 7
        %v261 = vsub.s32 0, %v260
        %v262 = vrot.slane %v234, %v261
        %v263 = vlaneseq
        %v264 = vshrl.u32 %v263, 7
        %v265 = vsub.s32 0, %v264
        %v266 = vrot.slane %v235, %v265
        %v267 = vlaneseq
        %v268 = vshrl.u32 %v267, 7
        %v269 = vsub.s32 0, %v268
        %v270 = vrot.slane %v236, %v269
        %v271 = vlaneseq
        %v272 = vshrl.u32 %v271, 7
        %v273 = vsub.s32 0, %v272
        %v274 = vrot.slane %v237, %v273
        %v275 = vlaneseq
        %v276 = vshrl.u32 %v275, 7
        %v277 = vsub.s32 0, %v276
        %v278 = vrot.slane %v238, %v277
        %279 = vset.pattern.permute.xlu0 0
        %280 = vperm.xlu0 %279, %v250
        %v281 = vpop.permute.xlu0 %280
        %283 = vset.pattern.permute.xlu0 0
        %284 = vperm.xlu0 %283, %v254
        %v285 = vpop.permute.xlu0 %284
        %287 = vset.pattern.permute.xlu0 0
        %288 = vperm.xlu0 %287, %v258
        %v289 = vpop.permute.xlu0 %288
        %291 = vset.pattern.permute.xlu0 0
        %292 = vperm.xlu0 %291, %v262
        %v293 = vpop.permute.xlu0 %292
        %295 = vset.pattern.permute.xlu0 0
        %296 = vperm.xlu0 %295, %v266
        %v297 = vpop.permute.xlu0 %296
        %299 = vset.pattern.permute.xlu0 0
        %300 = vperm.xlu0 %299, %v270
        %v301 = vpop.permute.xlu0 %300
        %303 = vset.pattern.permute.xlu0 0
        %304 = vperm.xlu0 %303, %v274
        %v305 = vpop.permute.xlu0 %304
        %307 = vset.pattern.permute.xlu0 0
        %308 = vperm.xlu0 %307, %v278
        %v309 = vpop.permute.xlu0 %308
        %v311 = vmul.f32 %v223, %v281
        %v312 = vmul.f32 %v224, %v285
        %v313 = vmul.f32 %v225, %v289
        %v314 = vmul.f32 %v226, %v293
        %v315 = vmul.f32 %v227, %v297
        %v316 = vmul.f32 %v228, %v301
        %v317 = vmul.f32 %v229, %v305
        %v318 = vmul.f32 %v230, %v309
        %v319 = vld [vmem:[%s2] sm:$0x1]
        %v320 = vld [vmem:[%s2 + $0x1] sm:$0x1]
        %v321 = vld [vmem:[%s2 + $0x2] sm:$0x1]
        %v322 = vld [vmem:[%s2 + $0x3] sm:$0x1]
        %v323 = vld [vmem:[%s2 + $0x4] sm:$0x1]
        %v324 = vld [vmem:[%s2 + $0x5] sm:$0x1]
        %v325 = vld [vmem:[%s2 + $0x6] sm:$0x1]
        %v326 = vld [vmem:[%s2 + $0x7] sm:$0x1]
        %v335 = vlaneseq
        %v336 = vshrl.u32 %v335, 7
        %v337 = vsub.s32 0, %v336
        %v338 = vrot.slane %v319, %v337
        %v339 = vlaneseq
        %v340 = vshrl.u32 %v339, 7
        %v341 = vsub.s32 0, %v340
        %v342 = vrot.slane %v320, %v341
        %v343 = vlaneseq
        %v344 = vshrl.u32 %v343, 7
        %v345 = vsub.s32 0, %v344
        %v346 = vrot.slane %v321, %v345
        %v347 = vlaneseq
        %v348 = vshrl.u32 %v347, 7
        %v349 = vsub.s32 0, %v348
        %v350 = vrot.slane %v322, %v349
        %v351 = vlaneseq
        %v352 = vshrl.u32 %v351, 7
        %v353 = vsub.s32 0, %v352
        %v354 = vrot.slane %v323, %v353
        %v355 = vlaneseq
        %v356 = vshrl.u32 %v355, 7
        %v357 = vsub.s32 0, %v356
        %v358 = vrot.slane %v324, %v357
        %v359 = vlaneseq
        %v360 = vshrl.u32 %v359, 7
        %v361 = vsub.s32 0, %v360
        %v362 = vrot.slane %v325, %v361
        %v363 = vlaneseq
        %v364 = vshrl.u32 %v363, 7
        %v365 = vsub.s32 0, %v364
        %v366 = vrot.slane %v326, %v365
        %367 = vset.pattern.permute.xlu0 0
        %368 = vperm.xlu0 %367, %v338
        %v369 = vpop.permute.xlu0 %368
        %371 = vset.pattern.permute.xlu0 0
        %372 = vperm.xlu0 %371, %v342
        %v373 = vpop.permute.xlu0 %372
        %375 = vset.pattern.permute.xlu0 0
        %376 = vperm.xlu0 %375, %v346
        %v377 = vpop.permute.xlu0 %376
        %379 = vset.pattern.permute.xlu0 0
        %380 = vperm.xlu0 %379, %v350
        %v381 = vpop.permute.xlu0 %380
        %383 = vset.pattern.permute.xlu0 0
        %384 = vperm.xlu0 %383, %v354
        %v385 = vpop.permute.xlu0 %384
        %387 = vset.pattern.permute.xlu0 0
        %388 = vperm.xlu0 %387, %v358
        %v389 = vpop.permute.xlu0 %388
        %391 = vset.pattern.permute.xlu0 0
        %392 = vperm.xlu0 %391, %v362
        %v393 = vpop.permute.xlu0 %392
        %395 = vset.pattern.permute.xlu0 0
        %396 = vperm.xlu0 %395, %v366
        %v397 = vpop.permute.xlu0 %396
        %v399 = vadd.f32 %v311, %v369
        %v400 = vadd.f32 %v312, %v373
        %v401 = vadd.f32 %v313, %v377
        %v402 = vadd.f32 %v314, %v381
        %v403 = vadd.f32 %v315, %v385
        %v404 = vadd.f32 %v316, %v389
        %v405 = vadd.f32 %v317, %v393
        %v406 = vadd.f32 %v318, %v397
        %v407 = vmul.f32 %v399, 0.2
        %v408 = vmul.f32 %v400, 0.2
        %v409 = vmul.f32 %v401, 0.2
        %v410 = vmul.f32 %v402, 0.2
        %v411 = vmul.f32 %v403, 0.2
        %v412 = vmul.f32 %v404, 0.2
        %v413 = vmul.f32 %v405, 0.2
        %v414 = vmul.f32 %v406, 0.2
        %v415 = vmax.f32 %v399, %v407
        %v416 = vmax.f32 %v400, %v408
        %v417 = vmax.f32 %v401, %v409
        %v418 = vmax.f32 %v402, %v410
        %v419 = vmax.f32 %v403, %v411
        %v420 = vmax.f32 %v404, %v412
        %v421 = vmax.f32 %v405, %v413
        %v422 = vmax.f32 %v406, %v414
        %v423 = vld [vmem:[%s3] sm:$0xff]
        %v424 = vld [vmem:[%s3 + $0x8] sm:$0xff]
        %vm425 = vcmask 64512
        %v427 = vsel %vm425, %v423, 0
        %v430 = vsel %vm425, %v424, 0
        %432 = vmatprep.subr.mxu0 0.0
        %433 = vmatpush1.msra.mxu0 %v415
        %434 = vmatprep.subr.mxu0 0.0
        %435 = vmatpush1.msra.mxu0 0.0
        %436 = vmatprep.subr.mxu0 0.0
        %437 = vmatpush1.msra.mxu0 0.0
        %438 = vmatprep.subr.mxu0 0.0
        %439 = vmatpush1.msra.mxu0 0.0
        %440 = vmatprep.subr.mxu0 0.0
        %441 = vmatpush1.msra.mxu0 0.0
        %442 = vmatprep.subr.mxu0 0.0
        %443 = vmatpush1.msra.mxu0 0.0
        %444 = vmatprep.subr.mxu0 0.0
        %445 = vmatpush1.msra.mxu0 0.0
        %446 = vmatprep.subr.mxu0 0.0
        %447 = vmatpush1.msra.mxu0 0.0
        %448 = vmatprep.subr.mxu0 0.0
        %449 = vmatpush1.msra.mxu0 0.0
        %450 = vmatprep.subr.mxu0 0.0
        %451 = vmatpush1.msra.mxu0 0.0
        %452 = vmatprep.subr.mxu0 0.0
        %453 = vmatpush1.msra.mxu0 0.0
        %454 = vmatprep.subr.mxu0 0.0
        %455 = vmatpush1.msra.mxu0 0.0
        %456 = vmatprep.subr.mxu0 0.0
        %457 = vmatpush1.msra.mxu0 0.0
        %458 = vmatprep.subr.mxu0 0.0
        %459 = vmatpush1.msra.mxu0 0.0
        %460 = vmatprep.subr.mxu0 0.0
        %461 = vmatpush1.msra.mxu0 0.0
        %462 = vmatprep.subr.mxu0 0.0
        %463 = vmatpush1.msra.mxu0 0.0
        %464 = vmatprep.subr.mxu0 0.0
        %465 = vmatpush1.msra.mxu0 0.0
        %466 = vmatprep.subr.mxu0 0.0
        %467 = vmatpush1.msra.mxu0 0.0
        %468 = vmatprep.subr.mxu0 0.0
        %469 = vmatpush1.msra.mxu0 0.0
        %470 = vmatprep.subr.mxu0 0.0
        %471 = vmatpush1.msra.mxu0 0.0
        %472 = vmatprep.subr.mxu0 0.0
        %473 = vmatpush1.msra.mxu0 0.0
        %474 = vmatprep.subr.mxu0 0.0
        %475 = vmatpush1.msra.mxu0 0.0
        %476 = vmatprep.subr.mxu0 0.0
        %477 = vmatpush1.msra.mxu0 0.0
        %478 = vmatprep.subr.mxu0 0.0
        %479 = vmatpush1.msra.mxu0 0.0
        %480 = vmatprep.subr.mxu0 0.0
        %481 = vmatpush1.msra.mxu0 0.0
        %482 = vmatprep.subr.mxu0 0.0
        %483 = vmatpush1.msra.mxu0 0.0
        %484 = vmatprep.subr.mxu0 0.0
        %485 = vmatpush1.msra.mxu0 0.0
        %486 = vmatprep.subr.mxu0 0.0
        %487 = vmatpush1.msra.mxu0 0.0
        %488 = vmatprep.subr.mxu0 0.0
        %489 = vmatpush1.msra.mxu0 0.0
        %490 = vmatprep.subr.mxu0 0.0
        %491 = vmatpush1.msra.mxu0 0.0
        %492 = vmatprep.subr.mxu0 0.0
        %493 = vmatpush1.msra.mxu0 0.0
        %494 = vmatprep.subr.mxu0 0.0
        %495 = vmatpush1.msra.mxu0 0.0
        %496 = vmatprep.mubr.f32.mxu0 0.0
        %497 = vmatmul.mubr.f32.gmra.mrb[0].mxu0 %v427
        %v498 = vpop.f32.mrb[0].mxu0
        %v499 = vadd.f32 0.0, %v498
        %v500 = vpop.f32.mrb[0].mxu0
        %501 = vmatprep.mubr.f32.mxu0 0.0
        %502 = vmatmul.mubr.f32.gmra.mrb[0].mxu0 %v430
        %v503 = vpop.f32.mrb[0].mxu0
        %v504 = vadd.f32 0.0, %v503
        %v505 = vpop.f32.mrb[0].mxu0
        %506 = vdwg.mxu0
        %v507 = vld [vmem:[%s4] sm:$0xff]
        %v509 = vsel %vm425, %v499, 0
        %v512 = vsel %vm425, %v504, 0
        %514 = vmatprep.subr.mxu0 0.0
        %515 = vmatpush1.msra.mxu0 %v507
        %516 = vmatprep.subr.mxu0 0.0
        %517 = vmatpush1.msra.mxu0 0.0
        %518 = vmatprep.subr.mxu0 0.0
        %519 = vmatpush1.msra.mxu0 0.0
        %520 = vmatprep.subr.mxu0 0.0
        %521 = vmatpush1.msra.mxu0 0.0
        %522 = vmatprep.subr.mxu0 0.0
        %523 = vmatpush1.msra.mxu0 0.0
        %524 = vmatprep.subr.mxu0 0.0
        %525 = vmatpush1.msra.mxu0 0.0
        %526 = vmatprep.subr.mxu0 0.0
        %527 = vmatpush1.msra.mxu0 0.0
        %528 = vmatprep.subr.mxu0 0.0
        %529 = vmatpush1.msra.mxu0 0.0
        %530 = vmatprep.subr.mxu0 0.0
        %531 = vmatpush1.msra.mxu0 0.0
        %532 = vmatprep.subr.mxu0 0.0
        %533 = vmatpush1.msra.mxu0 0.0
        %534 = vmatprep.subr.mxu0 0.0
        %535 = vmatpush1.msra.mxu0 0.0
        %536 = vmatprep.subr.mxu0 0.0
        %537 = vmatpush1.msra.mxu0 0.0
        %538 = vmatprep.subr.mxu0 0.0
        %539 = vmatpush1.msra.mxu0 0.0
        %540 = vmatprep.subr.mxu0 0.0
        %541 = vmatpush1.msra.mxu0 0.0
        %542 = vmatprep.subr.mxu0 0.0
        %543 = vmatpush1.msra.mxu0 0.0
        %544 = vmatprep.subr.mxu0 0.0
        %545 = vmatpush1.msra.mxu0 0.0
        %546 = vmatprep.subr.mxu0 0.0
        %547 = vmatpush1.msra.mxu0 0.0
        %548 = vmatprep.subr.mxu0 0.0
        %549 = vmatpush1.msra.mxu0 0.0
        %550 = vmatprep.subr.mxu0 0.0
        %551 = vmatpush1.msra.mxu0 0.0
        %552 = vmatprep.subr.mxu0 0.0
        %553 = vmatpush1.msra.mxu0 0.0
        %554 = vmatprep.subr.mxu0 0.0
        %555 = vmatpush1.msra.mxu0 0.0
        %556 = vmatprep.subr.mxu0 0.0
        %557 = vmatpush1.msra.mxu0 0.0
        %558 = vmatprep.subr.mxu0 0.0
        %559 = vmatpush1.msra.mxu0 0.0
        %560 = vmatprep.subr.mxu0 0.0
        %561 = vmatpush1.msra.mxu0 0.0
        %562 = vmatprep.subr.mxu0 0.0
        %563 = vmatpush1.msra.mxu0 0.0
        %564 = vmatprep.subr.mxu0 0.0
        %565 = vmatpush1.msra.mxu0 0.0
        %566 = vmatprep.subr.mxu0 0.0
        %567 = vmatpush1.msra.mxu0 0.0
        %568 = vmatprep.subr.mxu0 0.0
        %569 = vmatpush1.msra.mxu0 0.0
        %570 = vmatprep.subr.mxu0 0.0
        %571 = vmatpush1.msra.mxu0 0.0
        %572 = vmatprep.subr.mxu0 0.0
        %573 = vmatpush1.msra.mxu0 0.0
        %574 = vmatprep.subr.mxu0 0.0
        %575 = vmatpush1.msra.mxu0 0.0
        %576 = vmatprep.subr.mxu0 0.0
        %577 = vmatpush1.msra.mxu0 0.0
        %578 = vmatprep.mubr.f32.mxu0 0.0
        %579 = vmatmul.mubr.f32.gmra.mrb[0].mxu0 %v509
        %v580 = vpop.f32.mrb[0].mxu0
        %v581 = vadd.f32 0.0, %v580
        %v582 = vpop.f32.mrb[0].mxu0
        %583 = vmatprep.mubr.f32.mxu0 0.0
        %584 = vmatmul.mubr.f32.gmra.mrb[0].mxu0 %v512
        %v585 = vpop.f32.mrb[0].mxu0
        %v586 = vadd.f32 0.0, %v585
        %v587 = vpop.f32.mrb[0].mxu0
        %588 = vdwg.mxu0
        %vm589 = vcmask 130048
        %590 = vst.msk [vmem:[%s217] sm:$0xff] %vm589, %v581
        %591 = vst.msk [vmem:[%s217 + $0x8] sm:$0xff] %vm589, %v586
        %v592 = vld [vmem:[%s3] sm:$0xff]
        %v593 = vld [vmem:[%s3 + $0x8] sm:$0xff]
        %v595 = vsel %vm425, %v592, 0
        %v598 = vsel %vm425, %v593, 0
        %600 = vmatprep.subr.mxu0 0.0
        %601 = vmatpush1.msra.mxu0 %v416
        %602 = vmatprep.subr.mxu0 0.0
        %603 = vmatpush1.msra.mxu0 0.0
        %604 = vmatprep.subr.mxu0 0.0
        %605 = vmatpush1.msra.mxu0 0.0
        %606 = vmatprep.subr.mxu0 0.0
        %607 = vmatpush1.msra.mxu0 0.0
        %608 = vmatprep.subr.mxu0 0.0
        %609 = vmatpush1.msra.mxu0 0.0
        %610 = vmatprep.subr.mxu0 0.0
        %611 = vmatpush1.msra.mxu0 0.0
        %612 = vmatprep.subr.mxu0 0.0
        %613 = vmatpush1.msra.mxu0 0.0
        %614 = vmatprep.subr.mxu0 0.0
        %615 = vmatpush1.msra.mxu0 0.0
        %616 = vmatprep.subr.mxu0 0.0
        %617 = vmatpush1.msra.mxu0 0.0
        %618 = vmatprep.subr.mxu0 0.0
        %619 = vmatpush1.msra.mxu0 0.0
        %620 = vmatprep.subr.mxu0 0.0
        %621 = vmatpush1.msra.mxu0 0.0
        %622 = vmatprep.subr.mxu0 0.0
        %623 = vmatpush1.msra.mxu0 0.0
        %624 = vmatprep.subr.mxu0 0.0
        %625 = vmatpush1.msra.mxu0 0.0
        %626 = vmatprep.subr.mxu0 0.0
        %627 = vmatpush1.msra.mxu0 0.0
        %628 = vmatprep.subr.mxu0 0.0
        %629 = vmatpush1.msra.mxu0 0.0
        %630 = vmatprep.subr.mxu0 0.0
        %631 = vmatpush1.msra.mxu0 0.0
        %632 = vmatprep.subr.mxu0 0.0
        %633 = vmatpush1.msra.mxu0 0.0
        %634 = vmatprep.subr.mxu0 0.0
        %635 = vmatpush1.msra.mxu0 0.0
        %636 = vmatprep.subr.mxu0 0.0
        %637 = vmatpush1.msra.mxu0 0.0
        %638 = vmatprep.subr.mxu0 0.0
        %639 = vmatpush1.msra.mxu0 0.0
        %640 = vmatprep.subr.mxu0 0.0
        %641 = vmatpush1.msra.mxu0 0.0
        %642 = vmatprep.subr.mxu0 0.0
        %643 = vmatpush1.msra.mxu0 0.0
        %644 = vmatprep.subr.mxu0 0.0
        %645 = vmatpush1.msra.mxu0 0.0
        %646 = vmatprep.subr.mxu0 0.0
        %647 = vmatpush1.msra.mxu0 0.0
        %648 = vmatprep.subr.mxu0 0.0
        %649 = vmatpush1.msra.mxu0 0.0
        %650 = vmatprep.subr.mxu0 0.0
        %651 = vmatpush1.msra.mxu0 0.0
        %652 = vmatprep.subr.mxu0 0.0
        %653 = vmatpush1.msra.mxu0 0.0
        %654 = vmatprep.subr.mxu0 0.0
        %655 = vmatpush1.msra.mxu0 0.0
        %656 = vmatprep.subr.mxu0 0.0
        %657 = vmatpush1.msra.mxu0 0.0
        %658 = vmatprep.subr.mxu0 0.0
        %659 = vmatpush1.msra.mxu0 0.0
        %660 = vmatprep.subr.mxu0 0.0
        %661 = vmatpush1.msra.mxu0 0.0
        %662 = vmatprep.subr.mxu0 0.0
        %663 = vmatpush1.msra.mxu0 0.0
        %664 = vmatprep.mubr.f32.mxu0 0.0
        %665 = vmatmul.mubr.f32.gmra.mrb[0].mxu0 %v595
        %v666 = vpop.f32.mrb[0].mxu0
        %v667 = vadd.f32 0.0, %v666
        %v668 = vpop.f32.mrb[0].mxu0
        %669 = vmatprep.mubr.f32.mxu0 0.0
        %670 = vmatmul.mubr.f32.gmra.mrb[0].mxu0 %v598
        %v671 = vpop.f32.mrb[0].mxu0
        %v672 = vadd.f32 0.0, %v671
        %v673 = vpop.f32.mrb[0].mxu0
        %674 = vdwg.mxu0
        %v675 = vld [vmem:[%s4] sm:$0xff]
        %v677 = vsel %vm425, %v667, 0
        %v680 = vsel %vm425, %v672, 0
        %682 = vmatprep.subr.mxu0 0.0
        %683 = vmatpush1.msra.mxu0 %v675
        %684 = vmatprep.subr.mxu0 0.0
        %685 = vmatpush1.msra.mxu0 0.0
        %686 = vmatprep.subr.mxu0 0.0
        %687 = vmatpush1.msra.mxu0 0.0
        %688 = vmatprep.subr.mxu0 0.0
        %689 = vmatpush1.msra.mxu0 0.0
        %690 = vmatprep.subr.mxu0 0.0
        %691 = vmatpush1.msra.mxu0 0.0
        %692 = vmatprep.subr.mxu0 0.0
        %693 = vmatpush1.msra.mxu0 0.0
        %694 = vmatprep.subr.mxu0 0.0
        %695 = vmatpush1.msra.mxu0 0.0
        %696 = vmatprep.subr.mxu0 0.0
        %697 = vmatpush1.msra.mxu0 0.0
        %698 = vmatprep.subr.mxu0 0.0
        %699 = vmatpush1.msra.mxu0 0.0
        %700 = vmatprep.subr.mxu0 0.0
        %701 = vmatpush1.msra.mxu0 0.0
        %702 = vmatprep.subr.mxu0 0.0
        %703 = vmatpush1.msra.mxu0 0.0
        %704 = vmatprep.subr.mxu0 0.0
        %705 = vmatpush1.msra.mxu0 0.0
        %706 = vmatprep.subr.mxu0 0.0
        %707 = vmatpush1.msra.mxu0 0.0
        %708 = vmatprep.subr.mxu0 0.0
        %709 = vmatpush1.msra.mxu0 0.0
        %710 = vmatprep.subr.mxu0 0.0
        %711 = vmatpush1.msra.mxu0 0.0
        %712 = vmatprep.subr.mxu0 0.0
        %713 = vmatpush1.msra.mxu0 0.0
        %714 = vmatprep.subr.mxu0 0.0
        %715 = vmatpush1.msra.mxu0 0.0
        %716 = vmatprep.subr.mxu0 0.0
        %717 = vmatpush1.msra.mxu0 0.0
        %718 = vmatprep.subr.mxu0 0.0
        %719 = vmatpush1.msra.mxu0 0.0
        %720 = vmatprep.subr.mxu0 0.0
        %721 = vmatpush1.msra.mxu0 0.0
        %722 = vmatprep.subr.mxu0 0.0
        %723 = vmatpush1.msra.mxu0 0.0
        %724 = vmatprep.subr.mxu0 0.0
        %725 = vmatpush1.msra.mxu0 0.0
        %726 = vmatprep.subr.mxu0 0.0
        %727 = vmatpush1.msra.mxu0 0.0
        %728 = vmatprep.subr.mxu0 0.0
        %729 = vmatpush1.msra.mxu0 0.0
        %730 = vmatprep.subr.mxu0 0.0
        %731 = vmatpush1.msra.mxu0 0.0
        %732 = vmatprep.subr.mxu0 0.0
        %733 = vmatpush1.msra.mxu0 0.0
        %734 = vmatprep.subr.mxu0 0.0
        %735 = vmatpush1.msra.mxu0 0.0
        %736 = vmatprep.subr.mxu0 0.0
        %737 = vmatpush1.msra.mxu0 0.0
        %738 = vmatprep.subr.mxu0 0.0
        %739 = vmatpush1.msra.mxu0 0.0
        %740 = vmatprep.subr.mxu0 0.0
        %741 = vmatpush1.msra.mxu0 0.0
        %742 = vmatprep.subr.mxu0 0.0
        %743 = vmatpush1.msra.mxu0 0.0
        %744 = vmatprep.subr.mxu0 0.0
        %745 = vmatpush1.msra.mxu0 0.0
        %746 = vmatprep.mubr.f32.mxu0 0.0
        %747 = vmatmul.mubr.f32.gmra.mrb[0].mxu0 %v677
        %v748 = vpop.f32.mrb[0].mxu0
        %v749 = vadd.f32 0.0, %v748
        %v750 = vpop.f32.mrb[0].mxu0
        %751 = vmatprep.mubr.f32.mxu0 0.0
        %752 = vmatmul.mubr.f32.gmra.mrb[0].mxu0 %v680
        %v753 = vpop.f32.mrb[0].mxu0
        %v754 = vadd.f32 0.0, %v753
        %v755 = vpop.f32.mrb[0].mxu0
        %756 = vdwg.mxu0
        %s757 = scalar_lea.vmem %s217, 16 [#allocation2]
        %758 = vst.msk [vmem:[%s757] sm:$0xff] %vm589, %v749
        %759 = vst.msk [vmem:[%s757 + $0x8] sm:$0xff] %vm589, %v754
        %v760 = vld [vmem:[%s3] sm:$0xff]
        %v761 = vld [vmem:[%s3 + $0x8] sm:$0xff]
        %v763 = vsel %vm425, %v760, 0
        %v766 = vsel %vm425, %v761, 0
        %768 = vmatprep.subr.mxu0 0.0
        %769 = vmatpush1.msra.mxu0 %v417
        %770 = vmatprep.subr.mxu0 0.0
        %771 = vmatpush1.msra.mxu0 0.0
        %772 = vmatprep.subr.mxu0 0.0
        %773 = vmatpush1.msra.mxu0 0.0
        %774 = vmatprep.subr.mxu0 0.0
        %775 = vmatpush1.msra.mxu0 0.0
        %776 = vmatprep.subr.mxu0 0.0
        %777 = vmatpush1.msra.mxu0 0.0
        %778 = vmatprep.subr.mxu0 0.0
        %779 = vmatpush1.msra.mxu0 0.0
        %780 = vmatprep.subr.mxu0 0.0
        %781 = vmatpush1.msra.mxu0 0.0
        %782 = vmatprep.subr.mxu0 0.0
        %783 = vmatpush1.msra.mxu0 0.0
        %784 = vmatprep.subr.mxu0 0.0
        %785 = vmatpush1.msra.mxu0 0.0
        %786 = vmatprep.subr.mxu0 0.0
        %787 = vmatpush1.msra.mxu0 0.0
        %788 = vmatprep.subr.mxu0 0.0
        %789 = vmatpush1.msra.mxu0 0.0
        %790 = vmatprep.subr.mxu0 0.0
        %791 = vmatpush1.msra.mxu0 0.0
        %792 = vmatprep.subr.mxu0 0.0
        %793 = vmatpush1.msra.mxu0 0.0
        %794 = vmatprep.subr.mxu0 0.0
        %795 = vmatpush1.msra.mxu0 0.0
        %796 = vmatprep.subr.mxu0 0.0
        %797 = vmatpush1.msra.mxu0 0.0
        %798 = vmatprep.subr.mxu0 0.0
        %799 = vmatpush1.msra.mxu0 0.0
        %800 = vmatprep.subr.mxu0 0.0
        %801 = vmatpush1.msra.mxu0 0.0
        %802 = vmatprep.subr.mxu0 0.0
        %803 = vmatpush1.msra.mxu0 0.0
        %804 = vmatprep.subr.mxu0 0.0
        %805 = vmatpush1.msra.mxu0 0.0
        %806 = vmatprep.subr.mxu0 0.0
        %807 = vmatpush1.msra.mxu0 0.0
        %808 = vmatprep.subr.mxu0 0.0
        %809 = vmatpush1.msra.mxu0 0.0
        %810 = vmatprep.subr.mxu0 0.0
        %811 = vmatpush1.msra.mxu0 0.0
        %812 = vmatprep.subr.mxu0 0.0
        %813 = vmatpush1.msra.mxu0 0.0
        %814 = vmatprep.subr.mxu0 0.0
        %815 = vmatpush1.msra.mxu0 0.0
        %816 = vmatprep.subr.mxu0 0.0
        %817 = vmatpush1.msra.mxu0 0.0
        %818 = vmatprep.subr.mxu0 0.0
        %819 = vmatpush1.msra.mxu0 0.0
        %820 = vmatprep.subr.mxu0 0.0
        %821 = vmatpush1.msra.mxu0 0.0
        %822 = vmatprep.subr.mxu0 0.0
        %823 = vmatpush1.msra.mxu0 0.0
        %824 = vmatprep.subr.mxu0 0.0
        %825 = vmatpush1.msra.mxu0 0.0
        %826 = vmatprep.subr.mxu0 0.0
        %827 = vmatpush1.msra.mxu0 0.0
        %828 = vmatprep.subr.mxu0 0.0
        %829 = vmatpush1.msra.mxu0 0.0
        %830 = vmatprep.subr.mxu0 0.0
        %831 = vmatpush1.msra.mxu0 0.0
        %832 = vmatprep.mubr.f32.mxu0 0.0
        %833 = vmatmul.mubr.f32.gmra.mrb[0].mxu0 %v763
        %v834 = vpop.f32.mrb[0].mxu0
        %v835 = vadd.f32 0.0, %v834
        %v836 = vpop.f32.mrb[0].mxu0
        %837 = vmatprep.mubr.f32.mxu0 0.0
        %838 = vmatmul.mubr.f32.gmra.mrb[0].mxu0 %v766
        %v839 = vpop.f32.mrb[0].mxu0
        %v840 = vadd.f32 0.0, %v839
        %v841 = vpop.f32.mrb[0].mxu0
        %842 = vdwg.mxu0
        %v843 = vld [vmem:[%s4] sm:$0xff]
        %v845 = vsel %vm425, %v835, 0
        %v848 = vsel %vm425, %v840, 0
        %850 = vmatprep.subr.mxu0 0.0
        %851 = vmatpush1.msra.mxu0 %v843
        %852 = vmatprep.subr.mxu0 0.0
        %853 = vmatpush1.msra.mxu0 0.0
        %854 = vmatprep.subr.mxu0 0.0
        %855 = vmatpush1.msra.mxu0 0.0
        %856 = vmatprep.subr.mxu0 0.0
        %857 = vmatpush1.msra.mxu0 0.0
        %858 = vmatprep.subr.mxu0 0.0
        %859 = vmatpush1.msra.mxu0 0.0
        %860 = vmatprep.subr.mxu0 0.0
        %861 = vmatpush1.msra.mxu0 0.0
        %862 = vmatprep.subr.mxu0 0.0
        %863 = vmatpush1.msra.mxu0 0.0
        %864 = vmatprep.subr.mxu0 0.0
        %865 = vmatpush1.msra.mxu0 0.0
        %866 = vmatprep.subr.mxu0 0.0
        %867 = vmatpush1.msra.mxu0 0.0
        %868 = vmatprep.subr.mxu0 0.0
        %869 = vmatpush1.msra.mxu0 0.0
        %870 = vmatprep.subr.mxu0 0.0
        %871 = vmatpush1.msra.mxu0 0.0
        %872 = vmatprep.subr.mxu0 0.0
        %873 = vmatpush1.msra.mxu0 0.0
        %874 = vmatprep.subr.mxu0 0.0
        %875 = vmatpush1.msra.mxu0 0.0
        %876 = vmatprep.subr.mxu0 0.0
        %877 = vmatpush1.msra.mxu0 0.0
        %878 = vmatprep.subr.mxu0 0.0
        %879 = vmatpush1.msra.mxu0 0.0
        %880 = vmatprep.subr.mxu0 0.0
        %881 = vmatpush1.msra.mxu0 0.0
        %882 = vmatprep.subr.mxu0 0.0
        %883 = vmatpush1.msra.mxu0 0.0
        %884 = vmatprep.subr.mxu0 0.0
        %885 = vmatpush1.msra.mxu0 0.0
        %886 = vmatprep.subr.mxu0 0.0
        %887 = vmatpush1.msra.mxu0 0.0
        %888 = vmatprep.subr.mxu0 0.0
        %889 = vmatpush1.msra.mxu0 0.0
        %890 = vmatprep.subr.mxu0 0.0
        %891 = vmatpush1.msra.mxu0 0.0
        %892 = vmatprep.subr.mxu0 0.0
        %893 = vmatpush1.msra.mxu0 0.0
        %894 = vmatprep.subr.mxu0 0.0
        %895 = vmatpush1.msra.mxu0 0.0
        %896 = vmatprep.subr.mxu0 0.0
        %897 = vmatpush1.msra.mxu0 0.0
        %898 = vmatprep.subr.mxu0 0.0
        %899 = vmatpush1.msra.mxu0 0.0
        %900 = vmatprep.subr.mxu0 0.0
        %901 = vmatpush1.msra.mxu0 0.0
        %902 = vmatprep.subr.mxu0 0.0
        %903 = vmatpush1.msra.mxu0 0.0
        %904 = vmatprep.subr.mxu0 0.0
        %905 = vmatpush1.msra.mxu0 0.0
        %906 = vmatprep.subr.mxu0 0.0
        %907 = vmatpush1.msra.mxu0 0.0
        %908 = vmatprep.subr.mxu0 0.0
        %909 = vmatpush1.msra.mxu0 0.0
        %910 = vmatprep.subr.mxu0 0.0
        %911 = vmatpush1.msra.mxu0 0.0
        %912 = vmatprep.subr.mxu0 0.0
        %913 = vmatpush1.msra.mxu0 0.0
        %914 = vmatprep.mubr.f32.mxu0 0.0
        %915 = vmatmul.mubr.f32.gmra.mrb[0].mxu0 %v845
        %v916 = vpop.f32.mrb[0].mxu0
        %v917 = vadd.f32 0.0, %v916
        %v918 = vpop.f32.mrb[0].mxu0
        %919 = vmatprep.mubr.f32.mxu0 0.0
        %920 = vmatmul.mubr.f32.gmra.mrb[0].mxu0 %v848
        %v921 = vpop.f32.mrb[0].mxu0
        %v922 = vadd.f32 0.0, %v921
        %v923 = vpop.f32.mrb[0].mxu0
        %924 = vdwg.mxu0
        %s925 = scalar_lea.vmem %s217, 32 [#allocation2]
        %926 = vst.msk [vmem:[%s925] sm:$0xff] %vm589, %v917
        %927 = vst.msk [vmem:[%s925 + $0x8] sm:$0xff] %vm589, %v922
        %v928 = vld [vmem:[%s3] sm:$0xff]
        %v929 = vld [vmem:[%s3 + $0x8] sm:$0xff]
        %v931 = vsel %vm425, %v928, 0
        %v934 = vsel %vm425, %v929, 0
        %936 = vmatprep.subr.mxu0 0.0
        %937 = vmatpush1.msra.mxu0 %v418
        %938 = vmatprep.subr.mxu0 0.0
        %939 = vmatpush1.msra.mxu0 0.0
        %940 = vmatprep.subr.mxu0 0.0
        %941 = vmatpush1.msra.mxu0 0.0
        %942 = vmatprep.subr.mxu0 0.0
        %943 = vmatpush1.msra.mxu0 0.0
        %944 = vmatprep.subr.mxu0 0.0
        %945 = vmatpush1.msra.mxu0 0.0
        %946 = vmatprep.subr.mxu0 0.0
        %947 = vmatpush1.msra.mxu0 0.0
        %948 = vmatprep.subr.mxu0 0.0
        %949 = vmatpush1.msra.mxu0 0.0
        %950 = vmatprep.subr.mxu0 0.0
        %951 = vmatpush1.msra.mxu0 0.0
        %952 = vmatprep.subr.mxu0 0.0
        %953 = vmatpush1.msra.mxu0 0.0
        %954 = vmatprep.subr.mxu0 0.0
        %955 = vmatpush1.msra.mxu0 0.0
        %956 = vmatprep.subr.mxu0 0.0
        %957 = vmatpush1.msra.mxu0 0.0
        %958 = vmatprep.subr.mxu0 0.0
        %959 = vmatpush1.msra.mxu0 0.0
        %960 = vmatprep.subr.mxu0 0.0
        %961 = vmatpush1.msra.mxu0 0.0
        %962 = vmatprep.subr.mxu0 0.0
        %963 = vmatpush1.msra.mxu0 0.0
        %964 = vmatprep.subr.mxu0 0.0
        %965 = vmatpush1.msra.mxu0 0.0
        %966 = vmatprep.subr.mxu0 0.0
        %967 = vmatpush1.msra.mxu0 0.0
        %968 = vmatprep.subr.mxu0 0.0
        %969 = vmatpush1.msra.mxu0 0.0
        %970 = vmatprep.subr.mxu0 0.0
        %971 = vmatpush1.msra.mxu0 0.0
        %972 = vmatprep.subr.mxu0 0.0
        %973 = vmatpush1.msra.mxu0 0.0
        %974 = vmatprep.subr.mxu0 0.0
        %975 = vmatpush1.msra.mxu0 0.0
        %976 = vmatprep.subr.mxu0 0.0
        %977 = vmatpush1.msra.mxu0 0.0
        %978 = vmatprep.subr.mxu0 0.0
        %979 = vmatpush1.msra.mxu0 0.0
        %980 = vmatprep.subr.mxu0 0.0
        %981 = vmatpush1.msra.mxu0 0.0
        %982 = vmatprep.subr.mxu0 0.0
        %983 = vmatpush1.msra.mxu0 0.0
        %984 = vmatprep.subr.mxu0 0.0
        %985 = vmatpush1.msra.mxu0 0.0
        %986 = vmatprep.subr.mxu0 0.0
        %987 = vmatpush1.msra.mxu0 0.0
        %988 = vmatprep.subr.mxu0 0.0
        %989 = vmatpush1.msra.mxu0 0.0
        %990 = vmatprep.subr.mxu0 0.0
        %991 = vmatpush1.msra.mxu0 0.0
        %992 = vmatprep.subr.mxu0 0.0
        %993 = vmatpush1.msra.mxu0 0.0
        %994 = vmatprep.subr.mxu0 0.0
        %995 = vmatpush1.msra.mxu0 0.0
        %996 = vmatprep.subr.mxu0 0.0
        %997 = vmatpush1.msra.mxu0 0.0
        %998 = vmatprep.subr.mxu0 0.0
        %999 = vmatpush1.msra.mxu0 0.0
        %1000 = vmatprep.mubr.f32.mxu0 0.0
        %1001 = vmatmul.mubr.f32.gmra.mrb[0].mxu0 %v931
        %v1002 = vpop.f32.mrb[0].mxu0
        %v1003 = vadd.f32 0.0, %v1002
        %v1004 = vpop.f32.mrb[0].mxu0
        %1005 = vmatprep.mubr.f32.mxu0 0.0
        %1006 = vmatmul.mubr.f32.gmra.mrb[0].mxu0 %v934
        %v1007 = vpop.f32.mrb[0].mxu0
        %v1008 = vadd.f32 0.0, %v1007
        %v1009 = vpop.f32.mrb[0].mxu0
        %1010 = vdwg.mxu0
        %v1011 = vld [vmem:[%s4] sm:$0xff]
        %v1013 = vsel %vm425, %v1003, 0
        %v1016 = vsel %vm425, %v1008, 0
        %1018 = vmatprep.subr.mxu0 0.0
        %1019 = vmatpush1.msra.mxu0 %v1011
        %1020 = vmatprep.subr.mxu0 0.0
        %1021 = vmatpush1.msra.mxu0 0.0
        %1022 = vmatprep.subr.mxu0 0.0
        %1023 = vmatpush1.msra.mxu0 0.0
        %1024 = vmatprep.subr.mxu0 0.0
        %1025 = vmatpush1.msra.mxu0 0.0
        %1026 = vmatprep.subr.mxu0 0.0
        %1027 = vmatpush1.msra.mxu0 0.0
        %1028 = vmatprep.subr.mxu0 0.0
        %1029 = vmatpush1.msra.mxu0 0.0
        %1030 = vmatprep.subr.mxu0 0.0
        %1031 = vmatpush1.msra.mxu0 0.0
        %1032 = vmatprep.subr.mxu0 0.0
        %1033 = vmatpush1.msra.mxu0 0.0
        %1034 = vmatprep.subr.mxu0 0.0
        %1035 = vmatpush1.msra.mxu0 0.0
        %1036 = vmatprep.subr.mxu0 0.0
        %1037 = vmatpush1.msra.mxu0 0.0
        %1038 = vmatprep.subr.mxu0 0.0
        %1039 = vmatpush1.msra.mxu0 0.0
        %1040 = vmatprep.subr.mxu0 0.0
        %1041 = vmatpush1.msra.mxu0 0.0
        %1042 = vmatprep.subr.mxu0 0.0
        %1043 = vmatpush1.msra.mxu0 0.0
        %1044 = vmatprep.subr.mxu0 0.0
        %1045 = vmatpush1.msra.mxu0 0.0
        %1046 = vmatprep.subr.mxu0 0.0
        %1047 = vmatpush1.msra.mxu0 0.0
        %1048 = vmatprep.subr.mxu0 0.0
        %1049 = vmatpush1.msra.mxu0 0.0
        %1050 = vmatprep.subr.mxu0 0.0
        %1051 = vmatpush1.msra.mxu0 0.0
        %1052 = vmatprep.subr.mxu0 0.0
        %1053 = vmatpush1.msra.mxu0 0.0
        %1054 = vmatprep.subr.mxu0 0.0
        %1055 = vmatpush1.msra.mxu0 0.0
        %1056 = vmatprep.subr.mxu0 0.0
        %1057 = vmatpush1.msra.mxu0 0.0
        %1058 = vmatprep.subr.mxu0 0.0
        %1059 = vmatpush1.msra.mxu0 0.0
        %1060 = vmatprep.subr.mxu0 0.0
        %1061 = vmatpush1.msra.mxu0 0.0
        %1062 = vmatprep.subr.mxu0 0.0
        %1063 = vmatpush1.msra.mxu0 0.0
        %1064 = vmatprep.subr.mxu0 0.0
        %1065 = vmatpush1.msra.mxu0 0.0
        %1066 = vmatprep.subr.mxu0 0.0
        %1067 = vmatpush1.msra.mxu0 0.0
        %1068 = vmatprep.subr.mxu0 0.0
        %1069 = vmatpush1.msra.mxu0 0.0
        %1070 = vmatprep.subr.mxu0 0.0
        %1071 = vmatpush1.msra.mxu0 0.0
        %1072 = vmatprep.subr.mxu0 0.0
        %1073 = vmatpush1.msra.mxu0 0.0
        %1074 = vmatprep.subr.mxu0 0.0
        %1075 = vmatpush1.msra.mxu0 0.0
        %1076 = vmatprep.subr.mxu0 0.0
        %1077 = vmatpush1.msra.mxu0 0.0
        %1078 = vmatprep.subr.mxu0 0.0
        %1079 = vmatpush1.msra.mxu0 0.0
        %1080 = vmatprep.subr.mxu0 0.0
        %1081 = vmatpush1.msra.mxu0 0.0
        %1082 = vmatprep.mubr.f32.mxu0 0.0
        %1083 = vmatmul.mubr.f32.gmra.mrb[0].mxu0 %v1013
        %v1084 = vpop.f32.mrb[0].mxu0
        %v1085 = vadd.f32 0.0, %v1084
        %v1086 = vpop.f32.mrb[0].mxu0
        %1087 = vmatprep.mubr.f32.mxu0 0.0
        %1088 = vmatmul.mubr.f32.gmra.mrb[0].mxu0 %v1016
        %v1089 = vpop.f32.mrb[0].mxu0
        %v1090 = vadd.f32 0.0, %v1089
        %v1091 = vpop.f32.mrb[0].mxu0
        %1092 = vdwg.mxu0
        %s1093 = scalar_lea.vmem %s217, 48 [#allocation2]
        %1094 = vst.msk [vmem:[%s1093] sm:$0xff] %vm589, %v1085
        %1095 = vst.msk [vmem:[%s1093 + $0x8] sm:$0xff] %vm589, %v1090
        %v1096 = vld [vmem:[%s3] sm:$0xff]
        %v1097 = vld [vmem:[%s3 + $0x8] sm:$0xff]
        %v1099 = vsel %vm425, %v1096, 0
        %v1102 = vsel %vm425, %v1097, 0
        %1104 = vmatprep.subr.mxu0 0.0
        %1105 = vmatpush1.msra.mxu0 %v419
        %1106 = vmatprep.subr.mxu0 0.0
        %1107 = vmatpush1.msra.mxu0 0.0
        %1108 = vmatprep.subr.mxu0 0.0
        %1109 = vmatpush1.msra.mxu0 0.0
        %1110 = vmatprep.subr.mxu0 0.0
        %1111 = vmatpush1.msra.mxu0 0.0
        %1112 = vmatprep.subr.mxu0 0.0
        %1113 = vmatpush1.msra.mxu0 0.0
        %1114 = vmatprep.subr.mxu0 0.0
        %1115 = vmatpush1.msra.mxu0 0.0
        %1116 = vmatprep.subr.mxu0 0.0
        %1117 = vmatpush1.msra.mxu0 0.0
        %1118 = vmatprep.subr.mxu0 0.0
        %1119 = vmatpush1.msra.mxu0 0.0
        %1120 = vmatprep.subr.mxu0 0.0
        %1121 = vmatpush1.msra.mxu0 0.0
        %1122 = vmatprep.subr.mxu0 0.0
        %1123 = vmatpush1.msra.mxu0 0.0
        %1124 = vmatprep.subr.mxu0 0.0
        %1125 = vmatpush1.msra.mxu0 0.0
        %1126 = vmatprep.subr.mxu0 0.0
        %1127 = vmatpush1.msra.mxu0 0.0
        %1128 = vmatprep.subr.mxu0 0.0
        %1129 = vmatpush1.msra.mxu0 0.0
        %1130 = vmatprep.subr.mxu0 0.0
        %1131 = vmatpush1.msra.mxu0 0.0
        %1132 = vmatprep.subr.mxu0 0.0
        %1133 = vmatpush1.msra.mxu0 0.0
        %1134 = vmatprep.subr.mxu0 0.0
        %1135 = vmatpush1.msra.mxu0 0.0
        %1136 = vmatprep.subr.mxu0 0.0
        %1137 = vmatpush1.msra.mxu0 0.0
        %1138 = vmatprep.subr.mxu0 0.0
        %1139 = vmatpush1.msra.mxu0 0.0
        %1140 = vmatprep.subr.mxu0 0.0
        %1141 = vmatpush1.msra.mxu0 0.0
        %1142 = vmatprep.subr.mxu0 0.0
        %1143 = vmatpush1.msra.mxu0 0.0
        %1144 = vmatprep.subr.mxu0 0.0
        %1145 = vmatpush1.msra.mxu0 0.0
        %1146 = vmatprep.subr.mxu0 0.0
        %1147 = vmatpush1.msra.mxu0 0.0
        %1148 = vmatprep.subr.mxu0 0.0
        %1149 = vmatpush1.msra.mxu0 0.0
        %1150 = vmatprep.subr.mxu0 0.0
        %1151 = vmatpush1.msra.mxu0 0.0
        %1152 = vmatprep.subr.mxu0 0.0
        %1153 = vmatpush1.msra.mxu0 0.0
        %1154 = vmatprep.subr.mxu0 0.0
        %1155 = vmatpush1.msra.mxu0 0.0
        %1156 = vmatprep.subr.mxu0 0.0
        %1157 = vmatpush1.msra.mxu0 0.0
        %1158 = vmatprep.subr.mxu0 0.0
        %1159 = vmatpush1.msra.mxu0 0.0
        %1160 = vmatprep.subr.mxu0 0.0
        %1161 = vmatpush1.msra.mxu0 0.0
        %1162 = vmatprep.subr.mxu0 0.0
        %1163 = vmatpush1.msra.mxu0 0.0
        %1164 = vmatprep.subr.mxu0 0.0
        %1165 = vmatpush1.msra.mxu0 0.0
        %1166 = vmatprep.subr.mxu0 0.0
        %1167 = vmatpush1.msra.mxu0 0.0
        %1168 = vmatprep.mubr.f32.mxu0 0.0
        %1169 = vmatmul.mubr.f32.gmra.mrb[0].mxu0 %v1099
        %v1170 = vpop.f32.mrb[0].mxu0
        %v1171 = vadd.f32 0.0, %v1170
        %v1172 = vpop.f32.mrb[0].mxu0
        %1173 = vmatprep.mubr.f32.mxu0 0.0
        %1174 = vmatmul.mubr.f32.gmra.mrb[0].mxu0 %v1102
        %v1175 = vpop.f32.mrb[0].mxu0
        %v1176 = vadd.f32 0.0, %v1175
        %v1177 = vpop.f32.mrb[0].mxu0
        %1178 = vdwg.mxu0
        %v1179 = vld [vmem:[%s4] sm:$0xff]
        %v1181 = vsel %vm425, %v1171, 0
        %v1184 = vsel %vm425, %v1176, 0
        %1186 = vmatprep.subr.mxu0 0.0
        %1187 = vmatpush1.msra.mxu0 %v1179
        %1188 = vmatprep.subr.mxu0 0.0
        %1189 = vmatpush1.msra.mxu0 0.0
        %1190 = vmatprep.subr.mxu0 0.0
        %1191 = vmatpush1.msra.mxu0 0.0
        %1192 = vmatprep.subr.mxu0 0.0
        %1193 = vmatpush1.msra.mxu0 0.0
        %1194 = vmatprep.subr.mxu0 0.0
        %1195 = vmatpush1.msra.mxu0 0.0
        %1196 = vmatprep.subr.mxu0 0.0
        %1197 = vmatpush1.msra.mxu0 0.0
        %1198 = vmatprep.subr.mxu0 0.0
        %1199 = vmatpush1.msra.mxu0 0.0
        %1200 = vmatprep.subr.mxu0 0.0
        %1201 = vmatpush1.msra.mxu0 0.0
        %1202 = vmatprep.subr.mxu0 0.0
        %1203 = vmatpush1.msra.mxu0 0.0
        %1204 = vmatprep.subr.mxu0 0.0
        %1205 = vmatpush1.msra.mxu0 0.0
        %1206 = vmatprep.subr.mxu0 0.0
        %1207 = vmatpush1.msra.mxu0 0.0
        %1208 = vmatprep.subr.mxu0 0.0
        %1209 = vmatpush1.msra.mxu0 0.0
        %1210 = vmatprep.subr.mxu0 0.0
        %1211 = vmatpush1.msra.mxu0 0.0
        %1212 = vmatprep.subr.mxu0 0.0
        %1213 = vmatpush1.msra.mxu0 0.0
        %1214 = vmatprep.subr.mxu0 0.0
        %1215 = vmatpush1.msra.mxu0 0.0
        %1216 = vmatprep.subr.mxu0 0.0
        %1217 = vmatpush1.msra.mxu0 0.0
        %1218 = vmatprep.subr.mxu0 0.0
        %1219 = vmatpush1.msra.mxu0 0.0
        %1220 = vmatprep.subr.mxu0 0.0
        %1221 = vmatpush1.msra.mxu0 0.0
        %1222 = vmatprep.subr.mxu0 0.0
        %1223 = vmatpush1.msra.mxu0 0.0
        %1224 = vmatprep.subr.mxu0 0.0
        %1225 = vmatpush1.msra.mxu0 0.0
        %1226 = vmatprep.subr.mxu0 0.0
        %1227 = vmatpush1.msra.mxu0 0.0
        %1228 = vmatprep.subr.mxu0 0.0
        %1229 = vmatpush1.msra.mxu0 0.0
        %1230 = vmatprep.subr.mxu0 0.0
        %1231 = vmatpush1.msra.mxu0 0.0
        %1232 = vmatprep.subr.mxu0 0.0
        %1233 = vmatpush1.msra.mxu0 0.0
        %1234 = vmatprep.subr.mxu0 0.0
        %1235 = vmatpush1.msra.mxu0 0.0
        %1236 = vmatprep.subr.mxu0 0.0
        %1237 = vmatpush1.msra.mxu0 0.0
        %1238 = vmatprep.subr.mxu0 0.0
        %1239 = vmatpush1.msra.mxu0 0.0
        %1240 = vmatprep.subr.mxu0 0.0
        %1241 = vmatpush1.msra.mxu0 0.0
        %1242 = vmatprep.subr.mxu0 0.0
        %1243 = vmatpush1.msra.mxu0 0.0
        %1244 = vmatprep.subr.mxu0 0.0
        %1245 = vmatpush1.msra.mxu0 0.0
        %1246 = vmatprep.subr.mxu0 0.0
        %1247 = vmatpush1.msra.mxu0 0.0
        %1248 = vmatprep.subr.mxu0 0.0
        %1249 = vmatpush1.msra.mxu0 0.0
        %1250 = vmatprep.mubr.f32.mxu0 0.0
        %1251 = vmatmul.mubr.f32.gmra.mrb[0].mxu0 %v1181
        %v1252 = vpop.f32.mrb[0].mxu0
        %v1253 = vadd.f32 0.0, %v1252
        %v1254 = vpop.f32.mrb[0].mxu0
        %1255 = vmatprep.mubr.f32.mxu0 0.0
        %1256 = vmatmul.mubr.f32.gmra.mrb[0].mxu0 %v1184
        %v1257 = vpop.f32.mrb[0].mxu0
        %v1258 = vadd.f32 0.0, %v1257
        %v1259 = vpop.f32.mrb[0].mxu0
        %1260 = vdwg.mxu0
        %s1261 = scalar_lea.vmem %s217, 64 [#allocation2]
        %1262 = vst.msk [vmem:[%s1261] sm:$0xff] %vm589, %v1253
        %1263 = vst.msk [vmem:[%s1261 + $0x8] sm:$0xff] %vm589, %v1258
        %v1264 = vld [vmem:[%s3] sm:$0xff]
        %v1265 = vld [vmem:[%s3 + $0x8] sm:$0xff]
        %v1267 = vsel %vm425, %v1264, 0
        %v1270 = vsel %vm425, %v1265, 0
        %1272 = vmatprep.subr.mxu0 0.0
        %1273 = vmatpush1.msra.mxu0 %v420
        %1274 = vmatprep.subr.mxu0 0.0
        %1275 = vmatpush1.msra.mxu0 0.0
        %1276 = vmatprep.subr.mxu0 0.0
        %1277 = vmatpush1.msra.mxu0 0.0
        %1278 = vmatprep.subr.mxu0 0.0
        %1279 = vmatpush1.msra.mxu0 0.0
        %1280 = vmatprep.subr.mxu0 0.0
        %1281 = vmatpush1.msra.mxu0 0.0
        %1282 = vmatprep.subr.mxu0 0.0
        %1283 = vmatpush1.msra.mxu0 0.0
        %1284 = vmatprep.subr.mxu0 0.0
        %1285 = vmatpush1.msra.mxu0 0.0
        %1286 = vmatprep.subr.mxu0 0.0
        %1287 = vmatpush1.msra.mxu0 0.0
        %1288 = vmatprep.subr.mxu0 0.0
        %1289 = vmatpush1.msra.mxu0 0.0
        %1290 = vmatprep.subr.mxu0 0.0
        %1291 = vmatpush1.msra.mxu0 0.0
        %1292 = vmatprep.subr.mxu0 0.0
        %1293 = vmatpush1.msra.mxu0 0.0
        %1294 = vmatprep.subr.mxu0 0.0
        %1295 = vmatpush1.msra.mxu0 0.0
        %1296 = vmatprep.subr.mxu0 0.0
        %1297 = vmatpush1.msra.mxu0 0.0
        %1298 = vmatprep.subr.mxu0 0.0
        %1299 = vmatpush1.msra.mxu0 0.0
        %1300 = vmatprep.subr.mxu0 0.0
        %1301 = vmatpush1.msra.mxu0 0.0
        %1302 = vmatprep.subr.mxu0 0.0
        %1303 = vmatpush1.msra.mxu0 0.0
        %1304 = vmatprep.subr.mxu0 0.0
        %1305 = vmatpush1.msra.mxu0 0.0
        %1306 = vmatprep.subr.mxu0 0.0
        %1307 = vmatpush1.msra.mxu0 0.0
        %1308 = vmatprep.subr.mxu0 0.0
        %1309 = vmatpush1.msra.mxu0 0.0
        %1310 = vmatprep.subr.mxu0 0.0
        %1311 = vmatpush1.msra.mxu0 0.0
        %1312 = vmatprep.subr.mxu0 0.0
        %1313 = vmatpush1.msra.mxu0 0.0
        %1314 = vmatprep.subr.mxu0 0.0
        %1315 = vmatpush1.msra.mxu0 0.0
        %1316 = vmatprep.subr.mxu0 0.0
        %1317 = vmatpush1.msra.mxu0 0.0
        %1318 = vmatprep.subr.mxu0 0.0
        %1319 = vmatpush1.msra.mxu0 0.0
        %1320 = vmatprep.subr.mxu0 0.0
        %1321 = vmatpush1.msra.mxu0 0.0
        %1322 = vmatprep.subr.mxu0 0.0
        %1323 = vmatpush1.msra.mxu0 0.0
        %1324 = vmatprep.subr.mxu0 0.0
        %1325 = vmatpush1.msra.mxu0 0.0
        %1326 = vmatprep.subr.mxu0 0.0
        %1327 = vmatpush1.msra.mxu0 0.0
        %1328 = vmatprep.subr.mxu0 0.0
        %1329 = vmatpush1.msra.mxu0 0.0
        %1330 = vmatprep.subr.mxu0 0.0
        %1331 = vmatpush1.msra.mxu0 0.0
        %1332 = vmatprep.subr.mxu0 0.0
        %1333 = vmatpush1.msra.mxu0 0.0
        %1334 = vmatprep.subr.mxu0 0.0
        %1335 = vmatpush1.msra.mxu0 0.0
        %1336 = vmatprep.mubr.f32.mxu0 0.0
        %1337 = vmatmul.mubr.f32.gmra.mrb[0].mxu0 %v1267
        %v1338 = vpop.f32.mrb[0].mxu0
        %v1339 = vadd.f32 0.0, %v1338
        %v1340 = vpop.f32.mrb[0].mxu0
        %1341 = vmatprep.mubr.f32.mxu0 0.0
        %1342 = vmatmul.mubr.f32.gmra.mrb[0].mxu0 %v1270
        %v1343 = vpop.f32.mrb[0].mxu0
        %v1344 = vadd.f32 0.0, %v1343
        %v1345 = vpop.f32.mrb[0].mxu0
        %1346 = vdwg.mxu0
        %v1347 = vld [vmem:[%s4] sm:$0xff]
        %v1349 = vsel %vm425, %v1339, 0
        %v1352 = vsel %vm425, %v1344, 0
        %1354 = vmatprep.subr.mxu0 0.0
        %1355 = vmatpush1.msra.mxu0 %v1347
        %1356 = vmatprep.subr.mxu0 0.0
        %1357 = vmatpush1.msra.mxu0 0.0
        %1358 = vmatprep.subr.mxu0 0.0
        %1359 = vmatpush1.msra.mxu0 0.0
        %1360 = vmatprep.subr.mxu0 0.0
        %1361 = vmatpush1.msra.mxu0 0.0
        %1362 = vmatprep.subr.mxu0 0.0
        %1363 = vmatpush1.msra.mxu0 0.0
        %1364 = vmatprep.subr.mxu0 0.0
        %1365 = vmatpush1.msra.mxu0 0.0
        %1366 = vmatprep.subr.mxu0 0.0
        %1367 = vmatpush1.msra.mxu0 0.0
        %1368 = vmatprep.subr.mxu0 0.0
        %1369 = vmatpush1.msra.mxu0 0.0
        %1370 = vmatprep.subr.mxu0 0.0
        %1371 = vmatpush1.msra.mxu0 0.0
        %1372 = vmatprep.subr.mxu0 0.0
        %1373 = vmatpush1.msra.mxu0 0.0
        %1374 = vmatprep.subr.mxu0 0.0
        %1375 = vmatpush1.msra.mxu0 0.0
        %1376 = vmatprep.subr.mxu0 0.0
        %1377 = vmatpush1.msra.mxu0 0.0
        %1378 = vmatprep.subr.mxu0 0.0
        %1379 = vmatpush1.msra.mxu0 0.0
        %1380 = vmatprep.subr.mxu0 0.0
        %1381 = vmatpush1.msra.mxu0 0.0
        %1382 = vmatprep.subr.mxu0 0.0
        %1383 = vmatpush1.msra.mxu0 0.0
        %1384 = vmatprep.subr.mxu0 0.0
        %1385 = vmatpush1.msra.mxu0 0.0
        %1386 = vmatprep.subr.mxu0 0.0
        %1387 = vmatpush1.msra.mxu0 0.0
        %1388 = vmatprep.subr.mxu0 0.0
        %1389 = vmatpush1.msra.mxu0 0.0
        %1390 = vmatprep.subr.mxu0 0.0
        %1391 = vmatpush1.msra.mxu0 0.0
        %1392 = vmatprep.subr.mxu0 0.0
        %1393 = vmatpush1.msra.mxu0 0.0
        %1394 = vmatprep.subr.mxu0 0.0
        %1395 = vmatpush1.msra.mxu0 0.0
        %1396 = vmatprep.subr.mxu0 0.0
        %1397 = vmatpush1.msra.mxu0 0.0
        %1398 = vmatprep.subr.mxu0 0.0
        %1399 = vmatpush1.msra.mxu0 0.0
        %1400 = vmatprep.subr.mxu0 0.0
        %1401 = vmatpush1.msra.mxu0 0.0
        %1402 = vmatprep.subr.mxu0 0.0
        %1403 = vmatpush1.msra.mxu0 0.0
        %1404 = vmatprep.subr.mxu0 0.0
        %1405 = vmatpush1.msra.mxu0 0.0
        %1406 = vmatprep.subr.mxu0 0.0
        %1407 = vmatpush1.msra.mxu0 0.0
        %1408 = vmatprep.subr.mxu0 0.0
        %1409 = vmatpush1.msra.mxu0 0.0
        %1410 = vmatprep.subr.mxu0 0.0
        %1411 = vmatpush1.msra.mxu0 0.0
        %1412 = vmatprep.subr.mxu0 0.0
        %1413 = vmatpush1.msra.mxu0 0.0
        %1414 = vmatprep.subr.mxu0 0.0
        %1415 = vmatpush1.msra.mxu0 0.0
        %1416 = vmatprep.subr.mxu0 0.0
        %1417 = vmatpush1.msra.mxu0 0.0
        %1418 = vmatprep.mubr.f32.mxu0 0.0
        %1419 = vmatmul.mubr.f32.gmra.mrb[0].mxu0 %v1349
        %v1420 = vpop.f32.mrb[0].mxu0
        %v1421 = vadd.f32 0.0, %v1420
        %v1422 = vpop.f32.mrb[0].mxu0
        %1423 = vmatprep.mubr.f32.mxu0 0.0
        %1424 = vmatmul.mubr.f32.gmra.mrb[0].mxu0 %v1352
        %v1425 = vpop.f32.mrb[0].mxu0
        %v1426 = vadd.f32 0.0, %v1425
        %v1427 = vpop.f32.mrb[0].mxu0
        %1428 = vdwg.mxu0
        %s1429 = scalar_lea.vmem %s217, 80 [#allocation2]
        %1430 = vst.msk [vmem:[%s1429] sm:$0xff] %vm589, %v1421
        %1431 = vst.msk [vmem:[%s1429 + $0x8] sm:$0xff] %vm589, %v1426
        %v1432 = vld [vmem:[%s3] sm:$0xff]
        %v1433 = vld [vmem:[%s3 + $0x8] sm:$0xff]
        %v1435 = vsel %vm425, %v1432, 0
        %v1438 = vsel %vm425, %v1433, 0
        %1440 = vmatprep.subr.mxu0 0.0
        %1441 = vmatpush1.msra.mxu0 %v421
        %1442 = vmatprep.subr.mxu0 0.0
        %1443 = vmatpush1.msra.mxu0 0.0
        %1444 = vmatprep.subr.mxu0 0.0
        %1445 = vmatpush1.msra.mxu0 0.0
        %1446 = vmatprep.subr.mxu0 0.0
        %1447 = vmatpush1.msra.mxu0 0.0
        %1448 = vmatprep.subr.mxu0 0.0
        %1449 = vmatpush1.msra.mxu0 0.0
        %1450 = vmatprep.subr.mxu0 0.0
        %1451 = vmatpush1.msra.mxu0 0.0
        %1452 = vmatprep.subr.mxu0 0.0
        %1453 = vmatpush1.msra.mxu0 0.0
        %1454 = vmatprep.subr.mxu0 0.0
        %1455 = vmatpush1.msra.mxu0 0.0
        %1456 = vmatprep.subr.mxu0 0.0
        %1457 = vmatpush1.msra.mxu0 0.0
        %1458 = vmatprep.subr.mxu0 0.0
        %1459 = vmatpush1.msra.mxu0 0.0
        %1460 = vmatprep.subr.mxu0 0.0
        %1461 = vmatpush1.msra.mxu0 0.0
        %1462 = vmatprep.subr.mxu0 0.0
        %1463 = vmatpush1.msra.mxu0 0.0
        %1464 = vmatprep.subr.mxu0 0.0
        %1465 = vmatpush1.msra.mxu0 0.0
        %1466 = vmatprep.subr.mxu0 0.0
        %1467 = vmatpush1.msra.mxu0 0.0
        %1468 = vmatprep.subr.mxu0 0.0
        %1469 = vmatpush1.msra.mxu0 0.0
        %1470 = vmatprep.subr.mxu0 0.0
        %1471 = vmatpush1.msra.mxu0 0.0
        %1472 = vmatprep.subr.mxu0 0.0
        %1473 = vmatpush1.msra.mxu0 0.0
        %1474 = vmatprep.subr.mxu0 0.0
        %1475 = vmatpush1.msra.mxu0 0.0
        %1476 = vmatprep.subr.mxu0 0.0
        %1477 = vmatpush1.msra.mxu0 0.0
        %1478 = vmatprep.subr.mxu0 0.0
        %1479 = vmatpush1.msra.mxu0 0.0
        %1480 = vmatprep.subr.mxu0 0.0
        %1481 = vmatpush1.msra.mxu0 0.0
        %1482 = vmatprep.subr.mxu0 0.0
        %1483 = vmatpush1.msra.mxu0 0.0
        %1484 = vmatprep.subr.mxu0 0.0
        %1485 = vmatpush1.msra.mxu0 0.0
        %1486 = vmatprep.subr.mxu0 0.0
        %1487 = vmatpush1.msra.mxu0 0.0
        %1488 = vmatprep.subr.mxu0 0.0
        %1489 = vmatpush1.msra.mxu0 0.0
        %1490 = vmatprep.subr.mxu0 0.0
        %1491 = vmatpush1.msra.mxu0 0.0
        %1492 = vmatprep.subr.mxu0 0.0
        %1493 = vmatpush1.msra.mxu0 0.0
        %1494 = vmatprep.subr.mxu0 0.0
        %1495 = vmatpush1.msra.mxu0 0.0
        %1496 = vmatprep.subr.mxu0 0.0
        %1497 = vmatpush1.msra.mxu0 0.0
        %1498 = vmatprep.subr.mxu0 0.0
        %1499 = vmatpush1.msra.mxu0 0.0
        %1500 = vmatprep.subr.mxu0 0.0
        %1501 = vmatpush1.msra.mxu0 0.0
        %1502 = vmatprep.subr.mxu0 0.0
        %1503 = vmatpush1.msra.mxu0 0.0
        %1504 = vmatprep.mubr.f32.mxu0 0.0
        %1505 = vmatmul.mubr.f32.gmra.mrb[0].mxu0 %v1435
        %v1506 = vpop.f32.mrb[0].mxu0
        %v1507 = vadd.f32 0.0, %v1506
        %v1508 = vpop.f32.mrb[0].mxu0
        %1509 = vmatprep.mubr.f32.mxu0 0.0
        %1510 = vmatmul.mubr.f32.gmra.mrb[0].mxu0 %v1438
        %v1511 = vpop.f32.mrb[0].mxu0
        %v1512 = vadd.f32 0.0, %v1511
        %v1513 = vpop.f32.mrb[0].mxu0
        %1514 = vdwg.mxu0
        %v1515 = vld [vmem:[%s4] sm:$0xff]
        %v1517 = vsel %vm425, %v1507, 0
        %v1520 = vsel %vm425, %v1512, 0
        %1522 = vmatprep.subr.mxu0 0.0
        %1523 = vmatpush1.msra.mxu0 %v1515
        %1524 = vmatprep.subr.mxu0 0.0
        %1525 = vmatpush1.msra.mxu0 0.0
        %1526 = vmatprep.subr.mxu0 0.0
        %1527 = vmatpush1.msra.mxu0 0.0
        %1528 = vmatprep.subr.mxu0 0.0
        %1529 = vmatpush1.msra.mxu0 0.0
        %1530 = vmatprep.subr.mxu0 0.0
        %1531 = vmatpush1.msra.mxu0 0.0
        %1532 = vmatprep.subr.mxu0 0.0
        %1533 = vmatpush1.msra.mxu0 0.0
        %1534 = vmatprep.subr.mxu0 0.0
        %1535 = vmatpush1.msra.mxu0 0.0
        %1536 = vmatprep.subr.mxu0 0.0
        %1537 = vmatpush1.msra.mxu0 0.0
        %1538 = vmatprep.subr.mxu0 0.0
        %1539 = vmatpush1.msra.mxu0 0.0
        %1540 = vmatprep.subr.mxu0 0.0
        %1541 = vmatpush1.msra.mxu0 0.0
        %1542 = vmatprep.subr.mxu0 0.0
        %1543 = vmatpush1.msra.mxu0 0.0
        %1544 = vmatprep.subr.mxu0 0.0
        %1545 = vmatpush1.msra.mxu0 0.0
        %1546 = vmatprep.subr.mxu0 0.0
        %1547 = vmatpush1.msra.mxu0 0.0
        %1548 = vmatprep.subr.mxu0 0.0
        %1549 = vmatpush1.msra.mxu0 0.0
        %1550 = vmatprep.subr.mxu0 0.0
        %1551 = vmatpush1.msra.mxu0 0.0
        %1552 = vmatprep.subr.mxu0 0.0
        %1553 = vmatpush1.msra.mxu0 0.0
        %1554 = vmatprep.subr.mxu0 0.0
        %1555 = vmatpush1.msra.mxu0 0.0
        %1556 = vmatprep.subr.mxu0 0.0
        %1557 = vmatpush1.msra.mxu0 0.0
        %1558 = vmatprep.subr.mxu0 0.0
        %1559 = vmatpush1.msra.mxu0 0.0
        %1560 = vmatprep.subr.mxu0 0.0
        %1561 = vmatpush1.msra.mxu0 0.0
        %1562 = vmatprep.subr.mxu0 0.0
        %1563 = vmatpush1.msra.mxu0 0.0
        %1564 = vmatprep.subr.mxu0 0.0
        %1565 = vmatpush1.msra.mxu0 0.0
        %1566 = vmatprep.subr.mxu0 0.0
        %1567 = vmatpush1.msra.mxu0 0.0
        %1568 = vmatprep.subr.mxu0 0.0
        %1569 = vmatpush1.msra.mxu0 0.0
        %1570 = vmatprep.subr.mxu0 0.0
        %1571 = vmatpush1.msra.mxu0 0.0
        %1572 = vmatprep.subr.mxu0 0.0
        %1573 = vmatpush1.msra.mxu0 0.0
        %1574 = vmatprep.subr.mxu0 0.0
        %1575 = vmatpush1.msra.mxu0 0.0
        %1576 = vmatprep.subr.mxu0 0.0
        %1577 = vmatpush1.msra.mxu0 0.0
        %1578 = vmatprep.subr.mxu0 0.0
        %1579 = vmatpush1.msra.mxu0 0.0
        %1580 = vmatprep.subr.mxu0 0.0
        %1581 = vmatpush1.msra.mxu0 0.0
        %1582 = vmatprep.subr.mxu0 0.0
        %1583 = vmatpush1.msra.mxu0 0.0
        %1584 = vmatprep.subr.mxu0 0.0
        %1585 = vmatpush1.msra.mxu0 0.0
        %1586 = vmatprep.mubr.f32.mxu0 0.0
        %1587 = vmatmul.mubr.f32.gmra.mrb[0].mxu0 %v1517
        %v1588 = vpop.f32.mrb[0].mxu0
        %v1589 = vadd.f32 0.0, %v1588
        %v1590 = vpop.f32.mrb[0].mxu0
        %1591 = vmatprep.mubr.f32.mxu0 0.0
        %1592 = vmatmul.mubr.f32.gmra.mrb[0].mxu0 %v1520
        %v1593 = vpop.f32.mrb[0].mxu0
        %v1594 = vadd.f32 0.0, %v1593
        %v1595 = vpop.f32.mrb[0].mxu0
        %1596 = vdwg.mxu0
        %s1597 = scalar_lea.vmem %s217, 96 [#allocation2]
        %1598 = vst.msk [vmem:[%s1597] sm:$0xff] %vm589, %v1589
        %1599 = vst.msk [vmem:[%s1597 + $0x8] sm:$0xff] %vm589, %v1594
        %v1600 = vld [vmem:[%s3] sm:$0xff]
        %v1601 = vld [vmem:[%s3 + $0x8] sm:$0xff]
        %v1603 = vsel %vm425, %v1600, 0
        %v1606 = vsel %vm425, %v1601, 0
        %1608 = vmatprep.subr.mxu0 0.0
        %1609 = vmatpush1.msra.mxu0 %v422
        %1610 = vmatprep.subr.mxu0 0.0
        %1611 = vmatpush1.msra.mxu0 0.0
        %1612 = vmatprep.subr.mxu0 0.0
        %1613 = vmatpush1.msra.mxu0 0.0
        %1614 = vmatprep.subr.mxu0 0.0
        %1615 = vmatpush1.msra.mxu0 0.0
        %1616 = vmatprep.subr.mxu0 0.0
        %1617 = vmatpush1.msra.mxu0 0.0
        %1618 = vmatprep.subr.mxu0 0.0
        %1619 = vmatpush1.msra.mxu0 0.0
        %1620 = vmatprep.subr.mxu0 0.0
        %1621 = vmatpush1.msra.mxu0 0.0
        %1622 = vmatprep.subr.mxu0 0.0
        %1623 = vmatpush1.msra.mxu0 0.0
        %1624 = vmatprep.subr.mxu0 0.0
        %1625 = vmatpush1.msra.mxu0 0.0
        %1626 = vmatprep.subr.mxu0 0.0
        %1627 = vmatpush1.msra.mxu0 0.0
        %1628 = vmatprep.subr.mxu0 0.0
        %1629 = vmatpush1.msra.mxu0 0.0
        %1630 = vmatprep.subr.mxu0 0.0
        %1631 = vmatpush1.msra.mxu0 0.0
        %1632 = vmatprep.subr.mxu0 0.0
        %1633 = vmatpush1.msra.mxu0 0.0
        %1634 = vmatprep.subr.mxu0 0.0
        %1635 = vmatpush1.msra.mxu0 0.0
        %1636 = vmatprep.subr.mxu0 0.0
        %1637 = vmatpush1.msra.mxu0 0.0
        %1638 = vmatprep.subr.mxu0 0.0
        %1639 = vmatpush1.msra.mxu0 0.0
        %1640 = vmatprep.subr.mxu0 0.0
        %1641 = vmatpush1.msra.mxu0 0.0
        %1642 = vmatprep.subr.mxu0 0.0
        %1643 = vmatpush1.msra.mxu0 0.0
        %1644 = vmatprep.subr.mxu0 0.0
        %1645 = vmatpush1.msra.mxu0 0.0
        %1646 = vmatprep.subr.mxu0 0.0
        %1647 = vmatpush1.msra.mxu0 0.0
        %1648 = vmatprep.subr.mxu0 0.0
        %1649 = vmatpush1.msra.mxu0 0.0
        %1650 = vmatprep.subr.mxu0 0.0
        %1651 = vmatpush1.msra.mxu0 0.0
        %1652 = vmatprep.subr.mxu0 0.0
        %1653 = vmatpush1.msra.mxu0 0.0
        %1654 = vmatprep.subr.mxu0 0.0
        %1655 = vmatpush1.msra.mxu0 0.0
        %1656 = vmatprep.subr.mxu0 0.0
        %1657 = vmatpush1.msra.mxu0 0.0
        %1658 = vmatprep.subr.mxu0 0.0
        %1659 = vmatpush1.msra.mxu0 0.0
        %1660 = vmatprep.subr.mxu0 0.0
        %1661 = vmatpush1.msra.mxu0 0.0
        %1662 = vmatprep.subr.mxu0 0.0
        %1663 = vmatpush1.msra.mxu0 0.0
        %1664 = vmatprep.subr.mxu0 0.0
        %1665 = vmatpush1.msra.mxu0 0.0
        %1666 = vmatprep.subr.mxu0 0.0
        %1667 = vmatpush1.msra.mxu0 0.0
        %1668 = vmatprep.subr.mxu0 0.0
        %1669 = vmatpush1.msra.mxu0 0.0
        %1670 = vmatprep.subr.mxu0 0.0
        %1671 = vmatpush1.msra.mxu0 0.0
        %1672 = vmatprep.mubr.f32.mxu0 0.0
        %1673 = vmatmul.mubr.f32.gmra.mrb[0].mxu0 %v1603
        %v1674 = vpop.f32.mrb[0].mxu0
        %v1675 = vadd.f32 0.0, %v1674
        %v1676 = vpop.f32.mrb[0].mxu0
        %1677 = vmatprep.mubr.f32.mxu0 0.0
        %1678 = vmatmul.mubr.f32.gmra.mrb[0].mxu0 %v1606
        %v1679 = vpop.f32.mrb[0].mxu0
        %v1680 = vadd.f32 0.0, %v1679
        %v1681 = vpop.f32.mrb[0].mxu0
        %1682 = vdwg.mxu0
        %v1683 = vld [vmem:[%s4] sm:$0xff]
        %v1685 = vsel %vm425, %v1675, 0
        %v1688 = vsel %vm425, %v1680, 0
        %1690 = vmatprep.subr.mxu0 0.0
        %1691 = vmatpush1.msra.mxu0 %v1683
        %1692 = vmatprep.subr.mxu0 0.0
        %1693 = vmatpush1.msra.mxu0 0.0
        %1694 = vmatprep.subr.mxu0 0.0
        %1695 = vmatpush1.msra.mxu0 0.0
        %1696 = vmatprep.subr.mxu0 0.0
        %1697 = vmatpush1.msra.mxu0 0.0
        %1698 = vmatprep.subr.mxu0 0.0
        %1699 = vmatpush1.msra.mxu0 0.0
        %1700 = vmatprep.subr.mxu0 0.0
        %1701 = vmatpush1.msra.mxu0 0.0
        %1702 = vmatprep.subr.mxu0 0.0
        %1703 = vmatpush1.msra.mxu0 0.0
        %1704 = vmatprep.subr.mxu0 0.0
        %1705 = vmatpush1.msra.mxu0 0.0
        %1706 = vmatprep.subr.mxu0 0.0
        %1707 = vmatpush1.msra.mxu0 0.0
        %1708 = vmatprep.subr.mxu0 0.0
        %1709 = vmatpush1.msra.mxu0 0.0
        %1710 = vmatprep.subr.mxu0 0.0
        %1711 = vmatpush1.msra.mxu0 0.0
        %1712 = vmatprep.subr.mxu0 0.0
        %1713 = vmatpush1.msra.mxu0 0.0
        %1714 = vmatprep.subr.mxu0 0.0
        %1715 = vmatpush1.msra.mxu0 0.0
        %1716 = vmatprep.subr.mxu0 0.0
        %1717 = vmatpush1.msra.mxu0 0.0
        %1718 = vmatprep.subr.mxu0 0.0
        %1719 = vmatpush1.msra.mxu0 0.0
        %1720 = vmatprep.subr.mxu0 0.0
        %1721 = vmatpush1.msra.mxu0 0.0
        %1722 = vmatprep.subr.mxu0 0.0
        %1723 = vmatpush1.msra.mxu0 0.0
        %1724 = vmatprep.subr.mxu0 0.0
        %1725 = vmatpush1.msra.mxu0 0.0
        %1726 = vmatprep.subr.mxu0 0.0
        %1727 = vmatpush1.msra.mxu0 0.0
        %1728 = vmatprep.subr.mxu0 0.0
        %1729 = vmatpush1.msra.mxu0 0.0
        %1730 = vmatprep.subr.mxu0 0.0
        %1731 = vmatpush1.msra.mxu0 0.0
        %1732 = vmatprep.subr.mxu0 0.0
        %1733 = vmatpush1.msra.mxu0 0.0
        %1734 = vmatprep.subr.mxu0 0.0
        %1735 = vmatpush1.msra.mxu0 0.0
        %1736 = vmatprep.subr.mxu0 0.0
        %1737 = vmatpush1.msra.mxu0 0.0
        %1738 = vmatprep.subr.mxu0 0.0
        %1739 = vmatpush1.msra.mxu0 0.0
        %1740 = vmatprep.subr.mxu0 0.0
        %1741 = vmatpush1.msra.mxu0 0.0
        %1742 = vmatprep.subr.mxu0 0.0
        %1743 = vmatpush1.msra.mxu0 0.0
        %1744 = vmatprep.subr.mxu0 0.0
        %1745 = vmatpush1.msra.mxu0 0.0
        %1746 = vmatprep.subr.mxu0 0.0
        %1747 = vmatpush1.msra.mxu0 0.0
        %1748 = vmatprep.subr.mxu0 0.0
        %1749 = vmatpush1.msra.mxu0 0.0
        %1750 = vmatprep.subr.mxu0 0.0
        %1751 = vmatpush1.msra.mxu0 0.0
        %1752 = vmatprep.subr.mxu0 0.0
        %1753 = vmatpush1.msra.mxu0 0.0
        %1754 = vmatprep.mubr.f32.mxu0 0.0
        %1755 = vmatmul.mubr.f32.gmra.mrb[0].mxu0 %v1685
        %v1756 = vpop.f32.mrb[0].mxu0
        %v1757 = vadd.f32 0.0, %v1756
        %v1758 = vpop.f32.mrb[0].mxu0
        %1759 = vmatprep.mubr.f32.mxu0 0.0
        %1760 = vmatmul.mubr.f32.gmra.mrb[0].mxu0 %v1688
        %v1761 = vpop.f32.mrb[0].mxu0
        %v1762 = vadd.f32 0.0, %v1761
        %v1763 = vpop.f32.mrb[0].mxu0
        %1764 = vdwg.mxu0
        %s1765 = scalar_lea.vmem %s217, 112 [#allocation2]
        %1766 = vst.msk [vmem:[%s1765] sm:$0xff] %vm589, %v1757
        %1767 = vst.msk [vmem:[%s1765 + $0x8] sm:$0xff] %vm589, %v1762
        %s1768 = sand.u32 %s137, 1
        %s1769 = scalar_lea.sflag [#allocation3], %s1768
        %s1770 = sand.u32 %s137, 1
        %s1771 = smul.addr %s1770, 128
        %s1772 = scalar_lea.vmem [#allocation2], %s1771
        // Predicated region
        $region41: #{downup_forward.5} parent=39 // pred_check
          %p1773 = pneg %p147
        $region42: #{downup_forward.5} parent=39 // pred_check_branch
          %1775 = sbr.rel (%p1773) target = $region44
        $region43: #{downup_forward.5} parent=39 // pred_region
          %s1777 = ssub.s32 2048, 2048
          %1778 = vsyncadd %s1769, %s1777
          %s1779 = smul.addr %s19, 16
          %s1780 = smul.addr %s1779, 128
          %s1781 = scalar_lea.hbm %s5, %s1780
          %s1782 = sshll.u32 %s1772, 4
          %s1783 = int_to_ptr.vmem [resolvable:$true] %s1782
          %1788 = dma.vmem_to_hbm [thread:$0]  %s1783, 2048, %s1781, %s1769, 128, 128, 8
        $region44: #{downup_forward.5} parent=39 // pred_fallthru
          _
      $region40: #{downup_forward.5} parent=5 // pred_fallthru
        _
      %p1789 = scmp.le.s32.totalorder 2, %s14
      // Predicated region
      $region45: #{downup_forward.5} parent=5 // pred_check
        %p1790 = pneg %p1789
      $region46: #{downup_forward.5} parent=5 // pred_check_branch
        %1792 = sbr.rel (%p1790) target = $region48
      $region47: #{downup_forward.5} parent=5 // pred_region
        %s1793 = ssub.s32 %s14, 2
        // Predicated region
        $region49: #{downup_forward.5} parent=47 // pred_check
          %p1794 = pneg %p153
        $region50: #{downup_forward.5} parent=47 // pred_check_branch
          %1796 = sbr.rel (%p1794) target = $region52
        $region51: #{downup_forward.5} parent=47 // pred_region
          %s1797 = sand.u32 %s138, 1
          %s1798 = scalar_lea.sflag [#allocation3], %s1797
          %s1799 = sand.u32 %s138, 1
          %s1800 = smul.addr %s1799, 128
          %s1801 = scalar_lea.vmem [#allocation2], %s1800
          %1802 = dma.done %s1798, 2048
        $region52: #{downup_forward.5} parent=47 // pred_fallthru
          _
      $region48: #{downup_forward.5} parent=5 // pred_fallthru
        _
    $region6: #{downup_forward.5} parent=1 // loop_footer
      %s18 = sadd.s32 1, %s14
    $region7: #{downup_forward.5} parent=1 // loop_footer_branch
      %13 = sbr.rel target = $region3
    $region8: #{downup_forward.5} parent=1 // loop_exit
      _
    %1803 = vsyncpa [#allocation3], 1
    %s1804 = scalar_lea.sflag [#allocation3], 1
    %1805 = vsyncpa %s1804, 1

</llo_original>
